<compile_context>
chip_gen: v5e
topology: v5e:2x2
jax: 0.10.0
libtpu: 0.0.40
codegen_flags: <defaults>
</compile_context>

<pallas_src>
import math

import jax
import jax.numpy as jnp
from jax.experimental import pallas as pl
from jax.experimental.pallas import tpu as pltpu

H_IN = 16          # input spatial size (H == W == 16), Cin == 1
ROWS_PER_IMG = 16  # activation rows carried per image (rows >= Ho are don't-care)


# --------------------------- weight preprocessing -----------------------------

def make_band_weight(w_hwio, w_in):
    """(3,3,Cin,Cout) HWIO conv weight -> (3, w_in*Cin, (w_in-2)*Cout) bands.

    band[ky][p*Cin+ci, wo*Cout+co] = w[ky, p-wo, ci, co] if 0 <= p-wo < 3 else 0,
    so  out[row, wo*Cout+co] = sum_ky  x[row+ky, :] @ band[ky]
    is the valid 3x3 cross-correlation with the (W, C) axes flattened on lanes.
    """
    _, _, cin, cout = w_hwio.shape
    wo_n = w_in - 2
    p = jnp.arange(w_in)[:, None]             # input column position
    wo = jnp.arange(wo_n)[None, :]            # output column position
    kx = p - wo                                # (w_in, wo_n)
    mask = ((kx >= 0) & (kx < 3)).astype(w_hwio.dtype)
    g = w_hwio[:, jnp.clip(kx, 0, 2), :, :]    # (3, w_in, wo_n, cin, cout)
    g = g * mask[None, :, :, None, None]
    band = jnp.transpose(g, (0, 1, 3, 2, 4)).reshape(3, w_in * cin, wo_n * cout)
    return band


def make_pool_weight(w_hwio, w_in=10, pool=8, lanes=128):
    """Fold conv4 (3x3, 64->2) + global 8x8 mean pool into one matmul weight.

    Acts on the lane-concat of the 3 per-ky row-window sums of the (10, 10*64)
    map:  out[n, c] = concat_ky(rowsum_ky)[n, :] @ W,  W: (3*10*64, lanes).
    The kx window sum and the 1/64 mean factor are folded in; columns >= Cout
    are zero (lane-dense output).
    """
    _, _, cin, cout = w_hwio.shape
    p = jnp.arange(w_in)[:, None]
    kx = jnp.arange(3)[None, :]
    valid = (((p - kx) >= 0) & ((p - kx) < pool)).astype(w_hwio.dtype)   # (w_in, 3)
    folded = jnp.einsum("pk,ykic->ypic", valid, w_hwio)                  # (3,w_in,ci,co)
    w = folded.reshape(3 * w_in * cin, cout) / float(pool * pool)
    return jnp.pad(w, ((0, 0), (0, lanes - cout)))


# ----------------------------- Pallas kernel ---------------------------------

def _conv3x3_band(a, w_ref, b_ref, out_dtype):
    """One banded 3x3 valid conv + bias + ReLU.

    a:     (R, W*Cin) activations, 16 rows per image (rows >= Ho are junk).
    w_ref: (3, W*Cin, Wo*Cout) bf16 banded weights (ref).
    b_ref: (1, Wo*Cout) f32 bias, already tiled over Wo (ref).
    Returns (R, Wo*Cout) in out_dtype; rows >= Ho per image are junk.
    """
    r, d = a.shape
    ab = a.astype(jnp.bfloat16)
    # 8 aligned zero rows so the +1 / +2 row-shifted taps are plain static slices.
    ap = jnp.concatenate([ab, jnp.zeros((8, d), jnp.bfloat16)], axis=0)
    acc = jnp.dot(ab, w_ref[0], preferred_element_type=jnp.float32)
    acc = acc + jnp.dot(ap[1:r + 1, :], w_ref[1], preferred_element_type=jnp.float32)
    acc = acc + jnp.dot(ap[2:r + 2, :], w_ref[2], preferred_element_type=jnp.float32)
    out = jnp.maximum(acc + b_ref[...], 0.0)
    return out.astype(out_dtype)


def net_kernel(x_ref, w1_ref, b1_ref, w2_ref, b2_ref, w3_ref, b3_ref,
               w4_ref, b4_ref, out_ref):
    x = x_ref[...]                                         # (nb*16, 16) f32
    r = x.shape[0]
    nb = r // ROWS_PER_IMG

    h = _conv3x3_band(x, w1_ref, b1_ref, jnp.bfloat16)     # (r, 14*16 = 224)
    h = _conv3x3_band(h, w2_ref, b2_ref, jnp.bfloat16)     # (r, 12*32 = 384)
    h = _conv3x3_band(h, w3_ref, b3_ref, jnp.float32)      # (r, 10*64 = 640)

    # conv4 + global 8x8 mean pool, fused.  Valid rows per image: 0..9.
    h3 = h.reshape(nb, ROWS_PER_IMG, h.shape[-1])          # free: 16 % 8 == 0
    total = jnp.sum(h3[:, 0:10, :], axis=1)                # (nb, 640)
    r0 = h3[:, 0, :]
    r1 = h3[:, 1, :]
    r8 = h3[:, 8, :]
    r9 = h3[:, 9, :]
    pooled = jnp.concatenate([total - r8 - r9,             # row-window 0..7
                              total - r0 - r9,             # row-window 1..8
                              total - r0 - r1],            # row-window 2..9
                             axis=-1)                      # (nb, 1920), lane-aligned
    out_ref[...] = (jnp.dot(pooled.astype(jnp.bfloat16), w4_ref[...],
                            preferred_element_type=jnp.float32)
                    + b4_ref[...])                         # (nb, 128); lanes >= 2 are 0


def net_forward(x_nchw, params, *, batch_block=64):
    """x_nchw: (N, 1, 16, 16) float32. Returns (N, 2) float32 logits."""
    (w1, b1), (w2, b2), (w3, b3), (w4, b4) = params
    n = x_nchw.shape[0]
    x2d = x_nchw.reshape(n * H_IN, H_IN)        # row = image*16 + y, lanes = x (Cin==1)

    # Banded / folded weights and tiled biases (weight-sized, trace-time work).
    w1b = make_band_weight(w1, 16).astype(jnp.bfloat16)     # (3,  16, 224)
    w2b = make_band_weight(w2, 14).astype(jnp.bfloat16)     # (3, 224, 384)
    w3b = make_band_weight(w3, 12).astype(jnp.bfloat16)     # (3, 384, 640)
    w4p = make_pool_weight(w4).astype(jnp.bfloat16)         # (1920, 128), has 1/64
    b1r = jnp.tile(b1, (1, 14))                              # (1, 224)
    b2r = jnp.tile(b2, (1, 12))                              # (1, 384)
    b3r = jnp.tile(b3, (1, 10))                              # (1, 640)
    b4p = jnp.pad(b4, ((0, 0), (0, 128 - b4.shape[-1])))     # (1, 128)

    nb = min(n, batch_block)                 # batch tile (multiple of 8, or == N)
    rb = nb * ROWS_PER_IMG
    grid = (pl.cdiv(n, nb),)

    out_padded = pl.pallas_call(
        net_kernel,
        out_shape=jax.ShapeDtypeStruct((n, 128), jnp.float32),
        grid=grid,
        in_specs=[
            pl.BlockSpec((rb, 16), lambda i: (i, 0)),          # activations: blocked over N
            pl.BlockSpec((3, 16, 224), lambda i: (0, 0, 0)),   # weights / biases stay
            pl.BlockSpec((1, 224), lambda i: (0, 0)),          # resident in VMEM
            pl.BlockSpec((3, 224, 384), lambda i: (0, 0, 0)),
            pl.BlockSpec((1, 384), lambda i: (0, 0)),
            pl.BlockSpec((3, 384, 640), lambda i: (0, 0, 0)),
            pl.BlockSpec((1, 640), lambda i: (0, 0)),
            pl.BlockSpec((1920, 128), lambda i: (0, 0)),
            pl.BlockSpec((1, 128), lambda i: (0, 0)),
        ],
        out_specs=pl.BlockSpec((nb, 128), lambda i: (i, 0)),
        compiler_params=pltpu.CompilerParams(
            dimension_semantics=("parallel",),          # 2 TCs on v7x for multi-block N
            vmem_limit_bytes=40 * 1024 * 1024),         # fits v7x 64 MiB; needed on v5e
    )(x2d, w1b, b1r, w2b, b2r, w3b, b3r, w4p, b4p)

    return out_padded[:, :2]


# ----------------------------- parameter init --------------------------------

def xavier_uniform_conv(key, cin, cout, k=3):
    # matches torch.nn.init.xavier_uniform_ for a (Cout, Cin, k, k) conv weight
    fan_in = cin * k * k
    fan_out = cout * k * k
    bound = math.sqrt(6.0 / (fan_in + fan_out))
    # stored in HWIO layout (3, 3, Cin, Cout)
    return jax.random.uniform(key, (k, k, cin, cout), jnp.float32,
                              minval=-bound, maxval=bound)


def make_params(key):
    ks = jax.random.split(key, 4)
    chans = [(1, 16), (16, 32), (32, 64), (64, 2)]
    params = []
    for k, (cin, cout) in zip(ks, chans):
        w = xavier_uniform_conv(k, cin, cout)
        b = jnp.zeros((1, cout), jnp.float32)    # init.constant_(bias, 0)
        params.append((w, b))
    return params


# ----------------------------- reference (plain JAX) --------------------------

def net_forward_ref(x_nchw, params):
    x = jnp.transpose(x_nchw, (0, 2, 3, 1))
    for i, (w, b) in enumerate(params):
        x = jax.lax.conv_general_dilated(
            x, w, window_strides=(1, 1), padding="VALID",
            dimension_numbers=("NHWC", "HWIO", "NHWC")) + b.reshape(1, 1, 1, -1)
        if i < 3:
            x = jnp.maximum(x, 0.0)
    return jnp.mean(x, axis=(1, 2))


# ----------------------------------- main -------------------------------------

if __name__ == "__main__":
    key = jax.random.PRNGKey(0)
    k_x, k_p = jax.random.split(key)

    # small, module-consistent input: batch=2, 1 channel, 16x16 spatial (NCHW)
    x = jax.random.normal(k_x, (2, 1, 16, 16), jnp.float32)
    params = make_params(k_p)

    out = net_forward(x, params)
    out = jax.block_until_ready(out)

    ref = net_forward_ref(x, params)
    assert out.shape == (2, 2)
    # bf16 matmul operands with f32 accumulation -> relaxed tolerance.
    assert jnp.allclose(out, ref, atol=1e-2, rtol=1e-2), (out, ref)

    print("KERNEL_OK")
</pallas_src>

<mosaic_0001>
module attributes {stable_mosaic.version = 11 : i64} {
  func.func @net_kernel(%arg0: i32, %arg1: memref<32x16xf32, #tpu.memory_space<vmem>>, %arg2: memref<3x16x224xbf16, #tpu.memory_space<vmem>>, %arg3: memref<1x224xf32, #tpu.memory_space<vmem>>, %arg4: memref<3x224x384xbf16, #tpu.memory_space<vmem>>, %arg5: memref<1x384xf32, #tpu.memory_space<vmem>>, %arg6: memref<3x384x640xbf16, #tpu.memory_space<vmem>>, %arg7: memref<1x640xf32, #tpu.memory_space<vmem>>, %arg8: memref<1920x128xbf16, #tpu.memory_space<vmem>>, %arg9: memref<1x128xf32, #tpu.memory_space<vmem>>, %arg10: memref<2x128xf32, #tpu.memory_space<vmem>>) attributes {dimension_semantics = [#tpu.dimension_semantics<parallel>], iteration_bounds = array<i64: 1>, scalar_prefetch = 0 : i64, scratch_operands = 0 : i64, tpu.core_type = #tpu.core_type<tc>, window_params = [{transform_indices = @transform_0, window_bounds = array<i64: 32, 16>}, {pipeline_mode = #tpu.pipeline_mode<synchronous>, transform_indices = @transform_1, window_bounds = array<i64: 3, 16, 224>}, {pipeline_mode = #tpu.pipeline_mode<synchronous>, transform_indices = @transform_2, window_bounds = array<i64: 1, 224>}, {pipeline_mode = #tpu.pipeline_mode<synchronous>, transform_indices = @transform_3, window_bounds = array<i64: 3, 224, 384>}, {pipeline_mode = #tpu.pipeline_mode<synchronous>, transform_indices = @transform_4, window_bounds = array<i64: 1, 384>}, {pipeline_mode = #tpu.pipeline_mode<synchronous>, transform_indices = @transform_5, window_bounds = array<i64: 3, 384, 640>}, {pipeline_mode = #tpu.pipeline_mode<synchronous>, transform_indices = @transform_6, window_bounds = array<i64: 1, 640>}, {pipeline_mode = #tpu.pipeline_mode<synchronous>, transform_indices = @transform_7, window_bounds = array<i64: 1920, 128>}, {pipeline_mode = #tpu.pipeline_mode<synchronous>, transform_indices = @transform_8, window_bounds = array<i64: 1, 128>}, {transform_indices = @transform_9, window_bounds = array<i64: 2, 128>}]} {
    %c0 = arith.constant 0 : index
    %c0_0 = arith.constant 0 : index
    %0 = vector.load %arg1[%c0, %c0_0] : memref<32x16xf32, #tpu.memory_space<vmem>>, vector<32x16xf32>
    %1 = arith.truncf %0 : vector<32x16xf32> to vector<32x16xbf16>
    %cst = arith.constant 0.000000e+00 : bf16
    %2 = vector.broadcast %cst : bf16 to vector<8x16xbf16>
    %3 = tpu.concatenate %1, %2 in 0 : vector<32x16xbf16>, vector<8x16xbf16> -> vector<40x16xbf16>
    %c0_1 = arith.constant 0 : index
    %c0_2 = arith.constant 0 : index
    %c0_3 = arith.constant 0 : index
    %4 = vector.load %arg2[%c0_1, %c0_2, %c0_3] : memref<3x16x224xbf16, #tpu.memory_space<vmem>>, vector<1x16x224xbf16>
    %5 = vector.shape_cast %4 : vector<1x16x224xbf16> to vector<16x224xbf16>
    %cst_4 = arith.constant dense<0.000000e+00> : vector<32x224xf32>
    %6 = tpu.matmul %1, %5, %cst_4 {dimension_numbers = #tpu.dot_dimension_numbers<[1], [0], [0], [1], [0, 0, 1, 1], [], []>} : vector<32x16xbf16>, vector<16x224xbf16>, vector<32x224xf32> -> vector<32x224xf32>
    %7 = vector.extract_strided_slice %3 {offsets = [1, 0], sizes = [32, 16], strides = [1, 1]} : vector<40x16xbf16> to vector<32x16xbf16>
    %c1 = arith.constant 1 : index
    %c0_5 = arith.constant 0 : index
    %c0_6 = arith.constant 0 : index
    %8 = vector.load %arg2[%c1, %c0_5, %c0_6] : memref<3x16x224xbf16, #tpu.memory_space<vmem>>, vector<1x16x224xbf16>
    %9 = vector.shape_cast %8 : vector<1x16x224xbf16> to vector<16x224xbf16>
    %cst_7 = arith.constant dense<0.000000e+00> : vector<32x224xf32>
    %10 = tpu.matmul %7, %9, %cst_7 {dimension_numbers = #tpu.dot_dimension_numbers<[1], [0], [0], [1], [0, 0, 1, 1], [], []>} : vector<32x16xbf16>, vector<16x224xbf16>, vector<32x224xf32> -> vector<32x224xf32>
    %11 = arith.addf %6, %10 : vector<32x224xf32>
    %12 = vector.extract_strided_slice %3 {offsets = [2, 0], sizes = [32, 16], strides = [1, 1]} : vector<40x16xbf16> to vector<32x16xbf16>
    %c2 = arith.constant 2 : index
    %c0_8 = arith.constant 0 : index
    %c0_9 = arith.constant 0 : index
    %13 = vector.load %arg2[%c2, %c0_8, %c0_9] : memref<3x16x224xbf16, #tpu.memory_space<vmem>>, vector<1x16x224xbf16>
    %14 = vector.shape_cast %13 : vector<1x16x224xbf16> to vector<16x224xbf16>
    %cst_10 = arith.constant dense<0.000000e+00> : vector<32x224xf32>
    %15 = tpu.matmul %12, %14, %cst_10 {dimension_numbers = #tpu.dot_dimension_numbers<[1], [0], [0], [1], [0, 0, 1, 1], [], []>} : vector<32x16xbf16>, vector<16x224xbf16>, vector<32x224xf32> -> vector<32x224xf32>
    %16 = arith.addf %11, %15 : vector<32x224xf32>
    %c0_11 = arith.constant 0 : index
    %c0_12 = arith.constant 0 : index
    %17 = vector.load %arg3[%c0_11, %c0_12] : memref<1x224xf32, #tpu.memory_space<vmem>>, vector<1x224xf32>
    %18 = vector.broadcast %17 : vector<1x224xf32> to vector<32x224xf32>
    %19 = arith.addf %16, %18 : vector<32x224xf32>
    %cst_13 = arith.constant 0.000000e+00 : f32
    %20 = vector.broadcast %cst_13 : f32 to vector<32x224xf32>
    %21 = arith.maximumf %19, %20 : vector<32x224xf32>
    %22 = arith.truncf %21 : vector<32x224xf32> to vector<32x224xbf16>
    %cst_14 = arith.constant 0.000000e+00 : bf16
    %23 = vector.broadcast %cst_14 : bf16 to vector<8x224xbf16>
    %24 = tpu.concatenate %22, %23 in 0 : vector<32x224xbf16>, vector<8x224xbf16> -> vector<40x224xbf16>
    %c0_15 = arith.constant 0 : index
    %c0_16 = arith.constant 0 : index
    %c0_17 = arith.constant 0 : index
    %25 = vector.load %arg4[%c0_15, %c0_16, %c0_17] : memref<3x224x384xbf16, #tpu.memory_space<vmem>>, vector<1x224x384xbf16>
    %26 = vector.shape_cast %25 : vector<1x224x384xbf16> to vector<224x384xbf16>
    %cst_18 = arith.constant dense<0.000000e+00> : vector<32x384xf32>
    %27 = tpu.matmul %22, %26, %cst_18 {dimension_numbers = #tpu.dot_dimension_numbers<[1], [0], [0], [1], [0, 0, 1, 1], [], []>} : vector<32x224xbf16>, vector<224x384xbf16>, vector<32x384xf32> -> vector<32x384xf32>
    %28 = vector.extract_strided_slice %24 {offsets = [1, 0], sizes = [32, 224], strides = [1, 1]} : vector<40x224xbf16> to vector<32x224xbf16>
    %c1_19 = arith.constant 1 : index
    %c0_20 = arith.constant 0 : index
    %c0_21 = arith.constant 0 : index
    %29 = vector.load %arg4[%c1_19, %c0_20, %c0_21] : memref<3x224x384xbf16, #tpu.memory_space<vmem>>, vector<1x224x384xbf16>
    %30 = vector.shape_cast %29 : vector<1x224x384xbf16> to vector<224x384xbf16>
    %cst_22 = arith.constant dense<0.000000e+00> : vector<32x384xf32>
    %31 = tpu.matmul %28, %30, %cst_22 {dimension_numbers = #tpu.dot_dimension_numbers<[1], [0], [0], [1], [0, 0, 1, 1], [], []>} : vector<32x224xbf16>, vector<224x384xbf16>, vector<32x384xf32> -> vector<32x384xf32>
    %32 = arith.addf %27, %31 : vector<32x384xf32>
    %33 = vector.extract_strided_slice %24 {offsets = [2, 0], sizes = [32, 224], strides = [1, 1]} : vector<40x224xbf16> to vector<32x224xbf16>
    %c2_23 = arith.constant 2 : index
    %c0_24 = arith.constant 0 : index
    %c0_25 = arith.constant 0 : index
    %34 = vector.load %arg4[%c2_23, %c0_24, %c0_25] : memref<3x224x384xbf16, #tpu.memory_space<vmem>>, vector<1x224x384xbf16>
    %35 = vector.shape_cast %34 : vector<1x224x384xbf16> to vector<224x384xbf16>
    %cst_26 = arith.constant dense<0.000000e+00> : vector<32x384xf32>
    %36 = tpu.matmul %33, %35, %cst_26 {dimension_numbers = #tpu.dot_dimension_numbers<[1], [0], [0], [1], [0, 0, 1, 1], [], []>} : vector<32x224xbf16>, vector<224x384xbf16>, vector<32x384xf32> -> vector<32x384xf32>
    %37 = arith.addf %32, %36 : vector<32x384xf32>
    %c0_27 = arith.constant 0 : index
    %c0_28 = arith.constant 0 : index
    %38 = vector.load %arg5[%c0_27, %c0_28] : memref<1x384xf32, #tpu.memory_space<vmem>>, vector<1x384xf32>
    %39 = vector.broadcast %38 : vector<1x384xf32> to vector<32x384xf32>
    %40 = arith.addf %37, %39 : vector<32x384xf32>
    %cst_29 = arith.constant 0.000000e+00 : f32
    %41 = vector.broadcast %cst_29 : f32 to vector<32x384xf32>
    %42 = arith.maximumf %40, %41 : vector<32x384xf32>
    %43 = arith.truncf %42 : vector<32x384xf32> to vector<32x384xbf16>
    %cst_30 = arith.constant 0.000000e+00 : bf16
    %44 = vector.broadcast %cst_30 : bf16 to vector<8x384xbf16>
    %45 = tpu.concatenate %43, %44 in 0 : vector<32x384xbf16>, vector<8x384xbf16> -> vector<40x384xbf16>
    %c0_31 = arith.constant 0 : index
    %c0_32 = arith.constant 0 : index
    %c0_33 = arith.constant 0 : index
    %46 = vector.load %arg6[%c0_31, %c0_32, %c0_33] : memref<3x384x640xbf16, #tpu.memory_space<vmem>>, vector<1x384x640xbf16>
    %47 = vector.shape_cast %46 : vector<1x384x640xbf16> to vector<384x640xbf16>
    %cst_34 = arith.constant dense<0.000000e+00> : vector<32x640xf32>
    %48 = tpu.matmul %43, %47, %cst_34 {dimension_numbers = #tpu.dot_dimension_numbers<[1], [0], [0], [1], [0, 0, 1, 1], [], []>} : vector<32x384xbf16>, vector<384x640xbf16>, vector<32x640xf32> -> vector<32x640xf32>
    %49 = vector.extract_strided_slice %45 {offsets = [1, 0], sizes = [32, 384], strides = [1, 1]} : vector<40x384xbf16> to vector<32x384xbf16>
    %c1_35 = arith.constant 1 : index
    %c0_36 = arith.constant 0 : index
    %c0_37 = arith.constant 0 : index
    %50 = vector.load %arg6[%c1_35, %c0_36, %c0_37] : memref<3x384x640xbf16, #tpu.memory_space<vmem>>, vector<1x384x640xbf16>
    %51 = vector.shape_cast %50 : vector<1x384x640xbf16> to vector<384x640xbf16>
    %cst_38 = arith.constant dense<0.000000e+00> : vector<32x640xf32>
    %52 = tpu.matmul %49, %51, %cst_38 {dimension_numbers = #tpu.dot_dimension_numbers<[1], [0], [0], [1], [0, 0, 1, 1], [], []>} : vector<32x384xbf16>, vector<384x640xbf16>, vector<32x640xf32> -> vector<32x640xf32>
    %53 = arith.addf %48, %52 : vector<32x640xf32>
    %54 = vector.extract_strided_slice %45 {offsets = [2, 0], sizes = [32, 384], strides = [1, 1]} : vector<40x384xbf16> to vector<32x384xbf16>
    %c2_39 = arith.constant 2 : index
    %c0_40 = arith.constant 0 : index
    %c0_41 = arith.constant 0 : index
    %55 = vector.load %arg6[%c2_39, %c0_40, %c0_41] : memref<3x384x640xbf16, #tpu.memory_space<vmem>>, vector<1x384x640xbf16>
    %56 = vector.shape_cast %55 : vector<1x384x640xbf16> to vector<384x640xbf16>
    %cst_42 = arith.constant dense<0.000000e+00> : vector<32x640xf32>
    %57 = tpu.matmul %54, %56, %cst_42 {dimension_numbers = #tpu.dot_dimension_numbers<[1], [0], [0], [1], [0, 0, 1, 1], [], []>} : vector<32x384xbf16>, vector<384x640xbf16>, vector<32x640xf32> -> vector<32x640xf32>
    %58 = arith.addf %53, %57 : vector<32x640xf32>
    %c0_43 = arith.constant 0 : index
    %c0_44 = arith.constant 0 : index
    %59 = vector.load %arg7[%c0_43, %c0_44] : memref<1x640xf32, #tpu.memory_space<vmem>>, vector<1x640xf32>
    %60 = vector.broadcast %59 : vector<1x640xf32> to vector<32x640xf32>
    %61 = arith.addf %58, %60 : vector<32x640xf32>
    %cst_45 = arith.constant 0.000000e+00 : f32
    %62 = vector.broadcast %cst_45 : f32 to vector<32x640xf32>
    %63 = arith.maximumf %61, %62 : vector<32x640xf32>
    %64 = vector.shape_cast %63 : vector<32x640xf32> to vector<2x16x640xf32>
    %65 = vector.extract_strided_slice %64 {offsets = [0, 0, 0], sizes = [2, 10, 640], strides = [1, 1, 1]} : vector<2x16x640xf32> to vector<2x10x640xf32>
    %cst_46 = arith.constant dense<0.000000e+00> : vector<2x640xf32>
    %66 = vector.multi_reduction <add>, %65, %cst_46 [1] : vector<2x10x640xf32> to vector<2x640xf32>
    %67 = vector.extract_strided_slice %64 {offsets = [0, 0, 0], sizes = [2, 1, 640], strides = [1, 1, 1]} : vector<2x16x640xf32> to vector<2x1x640xf32>
    %68 = vector.shape_cast %67 : vector<2x1x640xf32> to vector<2x640xf32>
    %69 = vector.extract_strided_slice %64 {offsets = [0, 1, 0], sizes = [2, 1, 640], strides = [1, 1, 1]} : vector<2x16x640xf32> to vector<2x1x640xf32>
    %70 = vector.shape_cast %69 : vector<2x1x640xf32> to vector<2x640xf32>
    %71 = vector.extract_strided_slice %64 {offsets = [0, 8, 0], sizes = [2, 1, 640], strides = [1, 1, 1]} : vector<2x16x640xf32> to vector<2x1x640xf32>
    %72 = vector.shape_cast %71 : vector<2x1x640xf32> to vector<2x640xf32>
    %73 = vector.extract_strided_slice %64 {offsets = [0, 9, 0], sizes = [2, 1, 640], strides = [1, 1, 1]} : vector<2x16x640xf32> to vector<2x1x640xf32>
    %74 = vector.shape_cast %73 : vector<2x1x640xf32> to vector<2x640xf32>
    %75 = arith.subf %66, %72 : vector<2x640xf32>
    %76 = arith.subf %75, %74 : vector<2x640xf32>
    %77 = arith.subf %66, %68 : vector<2x640xf32>
    %78 = arith.subf %77, %74 : vector<2x640xf32>
    %79 = arith.subf %66, %68 : vector<2x640xf32>
    %80 = arith.subf %79, %70 : vector<2x640xf32>
    %81 = tpu.concatenate %76, %78, %80 in 1 : vector<2x640xf32>, vector<2x640xf32>, vector<2x640xf32> -> vector<2x1920xf32>
    %82 = arith.truncf %81 : vector<2x1920xf32> to vector<2x1920xbf16>
    %c0_47 = arith.constant 0 : index
    %c0_48 = arith.constant 0 : index
    %83 = vector.load %arg8[%c0_47, %c0_48] : memref<1920x128xbf16, #tpu.memory_space<vmem>>, vector<1920x128xbf16>
    %cst_49 = arith.constant dense<0.000000e+00> : vector<2x128xf32>
    %84 = tpu.matmul %82, %83, %cst_49 {dimension_numbers = #tpu.dot_dimension_numbers<[1], [0], [0], [1], [0, 0, 1, 1], [], []>} : vector<2x1920xbf16>, vector<1920x128xbf16>, vector<2x128xf32> -> vector<2x128xf32>
    %c0_50 = arith.constant 0 : index
    %c0_51 = arith.constant 0 : index
    %85 = vector.load %arg9[%c0_50, %c0_51] : memref<1x128xf32, #tpu.memory_space<vmem>>, vector<1x128xf32>
    %86 = vector.broadcast %85 : vector<1x128xf32> to vector<2x128xf32>
    %87 = arith.addf %84, %86 : vector<2x128xf32>
    %c0_52 = arith.constant 0 : index
    %c0_53 = arith.constant 0 : index
    %88 = vector.load %arg10[%c0_52, %c0_53] : memref<2x128xf32, #tpu.memory_space<vmem>>, vector<2x128xf32>
    tpu.vector_store %arg10[%c0_52, %c0_53], %87 {strides = array<i32>} : memref<2x128xf32, #tpu.memory_space<vmem>>, vector<2x128xf32>,
    return
  }
  func.func @transform_0(%arg0: i32) -> (i32, i32) {
    %c0_i32 = arith.constant 0 : i32
    %c0_i32_0 = arith.constant 0 : i32
    return %arg0, %c0_i32 : i32, i32
  }
  func.func @transform_1(%arg0: i32) -> (i32, i32, i32) {
    %c0_i32 = arith.constant 0 : i32
    %c0_i32_0 = arith.constant 0 : i32
    %c0_i32_1 = arith.constant 0 : i32
    %c0_i32_2 = arith.constant 0 : i32
    return %c0_i32, %c0_i32_0, %c0_i32_1 : i32, i32, i32
  }
  func.func @transform_2(%arg0: i32) -> (i32, i32) {
    %c0_i32 = arith.constant 0 : i32
    %c0_i32_0 = arith.constant 0 : i32
    %c0_i32_1 = arith.constant 0 : i32
    return %c0_i32, %c0_i32_0 : i32, i32
  }
  func.func @transform_3(%arg0: i32) -> (i32, i32, i32) {
    %c0_i32 = arith.constant 0 : i32
    %c0_i32_0 = arith.constant 0 : i32
    %c0_i32_1 = arith.constant 0 : i32
    %c0_i32_2 = arith.constant 0 : i32
    return %c0_i32, %c0_i32_0, %c0_i32_1 : i32, i32, i32
  }
  func.func @transform_4(%arg0: i32) -> (i32, i32) {
    %c0_i32 = arith.constant 0 : i32
    %c0_i32_0 = arith.constant 0 : i32
    %c0_i32_1 = arith.constant 0 : i32
    return %c0_i32, %c0_i32_0 : i32, i32
  }
  func.func @transform_5(%arg0: i32) -> (i32, i32, i32) {
    %c0_i32 = arith.constant 0 : i32
    %c0_i32_0 = arith.constant 0 : i32
    %c0_i32_1 = arith.constant 0 : i32
    %c0_i32_2 = arith.constant 0 : i32
    return %c0_i32, %c0_i32_0, %c0_i32_1 : i32, i32, i32
  }
  func.func @transform_6(%arg0: i32) -> (i32, i32) {
    %c0_i32 = arith.constant 0 : i32
    %c0_i32_0 = arith.constant 0 : i32
    %c0_i32_1 = arith.constant 0 : i32
    return %c0_i32, %c0_i32_0 : i32, i32
  }
  func.func @transform_7(%arg0: i32) -> (i32, i32) {
    %c0_i32 = arith.constant 0 : i32
    %c0_i32_0 = arith.constant 0 : i32
    %c0_i32_1 = arith.constant 0 : i32
    return %c0_i32, %c0_i32_0 : i32, i32
  }
  func.func @transform_8(%arg0: i32) -> (i32, i32) {
    %c0_i32 = arith.constant 0 : i32
    %c0_i32_0 = arith.constant 0 : i32
    %c0_i32_1 = arith.constant 0 : i32
    return %c0_i32, %c0_i32_0 : i32, i32
  }
  func.func @transform_9(%arg0: i32) -> (i32, i32) {
    %c0_i32 = arith.constant 0 : i32
    %c0_i32_0 = arith.constant 0 : i32
    return %arg0, %c0_i32 : i32, i32
  }
}

</mosaic_0001>

<llo_original>
// kernel: tpu_custom_call.1
$region0: #{tpu_custom_call.1}
  #allocation0 [shape = 'u32[]', space=smem, size = 0x4, offset = 0x4, fixed_abs, tag = 'smem constant byte address 0x4 - core index']
  #allocation1 [shape = 'u32[72,128]{1,0:T(1,128)}', space=vmem, size = 0x9000, scoped, tag = 'internal scratch']
  %s0 = inlined_call_operand.vmem [shape: f32[32,16], index: 0, kind: input, shape index: {}]
  %s1 = inlined_call_operand.hbm [shape: bf16[3,16,224], index: 1, kind: input, shape index: {}]
  %s2 = inlined_call_operand.hbm [shape: f32[1,224], index: 2, kind: input, shape index: {}]
  %s3 = inlined_call_operand.hbm [shape: bf16[3,224,384], index: 3, kind: input, shape index: {}]
  %s4 = inlined_call_operand.hbm [shape: f32[1,384], index: 4, kind: input, shape index: {}]
  %s5 = inlined_call_operand.hbm [shape: bf16[3,384,640], index: 5, kind: input, shape index: {}]
  %s6 = inlined_call_operand.hbm [shape: f32[1,640], index: 6, kind: input, shape index: {}]
  %s7 = inlined_call_operand.hbm [shape: bf16[1920,128], index: 7, kind: input, shape index: {}]
  %s8 = inlined_call_operand.hbm [shape: f32[1,128], index: 8, kind: input, shape index: {}]
  %s9 = inlined_call_operand.hbm [shape: f32[2,128], index: 9, kind: output, shape index: {}]
  %s10 = sld [smem:[#allocation0]]
  $region78: #{tpu_custom_call.1} parent=0
    _
  %s12 = ssub.s32 1, %s10
  %s13 = scalar_select 0, %s12, %s10
  $region1: #{tpu_custom_call.1} parent=0
    #allocation2 [shape = 'u8[24576]{0}', space=vmem, size = 0x6000, scoped, tag = 'input window, operand 1, single buffered']
    #allocation3 [shape = 's32[1]{0}', space=sflag, size = 0x4, scoped, tag = 'scoped memory for tpu_custom_call.1']
    #allocation4 [shape = 's32[1]{0}', space=sflag, size = 0x4, scoped, tag = 'scoped memory for tpu_custom_call.1']
    #allocation5 [shape = 'u8[1024]{0}', space=vmem, size = 0x400, scoped, tag = 'input window, operand 2, single buffered']
    #allocation6 [shape = 's32[1]{0}', space=sflag, size = 0x4, scoped, tag = 'scoped memory for tpu_custom_call.1']
    #allocation7 [shape = 'u8[516096]{0}', space=vmem, size = 0x7e000, scoped, tag = 'input window, operand 3, single buffered']
    #allocation8 [shape = 'u8[1536]{0}', space=vmem, size = 0x800, scoped, tag = 'input window, operand 4, single buffered']
    #allocation9 [shape = 's32[1]{0}', space=sflag, size = 0x4, scoped, tag = 'scoped memory for tpu_custom_call.1']
    #allocation10 [shape = 'u8[1474560]{0}', space=vmem, size = 0x168000, scoped, tag = 'input window, operand 5, single buffered']
    #allocation11 [shape = 'u8[2560]{0}', space=vmem, size = 0xc00, scoped, tag = 'input window, operand 6, single buffered']
    #allocation12 [shape = 's32[1]{0}', space=sflag, size = 0x4, scoped, tag = 'scoped memory for tpu_custom_call.1']
    #allocation13 [shape = 'u8[491520]{0}', space=vmem, size = 0x78000, scoped, tag = 'input window, operand 7, single buffered']
    #allocation14 [shape = 'u8[512]{0}', space=vmem, size = 0x400, scoped, tag = 'input window, operand 8, single buffered']
    #allocation15 [shape = 's32[1]{0}', space=sflag, size = 0x4, scoped, tag = 'scoped memory for tpu_custom_call.1']
    #allocation16 [shape = 'u8[1024]{0}', space=vmem, size = 0x400, scoped, tag = 'output window, operand 0, single buffered']
    %14 = vsyncpa [#allocation3], 0
    %15 = vsyncpa [#allocation6], 0
    %16 = vsyncpa [#allocation9], 0
    %17 = vsyncpa [#allocation12], 0
    %18 = vsyncpa [#allocation15], 0
    %19 = vsyncpa [#allocation4], 0
    // Predicated region
    $region2: #{tpu_custom_call.1} parent=1 // pred_check
      _
    $region3: #{tpu_custom_call.1} parent=1 // pred_check_branch
      %21 = sbr.rel (0) target = $region5
    $region4: #{tpu_custom_call.1} parent=1 // pred_region
      _
    $region5: #{tpu_custom_call.1} parent=1 // pred_fallthru
      _
    // Predicated region
    $region6: #{tpu_custom_call.1} parent=1 // pred_check
      _
    $region7: #{tpu_custom_call.1} parent=1 // pred_check_branch
      %23 = sbr.rel (0) target = $region9
    $region8: #{tpu_custom_call.1} parent=1 // pred_region
      %25 = vsyncadd [#allocation3], 0
      %s26 = sshll.u32 %s1, 4
      %s27 = int_to_ptr.hbm [resolvable:$true] %s26
      %s28 = sshll.u32 [#allocation2], 4
      %s29 = int_to_ptr.vmem [resolvable:$true] %s28
      %34 = dma.hbm_to_vmem [thread:$0]  %s27, 768, %s29, [#allocation3], 128, 128, 8
    $region9: #{tpu_custom_call.1} parent=1 // pred_fallthru
      _
    // Predicated region
    $region10: #{tpu_custom_call.1} parent=1 // pred_check
      _
    $region11: #{tpu_custom_call.1} parent=1 // pred_check_branch
      %36 = sbr.rel (0) target = $region13
    $region12: #{tpu_custom_call.1} parent=1 // pred_region
      %38 = vsyncadd [#allocation6], 0
      %s40 = sshll.u32 %s2, 4
      %s41 = int_to_ptr.hbm [resolvable:$true] %s40
      %s42 = sshll.u32 [#allocation5], 4
      %s43 = int_to_ptr.vmem [resolvable:$true] %s42
      %45 = dma.hbm_to_vmem [thread:$0]  %s41, 32, %s43, [#allocation6]
    $region13: #{tpu_custom_call.1} parent=1 // pred_fallthru
      _
    // Predicated region
    $region14: #{tpu_custom_call.1} parent=1 // pred_check
      _
    $region15: #{tpu_custom_call.1} parent=1 // pred_check_branch
      %47 = sbr.rel (0) target = $region17
    $region16: #{tpu_custom_call.1} parent=1 // pred_region
      %49 = vsyncadd [#allocation6], 0
      %s50 = sshll.u32 %s3, 4
      %s51 = int_to_ptr.hbm [resolvable:$true] %s50
      %s52 = sshll.u32 [#allocation7], 4
      %s53 = int_to_ptr.vmem [resolvable:$true] %s52
      %58 = dma.hbm_to_vmem [thread:$0]  %s51, 16128, %s53, [#allocation6], 192, 192, 12
    $region17: #{tpu_custom_call.1} parent=1 // pred_fallthru
      _
    // Predicated region
    $region18: #{tpu_custom_call.1} parent=1 // pred_check
      _
    $region19: #{tpu_custom_call.1} parent=1 // pred_check_branch
      %60 = sbr.rel (0) target = $region21
    $region20: #{tpu_custom_call.1} parent=1 // pred_region
      %62 = vsyncadd [#allocation9], 0
      %s64 = sshll.u32 %s4, 4
      %s65 = int_to_ptr.hbm [resolvable:$true] %s64
      %s66 = sshll.u32 [#allocation8], 4
      %s67 = int_to_ptr.vmem [resolvable:$true] %s66
      %69 = dma.hbm_to_vmem [thread:$0]  %s65, 48, %s67, [#allocation9]
    $region21: #{tpu_custom_call.1} parent=1 // pred_fallthru
      _
    // Predicated region
    $region22: #{tpu_custom_call.1} parent=1 // pred_check
      _
    $region23: #{tpu_custom_call.1} parent=1 // pred_check_branch
      %71 = sbr.rel (0) target = $region25
    $region24: #{tpu_custom_call.1} parent=1 // pred_region
      %73 = vsyncadd [#allocation9], 0
      %s74 = sshll.u32 %s5, 4
      %s75 = int_to_ptr.hbm [resolvable:$true] %s74
      %s76 = sshll.u32 [#allocation10], 4
      %s77 = int_to_ptr.vmem [resolvable:$true] %s76
      %82 = dma.hbm_to_vmem [thread:$0]  %s75, 46080, %s77, [#allocation9], 320, 320, 20
    $region25: #{tpu_custom_call.1} parent=1 // pred_fallthru
      _
    // Predicated region
    $region26: #{tpu_custom_call.1} parent=1 // pred_check
      _
    $region27: #{tpu_custom_call.1} parent=1 // pred_check_branch
      %84 = sbr.rel (0) target = $region29
    $region28: #{tpu_custom_call.1} parent=1 // pred_region
      %86 = vsyncadd [#allocation12], 0
      %s88 = sshll.u32 %s6, 4
      %s89 = int_to_ptr.hbm [resolvable:$true] %s88
      %s90 = sshll.u32 [#allocation11], 4
      %s91 = int_to_ptr.vmem [resolvable:$true] %s90
      %93 = dma.hbm_to_vmem [thread:$0]  %s89, 80, %s91, [#allocation12]
    $region29: #{tpu_custom_call.1} parent=1 // pred_fallthru
      _
    // Predicated region
    $region30: #{tpu_custom_call.1} parent=1 // pred_check
      _
    $region31: #{tpu_custom_call.1} parent=1 // pred_check_branch
      %95 = sbr.rel (0) target = $region33
    $region32: #{tpu_custom_call.1} parent=1 // pred_region
      %97 = vsyncadd [#allocation12], 0
      %s98 = sshll.u32 %s7, 4
      %s99 = int_to_ptr.hbm [resolvable:$true] %s98
      %s100 = sshll.u32 [#allocation13], 4
      %s101 = int_to_ptr.vmem [resolvable:$true] %s100
      %106 = dma.hbm_to_vmem [thread:$0]  %s99, 15360, %s101, [#allocation12], 64, 64, 4
    $region33: #{tpu_custom_call.1} parent=1 // pred_fallthru
      _
    // Predicated region
    $region34: #{tpu_custom_call.1} parent=1 // pred_check
      _
    $region35: #{tpu_custom_call.1} parent=1 // pred_check_branch
      %108 = sbr.rel (0) target = $region37
    $region36: #{tpu_custom_call.1} parent=1 // pred_region
      %110 = vsyncadd [#allocation15], 0
      %s112 = sshll.u32 %s8, 4
      %s113 = int_to_ptr.hbm [resolvable:$true] %s112
      %s114 = sshll.u32 [#allocation14], 4
      %s115 = int_to_ptr.vmem [resolvable:$true] %s114
      %117 = dma.hbm_to_vmem [thread:$0]  %s113, 16, %s115, [#allocation15]
    $region37: #{tpu_custom_call.1} parent=1 // pred_fallthru
      _
    // Predicated region
    $region38: #{tpu_custom_call.1} parent=1 // pred_check
      _
    $region39: #{tpu_custom_call.1} parent=1 // pred_check_branch
      %119 = sbr.rel (0) target = $region41
    $region40: #{tpu_custom_call.1} parent=1 // pred_region
      %121 = dma.done [#allocation3], 768
    $region41: #{tpu_custom_call.1} parent=1 // pred_fallthru
      _
    // Predicated region
    $region42: #{tpu_custom_call.1} parent=1 // pred_check
      _
    $region43: #{tpu_custom_call.1} parent=1 // pred_check_branch
      %123 = sbr.rel (0) target = $region45
    $region44: #{tpu_custom_call.1} parent=1 // pred_region
      %125 = dma.done [#allocation6], 32
    $region45: #{tpu_custom_call.1} parent=1 // pred_fallthru
      _
    // Predicated region
    $region46: #{tpu_custom_call.1} parent=1 // pred_check
      _
    $region47: #{tpu_custom_call.1} parent=1 // pred_check_branch
      %127 = sbr.rel (0) target = $region49
    $region48: #{tpu_custom_call.1} parent=1 // pred_region
      %129 = dma.done [#allocation6], 16128
    $region49: #{tpu_custom_call.1} parent=1 // pred_fallthru
      _
    // Predicated region
    $region50: #{tpu_custom_call.1} parent=1 // pred_check
      _
    $region51: #{tpu_custom_call.1} parent=1 // pred_check_branch
      %131 = sbr.rel (0) target = $region53
    $region52: #{tpu_custom_call.1} parent=1 // pred_region
      %133 = dma.done [#allocation9], 48
    $region53: #{tpu_custom_call.1} parent=1 // pred_fallthru
      _
    // Predicated region
    $region54: #{tpu_custom_call.1} parent=1 // pred_check
      _
    $region55: #{tpu_custom_call.1} parent=1 // pred_check_branch
      %135 = sbr.rel (0) target = $region57
    $region56: #{tpu_custom_call.1} parent=1 // pred_region
      %137 = dma.done [#allocation9], 46080
    $region57: #{tpu_custom_call.1} parent=1 // pred_fallthru
      _
    // Predicated region
    $region58: #{tpu_custom_call.1} parent=1 // pred_check
      _
    $region59: #{tpu_custom_call.1} parent=1 // pred_check_branch
      %139 = sbr.rel (0) target = $region61
    $region60: #{tpu_custom_call.1} parent=1 // pred_region
      %141 = dma.done [#allocation12], 80
    $region61: #{tpu_custom_call.1} parent=1 // pred_fallthru
      _
    // Predicated region
    $region62: #{tpu_custom_call.1} parent=1 // pred_check
      _
    $region63: #{tpu_custom_call.1} parent=1 // pred_check_branch
      %143 = sbr.rel (0) target = $region65
    $region64: #{tpu_custom_call.1} parent=1 // pred_region
      %145 = dma.done [#allocation12], 15360
    $region65: #{tpu_custom_call.1} parent=1 // pred_fallthru
      _
    // Predicated region
    $region66: #{tpu_custom_call.1} parent=1 // pred_check
      _
    $region67: #{tpu_custom_call.1} parent=1 // pred_check_branch
      %147 = sbr.rel (0) target = $region69
    $region68: #{tpu_custom_call.1} parent=1 // pred_region
      %149 = dma.done [#allocation15], 16
    $region69: #{tpu_custom_call.1} parent=1 // pred_fallthru
      _
    %v151 = vld [vmem:[%s0] sm:$0xff]
    %v152 = vld [vmem:[%s0 + $0x8] sm:$0xff]
    %v153 = vld [vmem:[%s0 + $0x10] sm:$0xff]
    %v154 = vld [vmem:[%s0 + $0x18] sm:$0xff]
    %v155 = vpack.c.bf16 %v151, %v151
    %v156 = vpack.c.bf16 %v152, %v152
    %v157 = vpack.c.bf16 %v153, %v153
    %v158 = vpack.c.bf16 %v154, %v154
    %v163 = vunpack.c.l.b16 %v155
    %v164 = vunpack.c.l.b16 %v156
    %v165 = vunpack.c.l.b16 %v157
    %v166 = vunpack.c.l.b16 %v158
    %v167 = vpack.c.b16 %v164, %v163
    %v168 = vpack.c.b16 %v166, %v165
    %v169 = vld [vmem:[#allocation2] sm:$0xff]
    %v170 = vld [vmem:[#allocation2 + $0x8] sm:$0xff]
    %s171 = scalar_lea.vmem [#allocation2], 16
    %v172 = vld [vmem:[%s171] sm:$0xff]
    %v173 = vld [vmem:[%s171 + $0x8] sm:$0xff]
    %vm174 = vsmask.f32 7424
    %v176 = vshrl.u32 %v167, 16
    %v178 = vshll.u32 %v167, 16
    %v180 = vrot.slane %v178, 1
    %v181 = vor.u32 %v176, %v180
    %v183 = vshll.u32 %v168, 16
    %v185 = vrot.slane %v183, 1
    %v186 = vsel %vm174, %v181, %v185
    %v187 = vshrl.u32 %v168, 16
    %v189 = vor.u32 %v187, %v185
    %v191 = vshll.u32 0, 16
    %v193 = vrot.slane %v191, 1
    %v194 = vsel %vm174, %v189, %v193
    %v197 = vunpack.c.l.b16 %v172
    %v198 = vunpack.c.h.b16 %v172
    %v199 = vunpack.c.l.b16 %v173
    %v200 = vunpack.c.h.b16 %v173
    %v201 = vpack.c.b16 %v199, %v197
    %v202 = vpack.c.b16 %v200, %v198
    %vm205 = vcmask 130048
    %v207 = vsel %vm205, %v186, 0
    %v210 = vsel %vm205, %v194, 0
    %212 = vmatpush.bf16.msra.mxu0 0
    %213 = vmatpush.bf16.msra.mxu0 0
    %214 = vmatpush.bf16.msra.mxu0 0
    %215 = vmatpush.bf16.msra.mxu0 0
    %216 = vmatpush.bf16.msra.mxu0 0
    %217 = vmatpush.bf16.msra.mxu0 0
    %218 = vmatpush.bf16.msra.mxu0 0
    %219 = vmatpush.bf16.msra.mxu0 %v201
    %220 = vmatmul.bf16.gmra.mxu0 %v207
    %v221 = vpop.f32.mrf.mxu0
    %v222 = vadd.f32 0.0, %v221
    %v223 = vpop.f32.mrf.mxu0
    %v224 = vadd.f32 0.0, %v223
    %225 = vmatmul.bf16.gmra.mxu0 %v210
    %v226 = vpop.f32.mrf.mxu0
    %v227 = vadd.f32 0.0, %v226
    %v228 = vpop.f32.mrf.mxu0
    %v229 = vadd.f32 0.0, %v228
    %230 = vdwg.mxu0
    %231 = vmatpush.bf16.msra.mxu0 0
    %232 = vmatpush.bf16.msra.mxu0 0
    %233 = vmatpush.bf16.msra.mxu0 0
    %234 = vmatpush.bf16.msra.mxu0 0
    %235 = vmatpush.bf16.msra.mxu0 0
    %236 = vmatpush.bf16.msra.mxu0 0
    %237 = vmatpush.bf16.msra.mxu0 0
    %238 = vmatpush.bf16.msra.mxu0 %v202
    %239 = vmatmul.bf16.gmra.mxu0 %v207
    %v240 = vpop.f32.mrf.mxu0
    %v241 = vadd.f32 0.0, %v240
    %v242 = vpop.f32.mrf.mxu0
    %v243 = vadd.f32 0.0, %v242
    %244 = vmatmul.bf16.gmra.mxu0 %v210
    %v245 = vpop.f32.mrf.mxu0
    %v246 = vadd.f32 0.0, %v245
    %v247 = vpop.f32.mrf.mxu0
    %v248 = vadd.f32 0.0, %v247
    %249 = vdwg.mxu0
    %v252 = vunpack.c.l.b16 %v169
    %v253 = vunpack.c.h.b16 %v169
    %v254 = vunpack.c.l.b16 %v170
    %v255 = vunpack.c.h.b16 %v170
    %v256 = vpack.c.b16 %v254, %v252
    %v257 = vpack.c.b16 %v255, %v253
    %v260 = vsel %vm205, %v167, 0
    %v262 = vsel %vm205, %v168, 0
    %264 = vmatpush.bf16.msra.mxu0 0
    %265 = vmatpush.bf16.msra.mxu0 0
    %266 = vmatpush.bf16.msra.mxu0 0
    %267 = vmatpush.bf16.msra.mxu0 0
    %268 = vmatpush.bf16.msra.mxu0 0
    %269 = vmatpush.bf16.msra.mxu0 0
    %270 = vmatpush.bf16.msra.mxu0 0
    %271 = vmatpush.bf16.msra.mxu0 %v256
    %272 = vmatmul.bf16.gmra.mxu0 %v260
    %v273 = vpop.f32.mrf.mxu0
    %v274 = vadd.f32 %v222, %v273
    %v275 = vpop.f32.mrf.mxu0
    %v276 = vadd.f32 %v224, %v275
    %277 = vmatmul.bf16.gmra.mxu0 %v262
    %v278 = vpop.f32.mrf.mxu0
    %v279 = vadd.f32 %v227, %v278
    %v280 = vpop.f32.mrf.mxu0
    %v281 = vadd.f32 %v229, %v280
    %282 = vdwg.mxu0
    %283 = vmatpush.bf16.msra.mxu0 0
    %284 = vmatpush.bf16.msra.mxu0 0
    %285 = vmatpush.bf16.msra.mxu0 0
    %286 = vmatpush.bf16.msra.mxu0 0
    %287 = vmatpush.bf16.msra.mxu0 0
    %288 = vmatpush.bf16.msra.mxu0 0
    %289 = vmatpush.bf16.msra.mxu0 0
    %290 = vmatpush.bf16.msra.mxu0 %v257
    %291 = vmatmul.bf16.gmra.mxu0 %v260
    %v292 = vpop.f32.mrf.mxu0
    %v293 = vadd.f32 %v241, %v292
    %v294 = vpop.f32.mrf.mxu0
    %v295 = vadd.f32 %v243, %v294
    %296 = vmatmul.bf16.gmra.mxu0 %v262
    %v297 = vpop.f32.mrf.mxu0
    %v298 = vadd.f32 %v246, %v297
    %v299 = vpop.f32.mrf.mxu0
    %v300 = vadd.f32 %v248, %v299
    %301 = vdwg.mxu0
    %s302 = scalar_lea.vmem [#allocation2], 32
    %v303 = vld [vmem:[%s302] sm:$0xff]
    %v304 = vld [vmem:[%s302 + $0x8] sm:$0xff]
    %vm306 = vcmask 1046528
    %v307 = vrot.slane %v167, 1
    %v308 = vrot.slane %v168, 1
    %v309 = vsel %vm306, %v307, %v308
    %v310 = vrot.slane 0, 1
    %v311 = vsel %vm306, %v308, %v310
    %v314 = vunpack.c.l.b16 %v303
    %v315 = vunpack.c.h.b16 %v303
    %v316 = vunpack.c.l.b16 %v304
    %v317 = vunpack.c.h.b16 %v304
    %v318 = vpack.c.b16 %v316, %v314
    %v319 = vpack.c.b16 %v317, %v315
    %v323 = vsel %vm205, %v309, 0
    %v326 = vsel %vm205, %v311, 0
    %328 = vmatpush.bf16.msra.mxu0 0
    %329 = vmatpush.bf16.msra.mxu0 0
    %330 = vmatpush.bf16.msra.mxu0 0
    %331 = vmatpush.bf16.msra.mxu0 0
    %332 = vmatpush.bf16.msra.mxu0 0
    %333 = vmatpush.bf16.msra.mxu0 0
    %334 = vmatpush.bf16.msra.mxu0 0
    %335 = vmatpush.bf16.msra.mxu0 %v318
    %336 = vmatmul.bf16.gmra.mxu0 %v323
    %v337 = vpop.f32.mrf.mxu0
    %v338 = vadd.f32 0.0, %v337
    %v339 = vpop.f32.mrf.mxu0
    %v340 = vadd.f32 0.0, %v339
    %341 = vmatmul.bf16.gmra.mxu0 %v326
    %v342 = vpop.f32.mrf.mxu0
    %v343 = vadd.f32 0.0, %v342
    %v344 = vpop.f32.mrf.mxu0
    %v345 = vadd.f32 0.0, %v344
    %346 = vdwg.mxu0
    %347 = vmatpush.bf16.msra.mxu0 0
    %348 = vmatpush.bf16.msra.mxu0 0
    %349 = vmatpush.bf16.msra.mxu0 0
    %350 = vmatpush.bf16.msra.mxu0 0
    %351 = vmatpush.bf16.msra.mxu0 0
    %352 = vmatpush.bf16.msra.mxu0 0
    %353 = vmatpush.bf16.msra.mxu0 0
    %354 = vmatpush.bf16.msra.mxu0 %v319
    %355 = vmatmul.bf16.gmra.mxu0 %v323
    %v356 = vpop.f32.mrf.mxu0
    %v357 = vadd.f32 0.0, %v356
    %v358 = vpop.f32.mrf.mxu0
    %v359 = vadd.f32 0.0, %v358
    %360 = vmatmul.bf16.gmra.mxu0 %v326
    %v361 = vpop.f32.mrf.mxu0
    %v362 = vadd.f32 0.0, %v361
    %v363 = vpop.f32.mrf.mxu0
    %v364 = vadd.f32 0.0, %v363
    %365 = vdwg.mxu0
    %v366 = vadd.f32 %v274, %v338
    %v367 = vadd.f32 %v293, %v357
    %v368 = vadd.f32 %v276, %v340
    %v369 = vadd.f32 %v295, %v359
    %v370 = vadd.f32 %v279, %v343
    %v371 = vadd.f32 %v298, %v362
    %v372 = vadd.f32 %v281, %v345
    %v373 = vadd.f32 %v300, %v364
    %v374 = vld [vmem:[#allocation5] sm:$0x3]
    %v376 = vperm.slane %v374, 0
    %v377 = vperm.slane %v374, 1
    %v380 = vadd.f32 %v366, %v376
    %v381 = vadd.f32 %v367, %v377
    %v382 = vadd.f32 %v368, %v376
    %v383 = vadd.f32 %v369, %v377
    %v384 = vadd.f32 %v370, %v376
    %v385 = vadd.f32 %v371, %v377
    %v386 = vadd.f32 %v372, %v376
    %v387 = vadd.f32 %v373, %v377
    %v388 = vmax.f32 %v380, 0.0
    %v389 = vmax.f32 %v381, 0.0
    %v390 = vmax.f32 %v382, 0.0
    %v391 = vmax.f32 %v383, 0.0
    %v392 = vmax.f32 %v384, 0.0
    %v393 = vmax.f32 %v385, 0.0
    %v394 = vmax.f32 %v386, 0.0
    %v395 = vmax.f32 %v387, 0.0
    %v396 = vpack.c.bf16 %v389, %v388
    %v397 = vpack.c.bf16 %v391, %v390
    %v398 = vpack.c.bf16 %v393, %v392
    %v399 = vpack.c.bf16 %v395, %v394
    %v404 = vunpack.c.l.b16 %v396
    %v405 = vunpack.c.h.b16 %v396
    %v406 = vunpack.c.l.b16 %v397
    %v407 = vunpack.c.h.b16 %v397
    %v408 = vunpack.c.l.b16 %v398
    %v409 = vunpack.c.h.b16 %v398
    %v410 = vunpack.c.l.b16 %v399
    %v411 = vunpack.c.h.b16 %v399
    %v412 = vpack.c.b16 %v406, %v404
    %v413 = vpack.c.b16 %v407, %v405
    %v414 = vpack.c.b16 %v410, %v408
    %v415 = vpack.c.b16 %v411, %v409
    %v416 = vld [vmem:[#allocation7] sm:$0xff]
    %v417 = vld [vmem:[#allocation7 + $0x8] sm:$0xf]
    %v418 = vld [vmem:[#allocation7 + $0xc] sm:$0xff]
    %v419 = vld [vmem:[#allocation7 + $0x14] sm:$0xf]
    %v420 = vld [vmem:[#allocation7 + $0x18] sm:$0xff]
    %v421 = vld [vmem:[#allocation7 + $0x20] sm:$0xf]
    %v422 = vld [vmem:[#allocation7 + $0x24] sm:$0xff]
    %v423 = vld [vmem:[#allocation7 + $0x2c] sm:$0xf]
    %v424 = vld [vmem:[#allocation7 + $0x30] sm:$0xff]
    %v425 = vld [vmem:[#allocation7 + $0x38] sm:$0xf]
    %v426 = vld [vmem:[#allocation7 + $0x3c] sm:$0xff]
    %v427 = vld [vmem:[#allocation7 + $0x44] sm:$0xf]
    %v428 = vld [vmem:[#allocation7 + $0x48] sm:$0xff]
    %v429 = vld [vmem:[#allocation7 + $0x50] sm:$0xf]
    %v430 = vld [vmem:[#allocation7 + $0x54] sm:$0xff]
    %v431 = vld [vmem:[#allocation7 + $0x5c] sm:$0xf]
    %v432 = vld [vmem:[#allocation7 + $0x60] sm:$0xff]
    %v433 = vld [vmem:[#allocation7 + $0x68] sm:$0xf]
    %v434 = vld [vmem:[#allocation7 + $0x6c] sm:$0xff]
    %v435 = vld [vmem:[#allocation7 + $0x74] sm:$0xf]
    %v436 = vld [vmem:[#allocation7 + $0x78] sm:$0xff]
    %v437 = vld [vmem:[#allocation7 + $0x80] sm:$0xf]
    %v438 = vld [vmem:[#allocation7 + $0x84] sm:$0xff]
    %v439 = vld [vmem:[#allocation7 + $0x8c] sm:$0xf]
    %v440 = vld [vmem:[#allocation7 + $0x90] sm:$0xff]
    %v441 = vld [vmem:[#allocation7 + $0x98] sm:$0xf]
    %v442 = vld [vmem:[#allocation7 + $0x9c] sm:$0xff]
    %v443 = vld [vmem:[#allocation7 + $0xa4] sm:$0xf]
    %v444 = vld [vmem:[#allocation7 + $0xa8] sm:$0xff]
    %v445 = vld [vmem:[#allocation7 + $0xb0] sm:$0xf]
    %v446 = vld [vmem:[#allocation7 + $0xb4] sm:$0xff]
    %v447 = vld [vmem:[#allocation7 + $0xbc] sm:$0xf]
    %v448 = vld [vmem:[#allocation7 + $0xc0] sm:$0xff]
    %v449 = vld [vmem:[#allocation7 + $0xc8] sm:$0xf]
    %v450 = vld [vmem:[#allocation7 + $0xcc] sm:$0xff]
    %v451 = vld [vmem:[#allocation7 + $0xd4] sm:$0xf]
    %v452 = vld [vmem:[#allocation7 + $0xd8] sm:$0xff]
    %v453 = vld [vmem:[#allocation7 + $0xe0] sm:$0xf]
    %v454 = vld [vmem:[#allocation7 + $0xe4] sm:$0xff]
    %v455 = vld [vmem:[#allocation7 + $0xec] sm:$0xf]
    %v456 = vld [vmem:[#allocation7 + $0xf0] sm:$0xff]
    %v457 = vld [vmem:[#allocation7 + $0xf8] sm:$0xf]
    %v458 = vld [vmem:[#allocation7 + $0xfc] sm:$0xff]
    %v459 = vld [vmem:[#allocation7 + $0x104] sm:$0xf]
    %v460 = vld [vmem:[#allocation7 + $0x108] sm:$0xff]
    %v461 = vld [vmem:[#allocation7 + $0x110] sm:$0xf]
    %v462 = vld [vmem:[#allocation7 + $0x114] sm:$0xff]
    %v463 = vld [vmem:[#allocation7 + $0x11c] sm:$0xf]
    %v464 = vld [vmem:[#allocation7 + $0x120] sm:$0xff]
    %v465 = vld [vmem:[#allocation7 + $0x128] sm:$0xf]
    %v466 = vld [vmem:[#allocation7 + $0x12c] sm:$0xff]
    %v467 = vld [vmem:[#allocation7 + $0x134] sm:$0xf]
    %v468 = vld [vmem:[#allocation7 + $0x138] sm:$0xff]
    %v469 = vld [vmem:[#allocation7 + $0x140] sm:$0xf]
    %v470 = vld [vmem:[#allocation7 + $0x144] sm:$0xff]
    %v471 = vld [vmem:[#allocation7 + $0x14c] sm:$0xf]
    %s472 = scalar_lea.vmem [#allocation7], 336
    %v473 = vld [vmem:[%s472] sm:$0xff]
    %v474 = vld [vmem:[%s472 + $0x8] sm:$0xf]
    %v475 = vld [vmem:[%s472 + $0xc] sm:$0xff]
    %v476 = vld [vmem:[%s472 + $0x14] sm:$0xf]
    %v477 = vld [vmem:[%s472 + $0x18] sm:$0xff]
    %v478 = vld [vmem:[%s472 + $0x20] sm:$0xf]
    %v479 = vld [vmem:[%s472 + $0x24] sm:$0xff]
    %v480 = vld [vmem:[%s472 + $0x2c] sm:$0xf]
    %v481 = vld [vmem:[%s472 + $0x30] sm:$0xff]
    %v482 = vld [vmem:[%s472 + $0x38] sm:$0xf]
    %v483 = vld [vmem:[%s472 + $0x3c] sm:$0xff]
    %v484 = vld [vmem:[%s472 + $0x44] sm:$0xf]
    %v485 = vld [vmem:[%s472 + $0x48] sm:$0xff]
    %v486 = vld [vmem:[%s472 + $0x50] sm:$0xf]
    %v487 = vld [vmem:[%s472 + $0x54] sm:$0xff]
    %v488 = vld [vmem:[%s472 + $0x5c] sm:$0xf]
    %v489 = vld [vmem:[%s472 + $0x60] sm:$0xff]
    %v490 = vld [vmem:[%s472 + $0x68] sm:$0xf]
    %v491 = vld [vmem:[%s472 + $0x6c] sm:$0xff]
    %v492 = vld [vmem:[%s472 + $0x74] sm:$0xf]
    %v493 = vld [vmem:[%s472 + $0x78] sm:$0xff]
    %v494 = vld [vmem:[%s472 + $0x80] sm:$0xf]
    %v495 = vld [vmem:[%s472 + $0x84] sm:$0xff]
    %v496 = vld [vmem:[%s472 + $0x8c] sm:$0xf]
    %v497 = vld [vmem:[%s472 + $0x90] sm:$0xff]
    %v498 = vld [vmem:[%s472 + $0x98] sm:$0xf]
    %v499 = vld [vmem:[%s472 + $0x9c] sm:$0xff]
    %v500 = vld [vmem:[%s472 + $0xa4] sm:$0xf]
    %v501 = vld [vmem:[%s472 + $0xa8] sm:$0xff]
    %v502 = vld [vmem:[%s472 + $0xb0] sm:$0xf]
    %v503 = vld [vmem:[%s472 + $0xb4] sm:$0xff]
    %v504 = vld [vmem:[%s472 + $0xbc] sm:$0xf]
    %v505 = vld [vmem:[%s472 + $0xc0] sm:$0xff]
    %v506 = vld [vmem:[%s472 + $0xc8] sm:$0xf]
    %v507 = vld [vmem:[%s472 + $0xcc] sm:$0xff]
    %v508 = vld [vmem:[%s472 + $0xd4] sm:$0xf]
    %v509 = vld [vmem:[%s472 + $0xd8] sm:$0xff]
    %v510 = vld [vmem:[%s472 + $0xe0] sm:$0xf]
    %v511 = vld [vmem:[%s472 + $0xe4] sm:$0xff]
    %v512 = vld [vmem:[%s472 + $0xec] sm:$0xf]
    %v513 = vld [vmem:[%s472 + $0xf0] sm:$0xff]
    %v514 = vld [vmem:[%s472 + $0xf8] sm:$0xf]
    %v515 = vld [vmem:[%s472 + $0xfc] sm:$0xff]
    %v516 = vld [vmem:[%s472 + $0x104] sm:$0xf]
    %v517 = vld [vmem:[%s472 + $0x108] sm:$0xff]
    %v518 = vld [vmem:[%s472 + $0x110] sm:$0xf]
    %v519 = vld [vmem:[%s472 + $0x114] sm:$0xff]
    %v520 = vld [vmem:[%s472 + $0x11c] sm:$0xf]
    %v521 = vld [vmem:[%s472 + $0x120] sm:$0xff]
    %v522 = vld [vmem:[%s472 + $0x128] sm:$0xf]
    %v523 = vld [vmem:[%s472 + $0x12c] sm:$0xff]
    %v524 = vld [vmem:[%s472 + $0x134] sm:$0xf]
    %v525 = vld [vmem:[%s472 + $0x138] sm:$0xff]
    %v526 = vld [vmem:[%s472 + $0x140] sm:$0xf]
    %v527 = vld [vmem:[%s472 + $0x144] sm:$0xff]
    %v528 = vld [vmem:[%s472 + $0x14c] sm:$0xf]
    %v530 = vshrl.u32 %v412, 16
    %v532 = vshll.u32 %v412, 16
    %v534 = vrot.slane %v532, 1
    %v535 = vor.u32 %v530, %v534
    %v537 = vshll.u32 %v414, 16
    %v539 = vrot.slane %v537, 1
    %v540 = vsel %vm174, %v535, %v539
    %v542 = vshrl.u32 %v413, 16
    %v544 = vshll.u32 %v413, 16
    %v546 = vrot.slane %v544, 1
    %v547 = vor.u32 %v542, %v546
    %v549 = vshll.u32 %v415, 16
    %v551 = vrot.slane %v549, 1
    %v552 = vsel %vm174, %v547, %v551
    %v553 = vshrl.u32 %v414, 16
    %v555 = vor.u32 %v553, %v539
    %v556 = vsel %vm174, %v555, %v193
    %v557 = vshrl.u32 %v415, 16
    %v559 = vor.u32 %v557, %v551
    %v560 = vsel %vm174, %v559, %v193
    %v619 = vunpack.c.l.b16 %v473
    %v620 = vunpack.c.h.b16 %v473
    %v621 = vunpack.c.l.b16 %v474
    %v622 = vunpack.c.l.b16 %v475
    %v623 = vunpack.c.h.b16 %v475
    %v624 = vunpack.c.l.b16 %v476
    %v625 = vunpack.c.l.b16 %v477
    %v626 = vunpack.c.h.b16 %v477
    %v627 = vunpack.c.l.b16 %v478
    %v628 = vunpack.c.l.b16 %v479
    %v629 = vunpack.c.h.b16 %v479
    %v630 = vunpack.c.l.b16 %v480
    %v631 = vunpack.c.l.b16 %v481
    %v632 = vunpack.c.h.b16 %v481
    %v633 = vunpack.c.l.b16 %v482
    %v634 = vunpack.c.l.b16 %v483
    %v635 = vunpack.c.h.b16 %v483
    %v636 = vunpack.c.l.b16 %v484
    %v637 = vunpack.c.l.b16 %v485
    %v638 = vunpack.c.h.b16 %v485
    %v639 = vunpack.c.l.b16 %v486
    %v640 = vunpack.c.l.b16 %v487
    %v641 = vunpack.c.h.b16 %v487
    %v642 = vunpack.c.l.b16 %v488
    %v643 = vunpack.c.l.b16 %v489
    %v644 = vunpack.c.h.b16 %v489
    %v645 = vunpack.c.l.b16 %v490
    %v646 = vunpack.c.l.b16 %v491
    %v647 = vunpack.c.h.b16 %v491
    %v648 = vunpack.c.l.b16 %v492
    %v649 = vunpack.c.l.b16 %v493
    %v650 = vunpack.c.h.b16 %v493
    %v651 = vunpack.c.l.b16 %v494
    %v652 = vunpack.c.l.b16 %v495
    %v653 = vunpack.c.h.b16 %v495
    %v654 = vunpack.c.l.b16 %v496
    %v655 = vunpack.c.l.b16 %v497
    %v656 = vunpack.c.h.b16 %v497
    %v657 = vunpack.c.l.b16 %v498
    %v658 = vunpack.c.l.b16 %v499
    %v659 = vunpack.c.h.b16 %v499
    %v660 = vunpack.c.l.b16 %v500
    %v661 = vunpack.c.l.b16 %v501
    %v662 = vunpack.c.h.b16 %v501
    %v663 = vunpack.c.l.b16 %v502
    %v664 = vunpack.c.l.b16 %v503
    %v665 = vunpack.c.h.b16 %v503
    %v666 = vunpack.c.l.b16 %v504
    %v667 = vunpack.c.l.b16 %v505
    %v668 = vunpack.c.h.b16 %v505
    %v669 = vunpack.c.l.b16 %v506
    %v670 = vunpack.c.l.b16 %v507
    %v671 = vunpack.c.h.b16 %v507
    %v672 = vunpack.c.l.b16 %v508
    %v673 = vunpack.c.l.b16 %v509
    %v674 = vunpack.c.h.b16 %v509
    %v675 = vunpack.c.l.b16 %v510
    %v676 = vunpack.c.l.b16 %v511
    %v677 = vunpack.c.h.b16 %v511
    %v678 = vunpack.c.l.b16 %v512
    %v679 = vunpack.c.l.b16 %v513
    %v680 = vunpack.c.h.b16 %v513
    %v681 = vunpack.c.l.b16 %v514
    %v682 = vunpack.c.l.b16 %v515
    %v683 = vunpack.c.h.b16 %v515
    %v684 = vunpack.c.l.b16 %v516
    %v685 = vunpack.c.l.b16 %v517
    %v686 = vunpack.c.h.b16 %v517
    %v687 = vunpack.c.l.b16 %v518
    %v688 = vunpack.c.l.b16 %v519
    %v689 = vunpack.c.h.b16 %v519
    %v690 = vunpack.c.l.b16 %v520
    %v691 = vunpack.c.l.b16 %v521
    %v692 = vunpack.c.h.b16 %v521
    %v693 = vunpack.c.l.b16 %v522
    %v694 = vunpack.c.l.b16 %v523
    %v695 = vunpack.c.h.b16 %v523
    %v696 = vunpack.c.l.b16 %v524
    %v697 = vunpack.c.l.b16 %v525
    %v698 = vunpack.c.h.b16 %v525
    %v699 = vunpack.c.l.b16 %v526
    %v700 = vunpack.c.l.b16 %v527
    %v701 = vunpack.c.h.b16 %v527
    %v702 = vunpack.c.l.b16 %v528
    %v703 = vpack.c.b16 %v622, %v619
    %v704 = vpack.c.b16 %v623, %v620
    %v705 = vpack.c.b16 %v624, %v621
    %v706 = vpack.c.b16 %v628, %v625
    %v707 = vpack.c.b16 %v629, %v626
    %v708 = vpack.c.b16 %v630, %v627
    %v709 = vpack.c.b16 %v634, %v631
    %v710 = vpack.c.b16 %v635, %v632
    %v711 = vpack.c.b16 %v636, %v633
    %v712 = vpack.c.b16 %v640, %v637
    %v713 = vpack.c.b16 %v641, %v638
    %v714 = vpack.c.b16 %v642, %v639
    %v715 = vpack.c.b16 %v646, %v643
    %v716 = vpack.c.b16 %v647, %v644
    %v717 = vpack.c.b16 %v648, %v645
    %v718 = vpack.c.b16 %v652, %v649
    %v719 = vpack.c.b16 %v653, %v650
    %v720 = vpack.c.b16 %v654, %v651
    %v721 = vpack.c.b16 %v658, %v655
    %v722 = vpack.c.b16 %v659, %v656
    %v723 = vpack.c.b16 %v660, %v657
    %v724 = vpack.c.b16 %v664, %v661
    %v725 = vpack.c.b16 %v665, %v662
    %v726 = vpack.c.b16 %v666, %v663
    %v727 = vpack.c.b16 %v670, %v667
    %v728 = vpack.c.b16 %v671, %v668
    %v729 = vpack.c.b16 %v672, %v669
    %v730 = vpack.c.b16 %v676, %v673
    %v731 = vpack.c.b16 %v677, %v674
    %v732 = vpack.c.b16 %v678, %v675
    %v733 = vpack.c.b16 %v682, %v679
    %v734 = vpack.c.b16 %v683, %v680
    %v735 = vpack.c.b16 %v684, %v681
    %v736 = vpack.c.b16 %v688, %v685
    %v737 = vpack.c.b16 %v689, %v686
    %v738 = vpack.c.b16 %v690, %v687
    %v739 = vpack.c.b16 %v694, %v691
    %v740 = vpack.c.b16 %v695, %v692
    %v741 = vpack.c.b16 %v696, %v693
    %v742 = vpack.c.b16 %v700, %v697
    %v743 = vpack.c.b16 %v701, %v698
    %v744 = vpack.c.b16 %v702, %v699
    %vm787 = vcmask 785408
    %v789 = vsel %vm787, %v552, 0
    %v792 = vsel %vm787, %v560, 0
    %794 = vmatpush.bf16.msra.mxu0 %v724
    %795 = vmatpush.bf16.msra.mxu0 %v721
    %796 = vmatpush.bf16.msra.mxu0 %v718
    %797 = vmatpush.bf16.msra.mxu0 %v715
    %798 = vmatpush.bf16.msra.mxu0 %v712
    %799 = vmatpush.bf16.msra.mxu0 %v709
    %800 = vmatpush.bf16.msra.mxu0 %v706
    %801 = vmatpush.bf16.msra.mxu0 %v703
    %802 = vmatmul.bf16.gmra.mxu0 %v540
    %v803 = vpop.f32.mrf.mxu0
    %v804 = vadd.f32 0.0, %v803
    %v805 = vpop.f32.mrf.mxu0
    %v806 = vadd.f32 0.0, %v805
    %807 = vmatmul.bf16.gmra.mxu0 %v556
    %v808 = vpop.f32.mrf.mxu0
    %v809 = vadd.f32 0.0, %v808
    %v810 = vpop.f32.mrf.mxu0
    %v811 = vadd.f32 0.0, %v810
    %812 = vdwg.mxu0
    %813 = vmatpush.bf16.msra.mxu0 0
    %814 = vmatpush.bf16.msra.mxu0 0
    %815 = vmatpush.bf16.msra.mxu0 %v742
    %816 = vmatpush.bf16.msra.mxu0 %v739
    %817 = vmatpush.bf16.msra.mxu0 %v736
    %818 = vmatpush.bf16.msra.mxu0 %v733
    %819 = vmatpush.bf16.msra.mxu0 %v730
    %820 = vmatpush.bf16.msra.mxu0 %v727
    %821 = vmatmul.bf16.gmra.mxu0 %v789
    %v822 = vpop.f32.mrf.mxu0
    %v823 = vadd.f32 %v804, %v822
    %v824 = vpop.f32.mrf.mxu0
    %v825 = vadd.f32 %v806, %v824
    %826 = vmatmul.bf16.gmra.mxu0 %v792
    %v827 = vpop.f32.mrf.mxu0
    %v828 = vadd.f32 %v809, %v827
    %v829 = vpop.f32.mrf.mxu0
    %v830 = vadd.f32 %v811, %v829
    %831 = vdwg.mxu0
    %832 = vmatpush.bf16.msra.mxu0 %v725
    %833 = vmatpush.bf16.msra.mxu0 %v722
    %834 = vmatpush.bf16.msra.mxu0 %v719
    %835 = vmatpush.bf16.msra.mxu0 %v716
    %836 = vmatpush.bf16.msra.mxu0 %v713
    %837 = vmatpush.bf16.msra.mxu0 %v710
    %838 = vmatpush.bf16.msra.mxu0 %v707
    %839 = vmatpush.bf16.msra.mxu0 %v704
    %840 = vmatmul.bf16.gmra.mxu0 %v540
    %v841 = vpop.f32.mrf.mxu0
    %v842 = vadd.f32 0.0, %v841
    %v843 = vpop.f32.mrf.mxu0
    %v844 = vadd.f32 0.0, %v843
    %845 = vmatmul.bf16.gmra.mxu0 %v556
    %v846 = vpop.f32.mrf.mxu0
    %v847 = vadd.f32 0.0, %v846
    %v848 = vpop.f32.mrf.mxu0
    %v849 = vadd.f32 0.0, %v848
    %850 = vdwg.mxu0
    %851 = vmatpush.bf16.msra.mxu0 0
    %852 = vmatpush.bf16.msra.mxu0 0
    %853 = vmatpush.bf16.msra.mxu0 %v743
    %854 = vmatpush.bf16.msra.mxu0 %v740
    %855 = vmatpush.bf16.msra.mxu0 %v737
    %856 = vmatpush.bf16.msra.mxu0 %v734
    %857 = vmatpush.bf16.msra.mxu0 %v731
    %858 = vmatpush.bf16.msra.mxu0 %v728
    %859 = vmatmul.bf16.gmra.mxu0 %v789
    %v860 = vpop.f32.mrf.mxu0
    %v861 = vadd.f32 %v842, %v860
    %v862 = vpop.f32.mrf.mxu0
    %v863 = vadd.f32 %v844, %v862
    %864 = vmatmul.bf16.gmra.mxu0 %v792
    %v865 = vpop.f32.mrf.mxu0
    %v866 = vadd.f32 %v847, %v865
    %v867 = vpop.f32.mrf.mxu0
    %v868 = vadd.f32 %v849, %v867
    %869 = vdwg.mxu0
    %870 = vmatpush.bf16.msra.mxu0 %v726
    %871 = vmatpush.bf16.msra.mxu0 %v723
    %872 = vmatpush.bf16.msra.mxu0 %v720
    %873 = vmatpush.bf16.msra.mxu0 %v717
    %874 = vmatpush.bf16.msra.mxu0 %v714
    %875 = vmatpush.bf16.msra.mxu0 %v711
    %876 = vmatpush.bf16.msra.mxu0 %v708
    %877 = vmatpush.bf16.msra.mxu0 %v705
    %878 = vmatmul.bf16.gmra.mxu0 %v540
    %v879 = vpop.f32.mrf.mxu0
    %v880 = vadd.f32 0.0, %v879
    %v881 = vpop.f32.mrf.mxu0
    %v882 = vadd.f32 0.0, %v881
    %883 = vmatmul.bf16.gmra.mxu0 %v556
    %v884 = vpop.f32.mrf.mxu0
    %v885 = vadd.f32 0.0, %v884
    %v886 = vpop.f32.mrf.mxu0
    %v887 = vadd.f32 0.0, %v886
    %888 = vdwg.mxu0
    %889 = vmatpush.bf16.msra.mxu0 0
    %890 = vmatpush.bf16.msra.mxu0 0
    %891 = vmatpush.bf16.msra.mxu0 %v744
    %892 = vmatpush.bf16.msra.mxu0 %v741
    %893 = vmatpush.bf16.msra.mxu0 %v738
    %894 = vmatpush.bf16.msra.mxu0 %v735
    %895 = vmatpush.bf16.msra.mxu0 %v732
    %896 = vmatpush.bf16.msra.mxu0 %v729
    %897 = vmatmul.bf16.gmra.mxu0 %v789
    %v898 = vpop.f32.mrf.mxu0
    %v899 = vadd.f32 %v880, %v898
    %v900 = vpop.f32.mrf.mxu0
    %v901 = vadd.f32 %v882, %v900
    %902 = vmatmul.bf16.gmra.mxu0 %v792
    %v903 = vpop.f32.mrf.mxu0
    %v904 = vadd.f32 %v885, %v903
    %v905 = vpop.f32.mrf.mxu0
    %v906 = vadd.f32 %v887, %v905
    %907 = vdwg.mxu0
    %v966 = vunpack.c.l.b16 %v416
    %v967 = vunpack.c.h.b16 %v416
    %v968 = vunpack.c.l.b16 %v417
    %v969 = vunpack.c.l.b16 %v418
    %v970 = vunpack.c.h.b16 %v418
    %v971 = vunpack.c.l.b16 %v419
    %v972 = vunpack.c.l.b16 %v420
    %v973 = vunpack.c.h.b16 %v420
    %v974 = vunpack.c.l.b16 %v421
    %v975 = vunpack.c.l.b16 %v422
    %v976 = vunpack.c.h.b16 %v422
    %v977 = vunpack.c.l.b16 %v423
    %v978 = vunpack.c.l.b16 %v424
    %v979 = vunpack.c.h.b16 %v424
    %v980 = vunpack.c.l.b16 %v425
    %v981 = vunpack.c.l.b16 %v426
    %v982 = vunpack.c.h.b16 %v426
    %v983 = vunpack.c.l.b16 %v427
    %v984 = vunpack.c.l.b16 %v428
    %v985 = vunpack.c.h.b16 %v428
    %v986 = vunpack.c.l.b16 %v429
    %v987 = vunpack.c.l.b16 %v430
    %v988 = vunpack.c.h.b16 %v430
    %v989 = vunpack.c.l.b16 %v431
    %v990 = vunpack.c.l.b16 %v432
    %v991 = vunpack.c.h.b16 %v432
    %v992 = vunpack.c.l.b16 %v433
    %v993 = vunpack.c.l.b16 %v434
    %v994 = vunpack.c.h.b16 %v434
    %v995 = vunpack.c.l.b16 %v435
    %v996 = vunpack.c.l.b16 %v436
    %v997 = vunpack.c.h.b16 %v436
    %v998 = vunpack.c.l.b16 %v437
    %v999 = vunpack.c.l.b16 %v438
    %v1000 = vunpack.c.h.b16 %v438
    %v1001 = vunpack.c.l.b16 %v439
    %v1002 = vunpack.c.l.b16 %v440
    %v1003 = vunpack.c.h.b16 %v440
    %v1004 = vunpack.c.l.b16 %v441
    %v1005 = vunpack.c.l.b16 %v442
    %v1006 = vunpack.c.h.b16 %v442
    %v1007 = vunpack.c.l.b16 %v443
    %v1008 = vunpack.c.l.b16 %v444
    %v1009 = vunpack.c.h.b16 %v444
    %v1010 = vunpack.c.l.b16 %v445
    %v1011 = vunpack.c.l.b16 %v446
    %v1012 = vunpack.c.h.b16 %v446
    %v1013 = vunpack.c.l.b16 %v447
    %v1014 = vunpack.c.l.b16 %v448
    %v1015 = vunpack.c.h.b16 %v448
    %v1016 = vunpack.c.l.b16 %v449
    %v1017 = vunpack.c.l.b16 %v450
    %v1018 = vunpack.c.h.b16 %v450
    %v1019 = vunpack.c.l.b16 %v451
    %v1020 = vunpack.c.l.b16 %v452
    %v1021 = vunpack.c.h.b16 %v452
    %v1022 = vunpack.c.l.b16 %v453
    %v1023 = vunpack.c.l.b16 %v454
    %v1024 = vunpack.c.h.b16 %v454
    %v1025 = vunpack.c.l.b16 %v455
    %v1026 = vunpack.c.l.b16 %v456
    %v1027 = vunpack.c.h.b16 %v456
    %v1028 = vunpack.c.l.b16 %v457
    %v1029 = vunpack.c.l.b16 %v458
    %v1030 = vunpack.c.h.b16 %v458
    %v1031 = vunpack.c.l.b16 %v459
    %v1032 = vunpack.c.l.b16 %v460
    %v1033 = vunpack.c.h.b16 %v460
    %v1034 = vunpack.c.l.b16 %v461
    %v1035 = vunpack.c.l.b16 %v462
    %v1036 = vunpack.c.h.b16 %v462
    %v1037 = vunpack.c.l.b16 %v463
    %v1038 = vunpack.c.l.b16 %v464
    %v1039 = vunpack.c.h.b16 %v464
    %v1040 = vunpack.c.l.b16 %v465
    %v1041 = vunpack.c.l.b16 %v466
    %v1042 = vunpack.c.h.b16 %v466
    %v1043 = vunpack.c.l.b16 %v467
    %v1044 = vunpack.c.l.b16 %v468
    %v1045 = vunpack.c.h.b16 %v468
    %v1046 = vunpack.c.l.b16 %v469
    %v1047 = vunpack.c.l.b16 %v470
    %v1048 = vunpack.c.h.b16 %v470
    %v1049 = vunpack.c.l.b16 %v471
    %v1050 = vpack.c.b16 %v969, %v966
    %v1051 = vpack.c.b16 %v970, %v967
    %v1052 = vpack.c.b16 %v971, %v968
    %v1053 = vpack.c.b16 %v975, %v972
    %v1054 = vpack.c.b16 %v976, %v973
    %v1055 = vpack.c.b16 %v977, %v974
    %v1056 = vpack.c.b16 %v981, %v978
    %v1057 = vpack.c.b16 %v982, %v979
    %v1058 = vpack.c.b16 %v983, %v980
    %v1059 = vpack.c.b16 %v987, %v984
    %v1060 = vpack.c.b16 %v988, %v985
    %v1061 = vpack.c.b16 %v989, %v986
    %v1062 = vpack.c.b16 %v993, %v990
    %v1063 = vpack.c.b16 %v994, %v991
    %v1064 = vpack.c.b16 %v995, %v992
    %v1065 = vpack.c.b16 %v999, %v996
    %v1066 = vpack.c.b16 %v1000, %v997
    %v1067 = vpack.c.b16 %v1001, %v998
    %v1068 = vpack.c.b16 %v1005, %v1002
    %v1069 = vpack.c.b16 %v1006, %v1003
    %v1070 = vpack.c.b16 %v1007, %v1004
    %v1071 = vpack.c.b16 %v1011, %v1008
    %v1072 = vpack.c.b16 %v1012, %v1009
    %v1073 = vpack.c.b16 %v1013, %v1010
    %v1074 = vpack.c.b16 %v1017, %v1014
    %v1075 = vpack.c.b16 %v1018, %v1015
    %v1076 = vpack.c.b16 %v1019, %v1016
    %v1077 = vpack.c.b16 %v1023, %v1020
    %v1078 = vpack.c.b16 %v1024, %v1021
    %v1079 = vpack.c.b16 %v1025, %v1022
    %v1080 = vpack.c.b16 %v1029, %v1026
    %v1081 = vpack.c.b16 %v1030, %v1027
    %v1082 = vpack.c.b16 %v1031, %v1028
    %v1083 = vpack.c.b16 %v1035, %v1032
    %v1084 = vpack.c.b16 %v1036, %v1033
    %v1085 = vpack.c.b16 %v1037, %v1034
    %v1086 = vpack.c.b16 %v1041, %v1038
    %v1087 = vpack.c.b16 %v1042, %v1039
    %v1088 = vpack.c.b16 %v1043, %v1040
    %v1089 = vpack.c.b16 %v1047, %v1044
    %v1090 = vpack.c.b16 %v1048, %v1045
    %v1091 = vpack.c.b16 %v1049, %v1046
    %v1134 = vsel %vm787, %v413, 0
    %v1136 = vsel %vm787, %v415, 0
    %1138 = vmatpush.bf16.msra.mxu0 %v1071
    %1139 = vmatpush.bf16.msra.mxu0 %v1068
    %1140 = vmatpush.bf16.msra.mxu0 %v1065
    %1141 = vmatpush.bf16.msra.mxu0 %v1062
    %1142 = vmatpush.bf16.msra.mxu0 %v1059
    %1143 = vmatpush.bf16.msra.mxu0 %v1056
    %1144 = vmatpush.bf16.msra.mxu0 %v1053
    %1145 = vmatpush.bf16.msra.mxu0 %v1050
    %1146 = vmatmul.bf16.gmra.mxu0 %v412
    %v1147 = vpop.f32.mrf.mxu0
    %v1148 = vadd.f32 %v823, %v1147
    %v1149 = vpop.f32.mrf.mxu0
    %v1150 = vadd.f32 %v825, %v1149
    %1151 = vmatmul.bf16.gmra.mxu0 %v414
    %v1152 = vpop.f32.mrf.mxu0
    %v1153 = vadd.f32 %v828, %v1152
    %v1154 = vpop.f32.mrf.mxu0
    %v1155 = vadd.f32 %v830, %v1154
    %1156 = vdwg.mxu0
    %1157 = vmatpush.bf16.msra.mxu0 0
    %1158 = vmatpush.bf16.msra.mxu0 0
    %1159 = vmatpush.bf16.msra.mxu0 %v1089
    %1160 = vmatpush.bf16.msra.mxu0 %v1086
    %1161 = vmatpush.bf16.msra.mxu0 %v1083
    %1162 = vmatpush.bf16.msra.mxu0 %v1080
    %1163 = vmatpush.bf16.msra.mxu0 %v1077
    %1164 = vmatpush.bf16.msra.mxu0 %v1074
    %1165 = vmatmul.bf16.gmra.mxu0 %v1134
    %v1166 = vpop.f32.mrf.mxu0
    %v1167 = vadd.f32 %v1148, %v1166
    %v1168 = vpop.f32.mrf.mxu0
    %v1169 = vadd.f32 %v1150, %v1168
    %1170 = vmatmul.bf16.gmra.mxu0 %v1136
    %v1171 = vpop.f32.mrf.mxu0
    %v1172 = vadd.f32 %v1153, %v1171
    %v1173 = vpop.f32.mrf.mxu0
    %v1174 = vadd.f32 %v1155, %v1173
    %1175 = vdwg.mxu0
    %1176 = vmatpush.bf16.msra.mxu0 %v1072
    %1177 = vmatpush.bf16.msra.mxu0 %v1069
    %1178 = vmatpush.bf16.msra.mxu0 %v1066
    %1179 = vmatpush.bf16.msra.mxu0 %v1063
    %1180 = vmatpush.bf16.msra.mxu0 %v1060
    %1181 = vmatpush.bf16.msra.mxu0 %v1057
    %1182 = vmatpush.bf16.msra.mxu0 %v1054
    %1183 = vmatpush.bf16.msra.mxu0 %v1051
    %1184 = vmatmul.bf16.gmra.mxu0 %v412
    %v1185 = vpop.f32.mrf.mxu0
    %v1186 = vadd.f32 %v861, %v1185
    %v1187 = vpop.f32.mrf.mxu0
    %v1188 = vadd.f32 %v863, %v1187
    %1189 = vmatmul.bf16.gmra.mxu0 %v414
    %v1190 = vpop.f32.mrf.mxu0
    %v1191 = vadd.f32 %v866, %v1190
    %v1192 = vpop.f32.mrf.mxu0
    %v1193 = vadd.f32 %v868, %v1192
    %1194 = vdwg.mxu0
    %1195 = vmatpush.bf16.msra.mxu0 0
    %1196 = vmatpush.bf16.msra.mxu0 0
    %1197 = vmatpush.bf16.msra.mxu0 %v1090
    %1198 = vmatpush.bf16.msra.mxu0 %v1087
    %1199 = vmatpush.bf16.msra.mxu0 %v1084
    %1200 = vmatpush.bf16.msra.mxu0 %v1081
    %1201 = vmatpush.bf16.msra.mxu0 %v1078
    %1202 = vmatpush.bf16.msra.mxu0 %v1075
    %1203 = vmatmul.bf16.gmra.mxu0 %v1134
    %v1204 = vpop.f32.mrf.mxu0
    %v1205 = vadd.f32 %v1186, %v1204
    %v1206 = vpop.f32.mrf.mxu0
    %v1207 = vadd.f32 %v1188, %v1206
    %1208 = vmatmul.bf16.gmra.mxu0 %v1136
    %v1209 = vpop.f32.mrf.mxu0
    %v1210 = vadd.f32 %v1191, %v1209
    %v1211 = vpop.f32.mrf.mxu0
    %v1212 = vadd.f32 %v1193, %v1211
    %1213 = vdwg.mxu0
    %1214 = vmatpush.bf16.msra.mxu0 %v1073
    %1215 = vmatpush.bf16.msra.mxu0 %v1070
    %1216 = vmatpush.bf16.msra.mxu0 %v1067
    %1217 = vmatpush.bf16.msra.mxu0 %v1064
    %1218 = vmatpush.bf16.msra.mxu0 %v1061
    %1219 = vmatpush.bf16.msra.mxu0 %v1058
    %1220 = vmatpush.bf16.msra.mxu0 %v1055
    %1221 = vmatpush.bf16.msra.mxu0 %v1052
    %1222 = vmatmul.bf16.gmra.mxu0 %v412
    %v1223 = vpop.f32.mrf.mxu0
    %v1224 = vadd.f32 %v899, %v1223
    %v1225 = vpop.f32.mrf.mxu0
    %v1226 = vadd.f32 %v901, %v1225
    %1227 = vmatmul.bf16.gmra.mxu0 %v414
    %v1228 = vpop.f32.mrf.mxu0
    %v1229 = vadd.f32 %v904, %v1228
    %v1230 = vpop.f32.mrf.mxu0
    %v1231 = vadd.f32 %v906, %v1230
    %1232 = vdwg.mxu0
    %1233 = vmatpush.bf16.msra.mxu0 0
    %1234 = vmatpush.bf16.msra.mxu0 0
    %1235 = vmatpush.bf16.msra.mxu0 %v1091
    %1236 = vmatpush.bf16.msra.mxu0 %v1088
    %1237 = vmatpush.bf16.msra.mxu0 %v1085
    %1238 = vmatpush.bf16.msra.mxu0 %v1082
    %1239 = vmatpush.bf16.msra.mxu0 %v1079
    %1240 = vmatpush.bf16.msra.mxu0 %v1076
    %1241 = vmatmul.bf16.gmra.mxu0 %v1134
    %v1242 = vpop.f32.mrf.mxu0
    %v1243 = vadd.f32 %v1224, %v1242
    %v1244 = vpop.f32.mrf.mxu0
    %v1245 = vadd.f32 %v1226, %v1244
    %1246 = vmatmul.bf16.gmra.mxu0 %v1136
    %v1247 = vpop.f32.mrf.mxu0
    %v1248 = vadd.f32 %v1229, %v1247
    %v1249 = vpop.f32.mrf.mxu0
    %v1250 = vadd.f32 %v1231, %v1249
    %1251 = vdwg.mxu0
    %s1252 = scalar_lea.vmem [#allocation7], 672
    %v1253 = vld [vmem:[%s1252] sm:$0xff]
    %v1254 = vld [vmem:[%s1252 + $0x8] sm:$0xf]
    %v1255 = vld [vmem:[%s1252 + $0xc] sm:$0xff]
    %v1256 = vld [vmem:[%s1252 + $0x14] sm:$0xf]
    %v1257 = vld [vmem:[%s1252 + $0x18] sm:$0xff]
    %v1258 = vld [vmem:[%s1252 + $0x20] sm:$0xf]
    %v1259 = vld [vmem:[%s1252 + $0x24] sm:$0xff]
    %v1260 = vld [vmem:[%s1252 + $0x2c] sm:$0xf]
    %v1261 = vld [vmem:[%s1252 + $0x30] sm:$0xff]
    %v1262 = vld [vmem:[%s1252 + $0x38] sm:$0xf]
    %v1263 = vld [vmem:[%s1252 + $0x3c] sm:$0xff]
    %v1264 = vld [vmem:[%s1252 + $0x44] sm:$0xf]
    %v1265 = vld [vmem:[%s1252 + $0x48] sm:$0xff]
    %v1266 = vld [vmem:[%s1252 + $0x50] sm:$0xf]
    %v1267 = vld [vmem:[%s1252 + $0x54] sm:$0xff]
    %v1268 = vld [vmem:[%s1252 + $0x5c] sm:$0xf]
    %v1269 = vld [vmem:[%s1252 + $0x60] sm:$0xff]
    %v1270 = vld [vmem:[%s1252 + $0x68] sm:$0xf]
    %v1271 = vld [vmem:[%s1252 + $0x6c] sm:$0xff]
    %v1272 = vld [vmem:[%s1252 + $0x74] sm:$0xf]
    %v1273 = vld [vmem:[%s1252 + $0x78] sm:$0xff]
    %v1274 = vld [vmem:[%s1252 + $0x80] sm:$0xf]
    %v1275 = vld [vmem:[%s1252 + $0x84] sm:$0xff]
    %v1276 = vld [vmem:[%s1252 + $0x8c] sm:$0xf]
    %v1277 = vld [vmem:[%s1252 + $0x90] sm:$0xff]
    %v1278 = vld [vmem:[%s1252 + $0x98] sm:$0xf]
    %v1279 = vld [vmem:[%s1252 + $0x9c] sm:$0xff]
    %v1280 = vld [vmem:[%s1252 + $0xa4] sm:$0xf]
    %v1281 = vld [vmem:[%s1252 + $0xa8] sm:$0xff]
    %v1282 = vld [vmem:[%s1252 + $0xb0] sm:$0xf]
    %v1283 = vld [vmem:[%s1252 + $0xb4] sm:$0xff]
    %v1284 = vld [vmem:[%s1252 + $0xbc] sm:$0xf]
    %v1285 = vld [vmem:[%s1252 + $0xc0] sm:$0xff]
    %v1286 = vld [vmem:[%s1252 + $0xc8] sm:$0xf]
    %v1287 = vld [vmem:[%s1252 + $0xcc] sm:$0xff]
    %v1288 = vld [vmem:[%s1252 + $0xd4] sm:$0xf]
    %v1289 = vld [vmem:[%s1252 + $0xd8] sm:$0xff]
    %v1290 = vld [vmem:[%s1252 + $0xe0] sm:$0xf]
    %v1291 = vld [vmem:[%s1252 + $0xe4] sm:$0xff]
    %v1292 = vld [vmem:[%s1252 + $0xec] sm:$0xf]
    %v1293 = vld [vmem:[%s1252 + $0xf0] sm:$0xff]
    %v1294 = vld [vmem:[%s1252 + $0xf8] sm:$0xf]
    %v1295 = vld [vmem:[%s1252 + $0xfc] sm:$0xff]
    %v1296 = vld [vmem:[%s1252 + $0x104] sm:$0xf]
    %v1297 = vld [vmem:[%s1252 + $0x108] sm:$0xff]
    %v1298 = vld [vmem:[%s1252 + $0x110] sm:$0xf]
    %v1299 = vld [vmem:[%s1252 + $0x114] sm:$0xff]
    %v1300 = vld [vmem:[%s1252 + $0x11c] sm:$0xf]
    %v1301 = vld [vmem:[%s1252 + $0x120] sm:$0xff]
    %v1302 = vld [vmem:[%s1252 + $0x128] sm:$0xf]
    %v1303 = vld [vmem:[%s1252 + $0x12c] sm:$0xff]
    %v1304 = vld [vmem:[%s1252 + $0x134] sm:$0xf]
    %v1305 = vld [vmem:[%s1252 + $0x138] sm:$0xff]
    %v1306 = vld [vmem:[%s1252 + $0x140] sm:$0xf]
    %v1307 = vld [vmem:[%s1252 + $0x144] sm:$0xff]
    %v1308 = vld [vmem:[%s1252 + $0x14c] sm:$0xf]
    %v1309 = vrot.slane %v412, 1
    %v1310 = vrot.slane %v414, 1
    %v1311 = vsel %vm306, %v1309, %v1310
    %v1312 = vrot.slane %v413, 1
    %v1313 = vrot.slane %v415, 1
    %v1314 = vsel %vm306, %v1312, %v1313
    %v1315 = vsel %vm306, %v1310, %v310
    %v1316 = vsel %vm306, %v1313, %v310
    %v1375 = vunpack.c.l.b16 %v1253
    %v1376 = vunpack.c.h.b16 %v1253
    %v1377 = vunpack.c.l.b16 %v1254
    %v1378 = vunpack.c.l.b16 %v1255
    %v1379 = vunpack.c.h.b16 %v1255
    %v1380 = vunpack.c.l.b16 %v1256
    %v1381 = vunpack.c.l.b16 %v1257
    %v1382 = vunpack.c.h.b16 %v1257
    %v1383 = vunpack.c.l.b16 %v1258
    %v1384 = vunpack.c.l.b16 %v1259
    %v1385 = vunpack.c.h.b16 %v1259
    %v1386 = vunpack.c.l.b16 %v1260
    %v1387 = vunpack.c.l.b16 %v1261
    %v1388 = vunpack.c.h.b16 %v1261
    %v1389 = vunpack.c.l.b16 %v1262
    %v1390 = vunpack.c.l.b16 %v1263
    %v1391 = vunpack.c.h.b16 %v1263
    %v1392 = vunpack.c.l.b16 %v1264
    %v1393 = vunpack.c.l.b16 %v1265
    %v1394 = vunpack.c.h.b16 %v1265
    %v1395 = vunpack.c.l.b16 %v1266
    %v1396 = vunpack.c.l.b16 %v1267
    %v1397 = vunpack.c.h.b16 %v1267
    %v1398 = vunpack.c.l.b16 %v1268
    %v1399 = vunpack.c.l.b16 %v1269
    %v1400 = vunpack.c.h.b16 %v1269
    %v1401 = vunpack.c.l.b16 %v1270
    %v1402 = vunpack.c.l.b16 %v1271
    %v1403 = vunpack.c.h.b16 %v1271
    %v1404 = vunpack.c.l.b16 %v1272
    %v1405 = vunpack.c.l.b16 %v1273
    %v1406 = vunpack.c.h.b16 %v1273
    %v1407 = vunpack.c.l.b16 %v1274
    %v1408 = vunpack.c.l.b16 %v1275
    %v1409 = vunpack.c.h.b16 %v1275
    %v1410 = vunpack.c.l.b16 %v1276
    %v1411 = vunpack.c.l.b16 %v1277
    %v1412 = vunpack.c.h.b16 %v1277
    %v1413 = vunpack.c.l.b16 %v1278
    %v1414 = vunpack.c.l.b16 %v1279
    %v1415 = vunpack.c.h.b16 %v1279
    %v1416 = vunpack.c.l.b16 %v1280
    %v1417 = vunpack.c.l.b16 %v1281
    %v1418 = vunpack.c.h.b16 %v1281
    %v1419 = vunpack.c.l.b16 %v1282
    %v1420 = vunpack.c.l.b16 %v1283
    %v1421 = vunpack.c.h.b16 %v1283
    %v1422 = vunpack.c.l.b16 %v1284
    %v1423 = vunpack.c.l.b16 %v1285
    %v1424 = vunpack.c.h.b16 %v1285
    %v1425 = vunpack.c.l.b16 %v1286
    %v1426 = vunpack.c.l.b16 %v1287
    %v1427 = vunpack.c.h.b16 %v1287
    %v1428 = vunpack.c.l.b16 %v1288
    %v1429 = vunpack.c.l.b16 %v1289
    %v1430 = vunpack.c.h.b16 %v1289
    %v1431 = vunpack.c.l.b16 %v1290
    %v1432 = vunpack.c.l.b16 %v1291
    %v1433 = vunpack.c.h.b16 %v1291
    %v1434 = vunpack.c.l.b16 %v1292
    %v1435 = vunpack.c.l.b16 %v1293
    %v1436 = vunpack.c.h.b16 %v1293
    %v1437 = vunpack.c.l.b16 %v1294
    %v1438 = vunpack.c.l.b16 %v1295
    %v1439 = vunpack.c.h.b16 %v1295
    %v1440 = vunpack.c.l.b16 %v1296
    %v1441 = vunpack.c.l.b16 %v1297
    %v1442 = vunpack.c.h.b16 %v1297
    %v1443 = vunpack.c.l.b16 %v1298
    %v1444 = vunpack.c.l.b16 %v1299
    %v1445 = vunpack.c.h.b16 %v1299
    %v1446 = vunpack.c.l.b16 %v1300
    %v1447 = vunpack.c.l.b16 %v1301
    %v1448 = vunpack.c.h.b16 %v1301
    %v1449 = vunpack.c.l.b16 %v1302
    %v1450 = vunpack.c.l.b16 %v1303
    %v1451 = vunpack.c.h.b16 %v1303
    %v1452 = vunpack.c.l.b16 %v1304
    %v1453 = vunpack.c.l.b16 %v1305
    %v1454 = vunpack.c.h.b16 %v1305
    %v1455 = vunpack.c.l.b16 %v1306
    %v1456 = vunpack.c.l.b16 %v1307
    %v1457 = vunpack.c.h.b16 %v1307
    %v1458 = vunpack.c.l.b16 %v1308
    %v1459 = vpack.c.b16 %v1378, %v1375
    %v1460 = vpack.c.b16 %v1379, %v1376
    %v1461 = vpack.c.b16 %v1380, %v1377
    %v1462 = vpack.c.b16 %v1384, %v1381
    %v1463 = vpack.c.b16 %v1385, %v1382
    %v1464 = vpack.c.b16 %v1386, %v1383
    %v1465 = vpack.c.b16 %v1390, %v1387
    %v1466 = vpack.c.b16 %v1391, %v1388
    %v1467 = vpack.c.b16 %v1392, %v1389
    %v1468 = vpack.c.b16 %v1396, %v1393
    %v1469 = vpack.c.b16 %v1397, %v1394
    %v1470 = vpack.c.b16 %v1398, %v1395
    %v1471 = vpack.c.b16 %v1402, %v1399
    %v1472 = vpack.c.b16 %v1403, %v1400
    %v1473 = vpack.c.b16 %v1404, %v1401
    %v1474 = vpack.c.b16 %v1408, %v1405
    %v1475 = vpack.c.b16 %v1409, %v1406
    %v1476 = vpack.c.b16 %v1410, %v1407
    %v1477 = vpack.c.b16 %v1414, %v1411
    %v1478 = vpack.c.b16 %v1415, %v1412
    %v1479 = vpack.c.b16 %v1416, %v1413
    %v1480 = vpack.c.b16 %v1420, %v1417
    %v1481 = vpack.c.b16 %v1421, %v1418
    %v1482 = vpack.c.b16 %v1422, %v1419
    %v1483 = vpack.c.b16 %v1426, %v1423
    %v1484 = vpack.c.b16 %v1427, %v1424
    %v1485 = vpack.c.b16 %v1428, %v1425
    %v1486 = vpack.c.b16 %v1432, %v1429
    %v1487 = vpack.c.b16 %v1433, %v1430
    %v1488 = vpack.c.b16 %v1434, %v1431
    %v1489 = vpack.c.b16 %v1438, %v1435
    %v1490 = vpack.c.b16 %v1439, %v1436
    %v1491 = vpack.c.b16 %v1440, %v1437
    %v1492 = vpack.c.b16 %v1444, %v1441
    %v1493 = vpack.c.b16 %v1445, %v1442
    %v1494 = vpack.c.b16 %v1446, %v1443
    %v1495 = vpack.c.b16 %v1450, %v1447
    %v1496 = vpack.c.b16 %v1451, %v1448
    %v1497 = vpack.c.b16 %v1452, %v1449
    %v1498 = vpack.c.b16 %v1456, %v1453
    %v1499 = vpack.c.b16 %v1457, %v1454
    %v1500 = vpack.c.b16 %v1458, %v1455
    %v1544 = vsel %vm787, %v1314, 0
    %v1547 = vsel %vm787, %v1316, 0
    %1549 = vmatpush.bf16.msra.mxu0 %v1480
    %1550 = vmatpush.bf16.msra.mxu0 %v1477
    %1551 = vmatpush.bf16.msra.mxu0 %v1474
    %1552 = vmatpush.bf16.msra.mxu0 %v1471
    %1553 = vmatpush.bf16.msra.mxu0 %v1468
    %1554 = vmatpush.bf16.msra.mxu0 %v1465
    %1555 = vmatpush.bf16.msra.mxu0 %v1462
    %1556 = vmatpush.bf16.msra.mxu0 %v1459
    %1557 = vmatmul.bf16.gmra.mxu0 %v1311
    %v1558 = vpop.f32.mrf.mxu0
    %v1559 = vadd.f32 0.0, %v1558
    %v1560 = vpop.f32.mrf.mxu0
    %v1561 = vadd.f32 0.0, %v1560
    %1562 = vmatmul.bf16.gmra.mxu0 %v1315
    %v1563 = vpop.f32.mrf.mxu0
    %v1564 = vadd.f32 0.0, %v1563
    %v1565 = vpop.f32.mrf.mxu0
    %v1566 = vadd.f32 0.0, %v1565
    %1567 = vdwg.mxu0
    %1568 = vmatpush.bf16.msra.mxu0 0
    %1569 = vmatpush.bf16.msra.mxu0 0
    %1570 = vmatpush.bf16.msra.mxu0 %v1498
    %1571 = vmatpush.bf16.msra.mxu0 %v1495
    %1572 = vmatpush.bf16.msra.mxu0 %v1492
    %1573 = vmatpush.bf16.msra.mxu0 %v1489
    %1574 = vmatpush.bf16.msra.mxu0 %v1486
    %1575 = vmatpush.bf16.msra.mxu0 %v1483
    %1576 = vmatmul.bf16.gmra.mxu0 %v1544
    %v1577 = vpop.f32.mrf.mxu0
    %v1578 = vadd.f32 %v1559, %v1577
    %v1579 = vpop.f32.mrf.mxu0
    %v1580 = vadd.f32 %v1561, %v1579
    %1581 = vmatmul.bf16.gmra.mxu0 %v1547
    %v1582 = vpop.f32.mrf.mxu0
    %v1583 = vadd.f32 %v1564, %v1582
    %v1584 = vpop.f32.mrf.mxu0
    %v1585 = vadd.f32 %v1566, %v1584
    %1586 = vdwg.mxu0
    %1587 = vmatpush.bf16.msra.mxu0 %v1481
    %1588 = vmatpush.bf16.msra.mxu0 %v1478
    %1589 = vmatpush.bf16.msra.mxu0 %v1475
    %1590 = vmatpush.bf16.msra.mxu0 %v1472
    %1591 = vmatpush.bf16.msra.mxu0 %v1469
    %1592 = vmatpush.bf16.msra.mxu0 %v1466
    %1593 = vmatpush.bf16.msra.mxu0 %v1463
    %1594 = vmatpush.bf16.msra.mxu0 %v1460
    %1595 = vmatmul.bf16.gmra.mxu0 %v1311
    %v1596 = vpop.f32.mrf.mxu0
    %v1597 = vadd.f32 0.0, %v1596
    %v1598 = vpop.f32.mrf.mxu0
    %v1599 = vadd.f32 0.0, %v1598
    %1600 = vmatmul.bf16.gmra.mxu0 %v1315
    %v1601 = vpop.f32.mrf.mxu0
    %v1602 = vadd.f32 0.0, %v1601
    %v1603 = vpop.f32.mrf.mxu0
    %v1604 = vadd.f32 0.0, %v1603
    %1605 = vdwg.mxu0
    %1606 = vmatpush.bf16.msra.mxu0 0
    %1607 = vmatpush.bf16.msra.mxu0 0
    %1608 = vmatpush.bf16.msra.mxu0 %v1499
    %1609 = vmatpush.bf16.msra.mxu0 %v1496
    %1610 = vmatpush.bf16.msra.mxu0 %v1493
    %1611 = vmatpush.bf16.msra.mxu0 %v1490
    %1612 = vmatpush.bf16.msra.mxu0 %v1487
    %1613 = vmatpush.bf16.msra.mxu0 %v1484
    %1614 = vmatmul.bf16.gmra.mxu0 %v1544
    %v1615 = vpop.f32.mrf.mxu0
    %v1616 = vadd.f32 %v1597, %v1615
    %v1617 = vpop.f32.mrf.mxu0
    %v1618 = vadd.f32 %v1599, %v1617
    %1619 = vmatmul.bf16.gmra.mxu0 %v1547
    %v1620 = vpop.f32.mrf.mxu0
    %v1621 = vadd.f32 %v1602, %v1620
    %v1622 = vpop.f32.mrf.mxu0
    %v1623 = vadd.f32 %v1604, %v1622
    %1624 = vdwg.mxu0
    %1625 = vmatpush.bf16.msra.mxu0 %v1482
    %1626 = vmatpush.bf16.msra.mxu0 %v1479
    %1627 = vmatpush.bf16.msra.mxu0 %v1476
    %1628 = vmatpush.bf16.msra.mxu0 %v1473
    %1629 = vmatpush.bf16.msra.mxu0 %v1470
    %1630 = vmatpush.bf16.msra.mxu0 %v1467
    %1631 = vmatpush.bf16.msra.mxu0 %v1464
    %1632 = vmatpush.bf16.msra.mxu0 %v1461
    %1633 = vmatmul.bf16.gmra.mxu0 %v1311
    %v1634 = vpop.f32.mrf.mxu0
    %v1635 = vadd.f32 0.0, %v1634
    %v1636 = vpop.f32.mrf.mxu0
    %v1637 = vadd.f32 0.0, %v1636
    %1638 = vmatmul.bf16.gmra.mxu0 %v1315
    %v1639 = vpop.f32.mrf.mxu0
    %v1640 = vadd.f32 0.0, %v1639
    %v1641 = vpop.f32.mrf.mxu0
    %v1642 = vadd.f32 0.0, %v1641
    %1643 = vdwg.mxu0
    %1644 = vmatpush.bf16.msra.mxu0 0
    %1645 = vmatpush.bf16.msra.mxu0 0
    %1646 = vmatpush.bf16.msra.mxu0 %v1500
    %1647 = vmatpush.bf16.msra.mxu0 %v1497
    %1648 = vmatpush.bf16.msra.mxu0 %v1494
    %1649 = vmatpush.bf16.msra.mxu0 %v1491
    %1650 = vmatpush.bf16.msra.mxu0 %v1488
    %1651 = vmatpush.bf16.msra.mxu0 %v1485
    %1652 = vmatmul.bf16.gmra.mxu0 %v1544
    %v1653 = vpop.f32.mrf.mxu0
    %v1654 = vadd.f32 %v1635, %v1653
    %v1655 = vpop.f32.mrf.mxu0
    %v1656 = vadd.f32 %v1637, %v1655
    %1657 = vmatmul.bf16.gmra.mxu0 %v1547
    %v1658 = vpop.f32.mrf.mxu0
    %v1659 = vadd.f32 %v1640, %v1658
    %v1660 = vpop.f32.mrf.mxu0
    %v1661 = vadd.f32 %v1642, %v1660
    %1662 = vdwg.mxu0
    %v1663 = vadd.f32 %v1167, %v1578
    %v1664 = vadd.f32 %v1205, %v1616
    %v1665 = vadd.f32 %v1243, %v1654
    %v1666 = vadd.f32 %v1169, %v1580
    %v1667 = vadd.f32 %v1207, %v1618
    %v1668 = vadd.f32 %v1245, %v1656
    %v1669 = vadd.f32 %v1172, %v1583
    %v1670 = vadd.f32 %v1210, %v1621
    %v1671 = vadd.f32 %v1248, %v1659
    %v1672 = vadd.f32 %v1174, %v1585
    %v1673 = vadd.f32 %v1212, %v1623
    %v1674 = vadd.f32 %v1250, %v1661
    %v1675 = vld [vmem:[#allocation8] sm:$0x7]
    %v1677 = vperm.slane %v1675, 0
    %v1678 = vperm.slane %v1675, 1
    %v1679 = vperm.slane %v1675, 2
    %v1683 = vadd.f32 %v1663, %v1677
    %v1684 = vadd.f32 %v1664, %v1678
    %v1685 = vadd.f32 %v1665, %v1679
    %v1686 = vadd.f32 %v1666, %v1677
    %v1687 = vadd.f32 %v1667, %v1678
    %v1688 = vadd.f32 %v1668, %v1679
    %v1689 = vadd.f32 %v1669, %v1677
    %v1690 = vadd.f32 %v1670, %v1678
    %v1691 = vadd.f32 %v1671, %v1679
    %v1692 = vadd.f32 %v1672, %v1677
    %v1693 = vadd.f32 %v1673, %v1678
    %v1694 = vadd.f32 %v1674, %v1679
    %v1695 = vmax.f32 %v1683, 0.0
    %v1696 = vmax.f32 %v1684, 0.0
    %v1697 = vmax.f32 %v1685, 0.0
    %v1698 = vmax.f32 %v1686, 0.0
    %v1699 = vmax.f32 %v1687, 0.0
    %v1700 = vmax.f32 %v1688, 0.0
    %v1701 = vmax.f32 %v1689, 0.0
    %v1702 = vmax.f32 %v1690, 0.0
    %v1703 = vmax.f32 %v1691, 0.0
    %v1704 = vmax.f32 %v1692, 0.0
    %v1705 = vmax.f32 %v1693, 0.0
    %v1706 = vmax.f32 %v1694, 0.0
    %v1707 = vpack.c.bf16 %v1696, %v1695
    %v1708 = vpack.c.bf16 %v1697, %v1697
    %v1709 = vpack.c.bf16 %v1699, %v1698
    %v1710 = vpack.c.bf16 %v1700, %v1700
    %v1711 = vpack.c.bf16 %v1702, %v1701
    %v1712 = vpack.c.bf16 %v1703, %v1703
    %v1713 = vpack.c.bf16 %v1705, %v1704
    %v1714 = vpack.c.bf16 %v1706, %v1706
    %v1723 = vunpack.c.l.b16 %v1707
    %v1724 = vunpack.c.h.b16 %v1707
    %v1725 = vunpack.c.l.b16 %v1708
    %v1726 = vunpack.c.l.b16 %v1709
    %v1727 = vunpack.c.h.b16 %v1709
    %v1728 = vunpack.c.l.b16 %v1710
    %v1729 = vunpack.c.l.b16 %v1711
    %v1730 = vunpack.c.h.b16 %v1711
    %v1731 = vunpack.c.l.b16 %v1712
    %v1732 = vunpack.c.l.b16 %v1713
    %v1733 = vunpack.c.h.b16 %v1713
    %v1734 = vunpack.c.l.b16 %v1714
    %v1735 = vpack.c.b16 %v1726, %v1723
    %v1736 = vpack.c.b16 %v1727, %v1724
    %v1737 = vpack.c.b16 %v1728, %v1725
    %v1738 = vpack.c.b16 %v1732, %v1729
    %v1739 = vpack.c.b16 %v1733, %v1730
    %v1740 = vpack.c.b16 %v1734, %v1731
    %v1741 = vld [vmem:[#allocation10] sm:$0xff]
    %v1742 = vld [vmem:[#allocation10 + $0x8] sm:$0xff]
    %v1743 = vld [vmem:[#allocation10 + $0x10] sm:$0xf]
    %v1744 = vld [vmem:[#allocation10 + $0x14] sm:$0xff]
    %v1745 = vld [vmem:[#allocation10 + $0x1c] sm:$0xff]
    %v1746 = vld [vmem:[#allocation10 + $0x24] sm:$0xf]
    %v1747 = vld [vmem:[#allocation10 + $0x28] sm:$0xff]
    %v1748 = vld [vmem:[#allocation10 + $0x30] sm:$0xff]
    %v1749 = vld [vmem:[#allocation10 + $0x38] sm:$0xf]
    %v1750 = vld [vmem:[#allocation10 + $0x3c] sm:$0xff]
    %v1751 = vld [vmem:[#allocation10 + $0x44] sm:$0xff]
    %v1752 = vld [vmem:[#allocation10 + $0x4c] sm:$0xf]
    %v1753 = vld [vmem:[#allocation10 + $0x50] sm:$0xff]
    %v1754 = vld [vmem:[#allocation10 + $0x58] sm:$0xff]
    %v1755 = vld [vmem:[#allocation10 + $0x60] sm:$0xf]
    %v1756 = vld [vmem:[#allocation10 + $0x64] sm:$0xff]
    %v1757 = vld [vmem:[#allocation10 + $0x6c] sm:$0xff]
    %v1758 = vld [vmem:[#allocation10 + $0x74] sm:$0xf]
    %v1759 = vld [vmem:[#allocation10 + $0x78] sm:$0xff]
    %v1760 = vld [vmem:[#allocation10 + $0x80] sm:$0xff]
    %v1761 = vld [vmem:[#allocation10 + $0x88] sm:$0xf]
    %v1762 = vld [vmem:[#allocation10 + $0x8c] sm:$0xff]
    %v1763 = vld [vmem:[#allocation10 + $0x94] sm:$0xff]
    %v1764 = vld [vmem:[#allocation10 + $0x9c] sm:$0xf]
    %v1765 = vld [vmem:[#allocation10 + $0xa0] sm:$0xff]
    %v1766 = vld [vmem:[#allocation10 + $0xa8] sm:$0xff]
    %v1767 = vld [vmem:[#allocation10 + $0xb0] sm:$0xf]
    %v1768 = vld [vmem:[#allocation10 + $0xb4] sm:$0xff]
    %v1769 = vld [vmem:[#allocation10 + $0xbc] sm:$0xff]
    %v1770 = vld [vmem:[#allocation10 + $0xc4] sm:$0xf]
    %v1771 = vld [vmem:[#allocation10 + $0xc8] sm:$0xff]
    %v1772 = vld [vmem:[#allocation10 + $0xd0] sm:$0xff]
    %v1773 = vld [vmem:[#allocation10 + $0xd8] sm:$0xf]
    %v1774 = vld [vmem:[#allocation10 + $0xdc] sm:$0xff]
    %v1775 = vld [vmem:[#allocation10 + $0xe4] sm:$0xff]
    %v1776 = vld [vmem:[#allocation10 + $0xec] sm:$0xf]
    %v1777 = vld [vmem:[#allocation10 + $0xf0] sm:$0xff]
    %v1778 = vld [vmem:[#allocation10 + $0xf8] sm:$0xff]
    %v1779 = vld [vmem:[#allocation10 + $0x100] sm:$0xf]
    %v1780 = vld [vmem:[#allocation10 + $0x104] sm:$0xff]
    %v1781 = vld [vmem:[#allocation10 + $0x10c] sm:$0xff]
    %v1782 = vld [vmem:[#allocation10 + $0x114] sm:$0xf]
    %v1783 = vld [vmem:[#allocation10 + $0x118] sm:$0xff]
    %v1784 = vld [vmem:[#allocation10 + $0x120] sm:$0xff]
    %v1785 = vld [vmem:[#allocation10 + $0x128] sm:$0xf]
    %v1786 = vld [vmem:[#allocation10 + $0x12c] sm:$0xff]
    %v1787 = vld [vmem:[#allocation10 + $0x134] sm:$0xff]
    %v1788 = vld [vmem:[#allocation10 + $0x13c] sm:$0xf]
    %v1789 = vld [vmem:[#allocation10 + $0x140] sm:$0xff]
    %v1790 = vld [vmem:[#allocation10 + $0x148] sm:$0xff]
    %v1791 = vld [vmem:[#allocation10 + $0x150] sm:$0xf]
    %v1792 = vld [vmem:[#allocation10 + $0x154] sm:$0xff]
    %v1793 = vld [vmem:[#allocation10 + $0x15c] sm:$0xff]
    %v1794 = vld [vmem:[#allocation10 + $0x164] sm:$0xf]
    %v1795 = vld [vmem:[#allocation10 + $0x168] sm:$0xff]
    %v1796 = vld [vmem:[#allocation10 + $0x170] sm:$0xff]
    %v1797 = vld [vmem:[#allocation10 + $0x178] sm:$0xf]
    %v1798 = vld [vmem:[#allocation10 + $0x17c] sm:$0xff]
    %v1799 = vld [vmem:[#allocation10 + $0x184] sm:$0xff]
    %v1800 = vld [vmem:[#allocation10 + $0x18c] sm:$0xf]
    %v1801 = vld [vmem:[#allocation10 + $0x190] sm:$0xff]
    %v1802 = vld [vmem:[#allocation10 + $0x198] sm:$0xff]
    %v1803 = vld [vmem:[#allocation10 + $0x1a0] sm:$0xf]
    %v1804 = vld [vmem:[#allocation10 + $0x1a4] sm:$0xff]
    %v1805 = vld [vmem:[#allocation10 + $0x1ac] sm:$0xff]
    %v1806 = vld [vmem:[#allocation10 + $0x1b4] sm:$0xf]
    %v1807 = vld [vmem:[#allocation10 + $0x1b8] sm:$0xff]
    %v1808 = vld [vmem:[#allocation10 + $0x1c0] sm:$0xff]
    %v1809 = vld [vmem:[#allocation10 + $0x1c8] sm:$0xf]
    %v1810 = vld [vmem:[#allocation10 + $0x1cc] sm:$0xff]
    %v1811 = vld [vmem:[#allocation10 + $0x1d4] sm:$0xff]
    %v1812 = vld [vmem:[#allocation10 + $0x1dc] sm:$0xf]
    %v1813 = vld [vmem:[#allocation10 + $0x1e0] sm:$0xff]
    %v1814 = vld [vmem:[#allocation10 + $0x1e8] sm:$0xff]
    %v1815 = vld [vmem:[#allocation10 + $0x1f0] sm:$0xf]
    %v1816 = vld [vmem:[#allocation10 + $0x1f4] sm:$0xff]
    %v1817 = vld [vmem:[#allocation10 + $0x1fc] sm:$0xff]
    %v1818 = vld [vmem:[#allocation10 + $0x204] sm:$0xf]
    %v1819 = vld [vmem:[#allocation10 + $0x208] sm:$0xff]
    %v1820 = vld [vmem:[#allocation10 + $0x210] sm:$0xff]
    %v1821 = vld [vmem:[#allocation10 + $0x218] sm:$0xf]
    %v1822 = vld [vmem:[#allocation10 + $0x21c] sm:$0xff]
    %v1823 = vld [vmem:[#allocation10 + $0x224] sm:$0xff]
    %v1824 = vld [vmem:[#allocation10 + $0x22c] sm:$0xf]
    %v1825 = vld [vmem:[#allocation10 + $0x230] sm:$0xff]
    %v1826 = vld [vmem:[#allocation10 + $0x238] sm:$0xff]
    %v1827 = vld [vmem:[#allocation10 + $0x240] sm:$0xf]
    %v1828 = vld [vmem:[#allocation10 + $0x244] sm:$0xff]
    %v1829 = vld [vmem:[#allocation10 + $0x24c] sm:$0xff]
    %v1830 = vld [vmem:[#allocation10 + $0x254] sm:$0xf]
    %v1831 = vld [vmem:[#allocation10 + $0x258] sm:$0xff]
    %v1832 = vld [vmem:[#allocation10 + $0x260] sm:$0xff]
    %v1833 = vld [vmem:[#allocation10 + $0x268] sm:$0xf]
    %v1834 = vld [vmem:[#allocation10 + $0x26c] sm:$0xff]
    %v1835 = vld [vmem:[#allocation10 + $0x274] sm:$0xff]
    %v1836 = vld [vmem:[#allocation10 + $0x27c] sm:$0xf]
    %v1837 = vld [vmem:[#allocation10 + $0x280] sm:$0xff]
    %v1838 = vld [vmem:[#allocation10 + $0x288] sm:$0xff]
    %v1839 = vld [vmem:[#allocation10 + $0x290] sm:$0xf]
    %v1840 = vld [vmem:[#allocation10 + $0x294] sm:$0xff]
    %v1841 = vld [vmem:[#allocation10 + $0x29c] sm:$0xff]
    %v1842 = vld [vmem:[#allocation10 + $0x2a4] sm:$0xf]
    %v1843 = vld [vmem:[#allocation10 + $0x2a8] sm:$0xff]
    %v1844 = vld [vmem:[#allocation10 + $0x2b0] sm:$0xff]
    %v1845 = vld [vmem:[#allocation10 + $0x2b8] sm:$0xf]
    %v1846 = vld [vmem:[#allocation10 + $0x2bc] sm:$0xff]
    %v1847 = vld [vmem:[#allocation10 + $0x2c4] sm:$0xff]
    %v1848 = vld [vmem:[#allocation10 + $0x2cc] sm:$0xf]
    %v1849 = vld [vmem:[#allocation10 + $0x2d0] sm:$0xff]
    %v1850 = vld [vmem:[#allocation10 + $0x2d8] sm:$0xff]
    %v1851 = vld [vmem:[#allocation10 + $0x2e0] sm:$0xf]
    %v1852 = vld [vmem:[#allocation10 + $0x2e4] sm:$0xff]
    %v1853 = vld [vmem:[#allocation10 + $0x2ec] sm:$0xff]
    %v1854 = vld [vmem:[#allocation10 + $0x2f4] sm:$0xf]
    %v1855 = vld [vmem:[#allocation10 + $0x2f8] sm:$0xff]
    %v1856 = vld [vmem:[#allocation10 + $0x300] sm:$0xff]
    %v1857 = vld [vmem:[#allocation10 + $0x308] sm:$0xf]
    %v1858 = vld [vmem:[#allocation10 + $0x30c] sm:$0xff]
    %v1859 = vld [vmem:[#allocation10 + $0x314] sm:$0xff]
    %v1860 = vld [vmem:[#allocation10 + $0x31c] sm:$0xf]
    %v1861 = vld [vmem:[#allocation10 + $0x320] sm:$0xff]
    %v1862 = vld [vmem:[#allocation10 + $0x328] sm:$0xff]
    %v1863 = vld [vmem:[#allocation10 + $0x330] sm:$0xf]
    %v1864 = vld [vmem:[#allocation10 + $0x334] sm:$0xff]
    %v1865 = vld [vmem:[#allocation10 + $0x33c] sm:$0xff]
    %v1866 = vld [vmem:[#allocation10 + $0x344] sm:$0xf]
    %v1867 = vld [vmem:[#allocation10 + $0x348] sm:$0xff]
    %v1868 = vld [vmem:[#allocation10 + $0x350] sm:$0xff]
    %v1869 = vld [vmem:[#allocation10 + $0x358] sm:$0xf]
    %v1870 = vld [vmem:[#allocation10 + $0x35c] sm:$0xff]
    %v1871 = vld [vmem:[#allocation10 + $0x364] sm:$0xff]
    %v1872 = vld [vmem:[#allocation10 + $0x36c] sm:$0xf]
    %v1873 = vld [vmem:[#allocation10 + $0x370] sm:$0xff]
    %v1874 = vld [vmem:[#allocation10 + $0x378] sm:$0xff]
    %v1875 = vld [vmem:[#allocation10 + $0x380] sm:$0xf]
    %v1876 = vld [vmem:[#allocation10 + $0x384] sm:$0xff]
    %v1877 = vld [vmem:[#allocation10 + $0x38c] sm:$0xff]
    %v1878 = vld [vmem:[#allocation10 + $0x394] sm:$0xf]
    %v1879 = vld [vmem:[#allocation10 + $0x398] sm:$0xff]
    %v1880 = vld [vmem:[#allocation10 + $0x3a0] sm:$0xff]
    %v1881 = vld [vmem:[#allocation10 + $0x3a8] sm:$0xf]
    %v1882 = vld [vmem:[#allocation10 + $0x3ac] sm:$0xff]
    %v1883 = vld [vmem:[#allocation10 + $0x3b4] sm:$0xff]
    %v1884 = vld [vmem:[#allocation10 + $0x3bc] sm:$0xf]
    %s1885 = scalar_lea.vmem [#allocation10], 960
    %v1886 = vld [vmem:[%s1885] sm:$0xff]
    %v1887 = vld [vmem:[%s1885 + $0x8] sm:$0xff]
    %v1888 = vld [vmem:[%s1885 + $0x10] sm:$0xf]
    %v1889 = vld [vmem:[%s1885 + $0x14] sm:$0xff]
    %v1890 = vld [vmem:[%s1885 + $0x1c] sm:$0xff]
    %v1891 = vld [vmem:[%s1885 + $0x24] sm:$0xf]
    %v1892 = vld [vmem:[%s1885 + $0x28] sm:$0xff]
    %v1893 = vld [vmem:[%s1885 + $0x30] sm:$0xff]
    %v1894 = vld [vmem:[%s1885 + $0x38] sm:$0xf]
    %v1895 = vld [vmem:[%s1885 + $0x3c] sm:$0xff]
    %v1896 = vld [vmem:[%s1885 + $0x44] sm:$0xff]
    %v1897 = vld [vmem:[%s1885 + $0x4c] sm:$0xf]
    %v1898 = vld [vmem:[%s1885 + $0x50] sm:$0xff]
    %v1899 = vld [vmem:[%s1885 + $0x58] sm:$0xff]
    %v1900 = vld [vmem:[%s1885 + $0x60] sm:$0xf]
    %v1901 = vld [vmem:[%s1885 + $0x64] sm:$0xff]
    %v1902 = vld [vmem:[%s1885 + $0x6c] sm:$0xff]
    %v1903 = vld [vmem:[%s1885 + $0x74] sm:$0xf]
    %v1904 = vld [vmem:[%s1885 + $0x78] sm:$0xff]
    %v1905 = vld [vmem:[%s1885 + $0x80] sm:$0xff]
    %v1906 = vld [vmem:[%s1885 + $0x88] sm:$0xf]
    %v1907 = vld [vmem:[%s1885 + $0x8c] sm:$0xff]
    %v1908 = vld [vmem:[%s1885 + $0x94] sm:$0xff]
    %v1909 = vld [vmem:[%s1885 + $0x9c] sm:$0xf]
    %v1910 = vld [vmem:[%s1885 + $0xa0] sm:$0xff]
    %v1911 = vld [vmem:[%s1885 + $0xa8] sm:$0xff]
    %v1912 = vld [vmem:[%s1885 + $0xb0] sm:$0xf]
    %v1913 = vld [vmem:[%s1885 + $0xb4] sm:$0xff]
    %v1914 = vld [vmem:[%s1885 + $0xbc] sm:$0xff]
    %v1915 = vld [vmem:[%s1885 + $0xc4] sm:$0xf]
    %v1916 = vld [vmem:[%s1885 + $0xc8] sm:$0xff]
    %v1917 = vld [vmem:[%s1885 + $0xd0] sm:$0xff]
    %v1918 = vld [vmem:[%s1885 + $0xd8] sm:$0xf]
    %v1919 = vld [vmem:[%s1885 + $0xdc] sm:$0xff]
    %v1920 = vld [vmem:[%s1885 + $0xe4] sm:$0xff]
    %v1921 = vld [vmem:[%s1885 + $0xec] sm:$0xf]
    %v1922 = vld [vmem:[%s1885 + $0xf0] sm:$0xff]
    %v1923 = vld [vmem:[%s1885 + $0xf8] sm:$0xff]
    %v1924 = vld [vmem:[%s1885 + $0x100] sm:$0xf]
    %v1925 = vld [vmem:[%s1885 + $0x104] sm:$0xff]
    %v1926 = vld [vmem:[%s1885 + $0x10c] sm:$0xff]
    %v1927 = vld [vmem:[%s1885 + $0x114] sm:$0xf]
    %v1928 = vld [vmem:[%s1885 + $0x118] sm:$0xff]
    %v1929 = vld [vmem:[%s1885 + $0x120] sm:$0xff]
    %v1930 = vld [vmem:[%s1885 + $0x128] sm:$0xf]
    %v1931 = vld [vmem:[%s1885 + $0x12c] sm:$0xff]
    %v1932 = vld [vmem:[%s1885 + $0x134] sm:$0xff]
    %v1933 = vld [vmem:[%s1885 + $0x13c] sm:$0xf]
    %v1934 = vld [vmem:[%s1885 + $0x140] sm:$0xff]
    %v1935 = vld [vmem:[%s1885 + $0x148] sm:$0xff]
    %v1936 = vld [vmem:[%s1885 + $0x150] sm:$0xf]
    %v1937 = vld [vmem:[%s1885 + $0x154] sm:$0xff]
    %v1938 = vld [vmem:[%s1885 + $0x15c] sm:$0xff]
    %v1939 = vld [vmem:[%s1885 + $0x164] sm:$0xf]
    %v1940 = vld [vmem:[%s1885 + $0x168] sm:$0xff]
    %v1941 = vld [vmem:[%s1885 + $0x170] sm:$0xff]
    %v1942 = vld [vmem:[%s1885 + $0x178] sm:$0xf]
    %v1943 = vld [vmem:[%s1885 + $0x17c] sm:$0xff]
    %v1944 = vld [vmem:[%s1885 + $0x184] sm:$0xff]
    %v1945 = vld [vmem:[%s1885 + $0x18c] sm:$0xf]
    %v1946 = vld [vmem:[%s1885 + $0x190] sm:$0xff]
    %v1947 = vld [vmem:[%s1885 + $0x198] sm:$0xff]
    %v1948 = vld [vmem:[%s1885 + $0x1a0] sm:$0xf]
    %v1949 = vld [vmem:[%s1885 + $0x1a4] sm:$0xff]
    %v1950 = vld [vmem:[%s1885 + $0x1ac] sm:$0xff]
    %v1951 = vld [vmem:[%s1885 + $0x1b4] sm:$0xf]
    %v1952 = vld [vmem:[%s1885 + $0x1b8] sm:$0xff]
    %v1953 = vld [vmem:[%s1885 + $0x1c0] sm:$0xff]
    %v1954 = vld [vmem:[%s1885 + $0x1c8] sm:$0xf]
    %v1955 = vld [vmem:[%s1885 + $0x1cc] sm:$0xff]
    %v1956 = vld [vmem:[%s1885 + $0x1d4] sm:$0xff]
    %v1957 = vld [vmem:[%s1885 + $0x1dc] sm:$0xf]
    %v1958 = vld [vmem:[%s1885 + $0x1e0] sm:$0xff]
    %v1959 = vld [vmem:[%s1885 + $0x1e8] sm:$0xff]
    %v1960 = vld [vmem:[%s1885 + $0x1f0] sm:$0xf]
    %v1961 = vld [vmem:[%s1885 + $0x1f4] sm:$0xff]
    %v1962 = vld [vmem:[%s1885 + $0x1fc] sm:$0xff]
    %v1963 = vld [vmem:[%s1885 + $0x204] sm:$0xf]
    %v1964 = vld [vmem:[%s1885 + $0x208] sm:$0xff]
    %v1965 = vld [vmem:[%s1885 + $0x210] sm:$0xff]
    %v1966 = vld [vmem:[%s1885 + $0x218] sm:$0xf]
    %v1967 = vld [vmem:[%s1885 + $0x21c] sm:$0xff]
    %v1968 = vld [vmem:[%s1885 + $0x224] sm:$0xff]
    %v1969 = vld [vmem:[%s1885 + $0x22c] sm:$0xf]
    %v1970 = vld [vmem:[%s1885 + $0x230] sm:$0xff]
    %v1971 = vld [vmem:[%s1885 + $0x238] sm:$0xff]
    %v1972 = vld [vmem:[%s1885 + $0x240] sm:$0xf]
    %v1973 = vld [vmem:[%s1885 + $0x244] sm:$0xff]
    %v1974 = vld [vmem:[%s1885 + $0x24c] sm:$0xff]
    %v1975 = vld [vmem:[%s1885 + $0x254] sm:$0xf]
    %v1976 = vld [vmem:[%s1885 + $0x258] sm:$0xff]
    %v1977 = vld [vmem:[%s1885 + $0x260] sm:$0xff]
    %v1978 = vld [vmem:[%s1885 + $0x268] sm:$0xf]
    %v1979 = vld [vmem:[%s1885 + $0x26c] sm:$0xff]
    %v1980 = vld [vmem:[%s1885 + $0x274] sm:$0xff]
    %v1981 = vld [vmem:[%s1885 + $0x27c] sm:$0xf]
    %v1982 = vld [vmem:[%s1885 + $0x280] sm:$0xff]
    %v1983 = vld [vmem:[%s1885 + $0x288] sm:$0xff]
    %v1984 = vld [vmem:[%s1885 + $0x290] sm:$0xf]
    %v1985 = vld [vmem:[%s1885 + $0x294] sm:$0xff]
    %v1986 = vld [vmem:[%s1885 + $0x29c] sm:$0xff]
    %v1987 = vld [vmem:[%s1885 + $0x2a4] sm:$0xf]
    %v1988 = vld [vmem:[%s1885 + $0x2a8] sm:$0xff]
    %v1989 = vld [vmem:[%s1885 + $0x2b0] sm:$0xff]
    %v1990 = vld [vmem:[%s1885 + $0x2b8] sm:$0xf]
    %v1991 = vld [vmem:[%s1885 + $0x2bc] sm:$0xff]
    %v1992 = vld [vmem:[%s1885 + $0x2c4] sm:$0xff]
    %v1993 = vld [vmem:[%s1885 + $0x2cc] sm:$0xf]
    %v1994 = vld [vmem:[%s1885 + $0x2d0] sm:$0xff]
    %v1995 = vld [vmem:[%s1885 + $0x2d8] sm:$0xff]
    %v1996 = vld [vmem:[%s1885 + $0x2e0] sm:$0xf]
    %v1997 = vld [vmem:[%s1885 + $0x2e4] sm:$0xff]
    %v1998 = vld [vmem:[%s1885 + $0x2ec] sm:$0xff]
    %v1999 = vld [vmem:[%s1885 + $0x2f4] sm:$0xf]
    %v2000 = vld [vmem:[%s1885 + $0x2f8] sm:$0xff]
    %v2001 = vld [vmem:[%s1885 + $0x300] sm:$0xff]
    %v2002 = vld [vmem:[%s1885 + $0x308] sm:$0xf]
    %v2003 = vld [vmem:[%s1885 + $0x30c] sm:$0xff]
    %v2004 = vld [vmem:[%s1885 + $0x314] sm:$0xff]
    %v2005 = vld [vmem:[%s1885 + $0x31c] sm:$0xf]
    %v2006 = vld [vmem:[%s1885 + $0x320] sm:$0xff]
    %v2007 = vld [vmem:[%s1885 + $0x328] sm:$0xff]
    %v2008 = vld [vmem:[%s1885 + $0x330] sm:$0xf]
    %v2009 = vld [vmem:[%s1885 + $0x334] sm:$0xff]
    %v2010 = vld [vmem:[%s1885 + $0x33c] sm:$0xff]
    %v2011 = vld [vmem:[%s1885 + $0x344] sm:$0xf]
    %v2012 = vld [vmem:[%s1885 + $0x348] sm:$0xff]
    %v2013 = vld [vmem:[%s1885 + $0x350] sm:$0xff]
    %v2014 = vld [vmem:[%s1885 + $0x358] sm:$0xf]
    %v2015 = vld [vmem:[%s1885 + $0x35c] sm:$0xff]
    %v2016 = vld [vmem:[%s1885 + $0x364] sm:$0xff]
    %v2017 = vld [vmem:[%s1885 + $0x36c] sm:$0xf]
    %v2018 = vld [vmem:[%s1885 + $0x370] sm:$0xff]
    %v2019 = vld [vmem:[%s1885 + $0x378] sm:$0xff]
    %v2020 = vld [vmem:[%s1885 + $0x380] sm:$0xf]
    %v2021 = vld [vmem:[%s1885 + $0x384] sm:$0xff]
    %v2022 = vld [vmem:[%s1885 + $0x38c] sm:$0xff]
    %v2023 = vld [vmem:[%s1885 + $0x394] sm:$0xf]
    %v2024 = vld [vmem:[%s1885 + $0x398] sm:$0xff]
    %v2025 = vld [vmem:[%s1885 + $0x3a0] sm:$0xff]
    %v2026 = vld [vmem:[%s1885 + $0x3a8] sm:$0xf]
    %v2027 = vld [vmem:[%s1885 + $0x3ac] sm:$0xff]
    %v2028 = vld [vmem:[%s1885 + $0x3b4] sm:$0xff]
    %v2029 = vld [vmem:[%s1885 + $0x3bc] sm:$0xf]
    %v2031 = vshrl.u32 %v1735, 16
    %v2033 = vshll.u32 %v1735, 16
    %v2035 = vrot.slane %v2033, 1
    %v2036 = vor.u32 %v2031, %v2035
    %v2038 = vshll.u32 %v1738, 16
    %v2040 = vrot.slane %v2038, 1
    %v2041 = vsel %vm174, %v2036, %v2040
    %v2043 = vshrl.u32 %v1736, 16
    %v2045 = vshll.u32 %v1736, 16
    %v2047 = vrot.slane %v2045, 1
    %v2048 = vor.u32 %v2043, %v2047
    %v2050 = vshll.u32 %v1739, 16
    %v2052 = vrot.slane %v2050, 1
    %v2053 = vsel %vm174, %v2048, %v2052
    %v2055 = vshrl.u32 %v1737, 16
    %v2057 = vshll.u32 %v1737, 16
    %v2059 = vrot.slane %v2057, 1
    %v2060 = vor.u32 %v2055, %v2059
    %v2062 = vshll.u32 %v1740, 16
    %v2064 = vrot.slane %v2062, 1
    %v2065 = vsel %vm174, %v2060, %v2064
    %v2066 = vshrl.u32 %v1738, 16
    %v2068 = vor.u32 %v2066, %v2040
    %v2069 = vsel %vm174, %v2068, %v193
    %v2070 = vshrl.u32 %v1739, 16
    %v2072 = vor.u32 %v2070, %v2052
    %v2073 = vsel %vm174, %v2072, %v193
    %v2074 = vshrl.u32 %v1740, 16
    %v2076 = vor.u32 %v2074, %v2064
    %v2077 = vsel %vm174, %v2076, %v193
    %v2228 = vunpack.c.l.b16 %v1886
    %v2229 = vunpack.c.h.b16 %v1886
    %v2230 = vunpack.c.l.b16 %v1887
    %v2231 = vunpack.c.h.b16 %v1887
    %v2232 = vunpack.c.l.b16 %v1888
    %v2233 = vunpack.c.l.b16 %v1889
    %v2234 = vunpack.c.h.b16 %v1889
    %v2235 = vunpack.c.l.b16 %v1890
    %v2236 = vunpack.c.h.b16 %v1890
    %v2237 = vunpack.c.l.b16 %v1891
    %v2238 = vunpack.c.l.b16 %v1892
    %v2239 = vunpack.c.h.b16 %v1892
    %v2240 = vunpack.c.l.b16 %v1893
    %v2241 = vunpack.c.h.b16 %v1893
    %v2242 = vunpack.c.l.b16 %v1894
    %v2243 = vunpack.c.l.b16 %v1895
    %v2244 = vunpack.c.h.b16 %v1895
    %v2245 = vunpack.c.l.b16 %v1896
    %v2246 = vunpack.c.h.b16 %v1896
    %v2247 = vunpack.c.l.b16 %v1897
    %v2248 = vunpack.c.l.b16 %v1898
    %v2249 = vunpack.c.h.b16 %v1898
    %v2250 = vunpack.c.l.b16 %v1899
    %v2251 = vunpack.c.h.b16 %v1899
    %v2252 = vunpack.c.l.b16 %v1900
    %v2253 = vunpack.c.l.b16 %v1901
    %v2254 = vunpack.c.h.b16 %v1901
    %v2255 = vunpack.c.l.b16 %v1902
    %v2256 = vunpack.c.h.b16 %v1902
    %v2257 = vunpack.c.l.b16 %v1903
    %v2258 = vunpack.c.l.b16 %v1904
    %v2259 = vunpack.c.h.b16 %v1904
    %v2260 = vunpack.c.l.b16 %v1905
    %v2261 = vunpack.c.h.b16 %v1905
    %v2262 = vunpack.c.l.b16 %v1906
    %v2263 = vunpack.c.l.b16 %v1907
    %v2264 = vunpack.c.h.b16 %v1907
    %v2265 = vunpack.c.l.b16 %v1908
    %v2266 = vunpack.c.h.b16 %v1908
    %v2267 = vunpack.c.l.b16 %v1909
    %v2268 = vunpack.c.l.b16 %v1910
    %v2269 = vunpack.c.h.b16 %v1910
    %v2270 = vunpack.c.l.b16 %v1911
    %v2271 = vunpack.c.h.b16 %v1911
    %v2272 = vunpack.c.l.b16 %v1912
    %v2273 = vunpack.c.l.b16 %v1913
    %v2274 = vunpack.c.h.b16 %v1913
    %v2275 = vunpack.c.l.b16 %v1914
    %v2276 = vunpack.c.h.b16 %v1914
    %v2277 = vunpack.c.l.b16 %v1915
    %v2278 = vunpack.c.l.b16 %v1916
    %v2279 = vunpack.c.h.b16 %v1916
    %v2280 = vunpack.c.l.b16 %v1917
    %v2281 = vunpack.c.h.b16 %v1917
    %v2282 = vunpack.c.l.b16 %v1918
    %v2283 = vunpack.c.l.b16 %v1919
    %v2284 = vunpack.c.h.b16 %v1919
    %v2285 = vunpack.c.l.b16 %v1920
    %v2286 = vunpack.c.h.b16 %v1920
    %v2287 = vunpack.c.l.b16 %v1921
    %v2288 = vunpack.c.l.b16 %v1922
    %v2289 = vunpack.c.h.b16 %v1922
    %v2290 = vunpack.c.l.b16 %v1923
    %v2291 = vunpack.c.h.b16 %v1923
    %v2292 = vunpack.c.l.b16 %v1924
    %v2293 = vunpack.c.l.b16 %v1925
    %v2294 = vunpack.c.h.b16 %v1925
    %v2295 = vunpack.c.l.b16 %v1926
    %v2296 = vunpack.c.h.b16 %v1926
    %v2297 = vunpack.c.l.b16 %v1927
    %v2298 = vunpack.c.l.b16 %v1928
    %v2299 = vunpack.c.h.b16 %v1928
    %v2300 = vunpack.c.l.b16 %v1929
    %v2301 = vunpack.c.h.b16 %v1929
    %v2302 = vunpack.c.l.b16 %v1930
    %v2303 = vunpack.c.l.b16 %v1931
    %v2304 = vunpack.c.h.b16 %v1931
    %v2305 = vunpack.c.l.b16 %v1932
    %v2306 = vunpack.c.h.b16 %v1932
    %v2307 = vunpack.c.l.b16 %v1933
    %v2308 = vunpack.c.l.b16 %v1934
    %v2309 = vunpack.c.h.b16 %v1934
    %v2310 = vunpack.c.l.b16 %v1935
    %v2311 = vunpack.c.h.b16 %v1935
    %v2312 = vunpack.c.l.b16 %v1936
    %v2313 = vunpack.c.l.b16 %v1937
    %v2314 = vunpack.c.h.b16 %v1937
    %v2315 = vunpack.c.l.b16 %v1938
    %v2316 = vunpack.c.h.b16 %v1938
    %v2317 = vunpack.c.l.b16 %v1939
    %v2318 = vunpack.c.l.b16 %v1940
    %v2319 = vunpack.c.h.b16 %v1940
    %v2320 = vunpack.c.l.b16 %v1941
    %v2321 = vunpack.c.h.b16 %v1941
    %v2322 = vunpack.c.l.b16 %v1942
    %v2323 = vunpack.c.l.b16 %v1943
    %v2324 = vunpack.c.h.b16 %v1943
    %v2325 = vunpack.c.l.b16 %v1944
    %v2326 = vunpack.c.h.b16 %v1944
    %v2327 = vunpack.c.l.b16 %v1945
    %v2328 = vunpack.c.l.b16 %v1946
    %v2329 = vunpack.c.h.b16 %v1946
    %v2330 = vunpack.c.l.b16 %v1947
    %v2331 = vunpack.c.h.b16 %v1947
    %v2332 = vunpack.c.l.b16 %v1948
    %v2333 = vunpack.c.l.b16 %v1949
    %v2334 = vunpack.c.h.b16 %v1949
    %v2335 = vunpack.c.l.b16 %v1950
    %v2336 = vunpack.c.h.b16 %v1950
    %v2337 = vunpack.c.l.b16 %v1951
    %v2338 = vunpack.c.l.b16 %v1952
    %v2339 = vunpack.c.h.b16 %v1952
    %v2340 = vunpack.c.l.b16 %v1953
    %v2341 = vunpack.c.h.b16 %v1953
    %v2342 = vunpack.c.l.b16 %v1954
    %v2343 = vunpack.c.l.b16 %v1955
    %v2344 = vunpack.c.h.b16 %v1955
    %v2345 = vunpack.c.l.b16 %v1956
    %v2346 = vunpack.c.h.b16 %v1956
    %v2347 = vunpack.c.l.b16 %v1957
    %v2348 = vunpack.c.l.b16 %v1958
    %v2349 = vunpack.c.h.b16 %v1958
    %v2350 = vunpack.c.l.b16 %v1959
    %v2351 = vunpack.c.h.b16 %v1959
    %v2352 = vunpack.c.l.b16 %v1960
    %v2353 = vunpack.c.l.b16 %v1961
    %v2354 = vunpack.c.h.b16 %v1961
    %v2355 = vunpack.c.l.b16 %v1962
    %v2356 = vunpack.c.h.b16 %v1962
    %v2357 = vunpack.c.l.b16 %v1963
    %v2358 = vunpack.c.l.b16 %v1964
    %v2359 = vunpack.c.h.b16 %v1964
    %v2360 = vunpack.c.l.b16 %v1965
    %v2361 = vunpack.c.h.b16 %v1965
    %v2362 = vunpack.c.l.b16 %v1966
    %v2363 = vunpack.c.l.b16 %v1967
    %v2364 = vunpack.c.h.b16 %v1967
    %v2365 = vunpack.c.l.b16 %v1968
    %v2366 = vunpack.c.h.b16 %v1968
    %v2367 = vunpack.c.l.b16 %v1969
    %v2368 = vunpack.c.l.b16 %v1970
    %v2369 = vunpack.c.h.b16 %v1970
    %v2370 = vunpack.c.l.b16 %v1971
    %v2371 = vunpack.c.h.b16 %v1971
    %v2372 = vunpack.c.l.b16 %v1972
    %v2373 = vunpack.c.l.b16 %v1973
    %v2374 = vunpack.c.h.b16 %v1973
    %v2375 = vunpack.c.l.b16 %v1974
    %v2376 = vunpack.c.h.b16 %v1974
    %v2377 = vunpack.c.l.b16 %v1975
    %v2378 = vunpack.c.l.b16 %v1976
    %v2379 = vunpack.c.h.b16 %v1976
    %v2380 = vunpack.c.l.b16 %v1977
    %v2381 = vunpack.c.h.b16 %v1977
    %v2382 = vunpack.c.l.b16 %v1978
    %v2383 = vunpack.c.l.b16 %v1979
    %v2384 = vunpack.c.h.b16 %v1979
    %v2385 = vunpack.c.l.b16 %v1980
    %v2386 = vunpack.c.h.b16 %v1980
    %v2387 = vunpack.c.l.b16 %v1981
    %v2388 = vunpack.c.l.b16 %v1982
    %v2389 = vunpack.c.h.b16 %v1982
    %v2390 = vunpack.c.l.b16 %v1983
    %v2391 = vunpack.c.h.b16 %v1983
    %v2392 = vunpack.c.l.b16 %v1984
    %v2393 = vunpack.c.l.b16 %v1985
    %v2394 = vunpack.c.h.b16 %v1985
    %v2395 = vunpack.c.l.b16 %v1986
    %v2396 = vunpack.c.h.b16 %v1986
    %v2397 = vunpack.c.l.b16 %v1987
    %v2398 = vunpack.c.l.b16 %v1988
    %v2399 = vunpack.c.h.b16 %v1988
    %v2400 = vunpack.c.l.b16 %v1989
    %v2401 = vunpack.c.h.b16 %v1989
    %v2402 = vunpack.c.l.b16 %v1990
    %v2403 = vunpack.c.l.b16 %v1991
    %v2404 = vunpack.c.h.b16 %v1991
    %v2405 = vunpack.c.l.b16 %v1992
    %v2406 = vunpack.c.h.b16 %v1992
    %v2407 = vunpack.c.l.b16 %v1993
    %v2408 = vunpack.c.l.b16 %v1994
    %v2409 = vunpack.c.h.b16 %v1994
    %v2410 = vunpack.c.l.b16 %v1995
    %v2411 = vunpack.c.h.b16 %v1995
    %v2412 = vunpack.c.l.b16 %v1996
    %v2413 = vunpack.c.l.b16 %v1997
    %v2414 = vunpack.c.h.b16 %v1997
    %v2415 = vunpack.c.l.b16 %v1998
    %v2416 = vunpack.c.h.b16 %v1998
    %v2417 = vunpack.c.l.b16 %v1999
    %v2418 = vunpack.c.l.b16 %v2000
    %v2419 = vunpack.c.h.b16 %v2000
    %v2420 = vunpack.c.l.b16 %v2001
    %v2421 = vunpack.c.h.b16 %v2001
    %v2422 = vunpack.c.l.b16 %v2002
    %v2423 = vunpack.c.l.b16 %v2003
    %v2424 = vunpack.c.h.b16 %v2003
    %v2425 = vunpack.c.l.b16 %v2004
    %v2426 = vunpack.c.h.b16 %v2004
    %v2427 = vunpack.c.l.b16 %v2005
    %v2428 = vunpack.c.l.b16 %v2006
    %v2429 = vunpack.c.h.b16 %v2006
    %v2430 = vunpack.c.l.b16 %v2007
    %v2431 = vunpack.c.h.b16 %v2007
    %v2432 = vunpack.c.l.b16 %v2008
    %v2433 = vunpack.c.l.b16 %v2009
    %v2434 = vunpack.c.h.b16 %v2009
    %v2435 = vunpack.c.l.b16 %v2010
    %v2436 = vunpack.c.h.b16 %v2010
    %v2437 = vunpack.c.l.b16 %v2011
    %v2438 = vunpack.c.l.b16 %v2012
    %v2439 = vunpack.c.h.b16 %v2012
    %v2440 = vunpack.c.l.b16 %v2013
    %v2441 = vunpack.c.h.b16 %v2013
    %v2442 = vunpack.c.l.b16 %v2014
    %v2443 = vunpack.c.l.b16 %v2015
    %v2444 = vunpack.c.h.b16 %v2015
    %v2445 = vunpack.c.l.b16 %v2016
    %v2446 = vunpack.c.h.b16 %v2016
    %v2447 = vunpack.c.l.b16 %v2017
    %v2448 = vunpack.c.l.b16 %v2018
    %v2449 = vunpack.c.h.b16 %v2018
    %v2450 = vunpack.c.l.b16 %v2019
    %v2451 = vunpack.c.h.b16 %v2019
    %v2452 = vunpack.c.l.b16 %v2020
    %v2453 = vunpack.c.l.b16 %v2021
    %v2454 = vunpack.c.h.b16 %v2021
    %v2455 = vunpack.c.l.b16 %v2022
    %v2456 = vunpack.c.h.b16 %v2022
    %v2457 = vunpack.c.l.b16 %v2023
    %v2458 = vunpack.c.l.b16 %v2024
    %v2459 = vunpack.c.h.b16 %v2024
    %v2460 = vunpack.c.l.b16 %v2025
    %v2461 = vunpack.c.h.b16 %v2025
    %v2462 = vunpack.c.l.b16 %v2026
    %v2463 = vunpack.c.l.b16 %v2027
    %v2464 = vunpack.c.h.b16 %v2027
    %v2465 = vunpack.c.l.b16 %v2028
    %v2466 = vunpack.c.h.b16 %v2028
    %v2467 = vunpack.c.l.b16 %v2029
    %v2468 = vpack.c.b16 %v2233, %v2228
    %v2469 = vpack.c.b16 %v2234, %v2229
    %v2470 = vpack.c.b16 %v2235, %v2230
    %v2471 = vpack.c.b16 %v2236, %v2231
    %v2472 = vpack.c.b16 %v2237, %v2232
    %v2473 = vpack.c.b16 %v2243, %v2238
    %v2474 = vpack.c.b16 %v2244, %v2239
    %v2475 = vpack.c.b16 %v2245, %v2240
    %v2476 = vpack.c.b16 %v2246, %v2241
    %v2477 = vpack.c.b16 %v2247, %v2242
    %v2478 = vpack.c.b16 %v2253, %v2248
    %v2479 = vpack.c.b16 %v2254, %v2249
    %v2480 = vpack.c.b16 %v2255, %v2250
    %v2481 = vpack.c.b16 %v2256, %v2251
    %v2482 = vpack.c.b16 %v2257, %v2252
    %v2483 = vpack.c.b16 %v2263, %v2258
    %v2484 = vpack.c.b16 %v2264, %v2259
    %v2485 = vpack.c.b16 %v2265, %v2260
    %v2486 = vpack.c.b16 %v2266, %v2261
    %v2487 = vpack.c.b16 %v2267, %v2262
    %v2488 = vpack.c.b16 %v2273, %v2268
    %v2489 = vpack.c.b16 %v2274, %v2269
    %v2490 = vpack.c.b16 %v2275, %v2270
    %v2491 = vpack.c.b16 %v2276, %v2271
    %v2492 = vpack.c.b16 %v2277, %v2272
    %v2493 = vpack.c.b16 %v2283, %v2278
    %v2494 = vpack.c.b16 %v2284, %v2279
    %v2495 = vpack.c.b16 %v2285, %v2280
    %v2496 = vpack.c.b16 %v2286, %v2281
    %v2497 = vpack.c.b16 %v2287, %v2282
    %v2498 = vpack.c.b16 %v2293, %v2288
    %v2499 = vpack.c.b16 %v2294, %v2289
    %v2500 = vpack.c.b16 %v2295, %v2290
    %v2501 = vpack.c.b16 %v2296, %v2291
    %v2502 = vpack.c.b16 %v2297, %v2292
    %v2503 = vpack.c.b16 %v2303, %v2298
    %v2504 = vpack.c.b16 %v2304, %v2299
    %v2505 = vpack.c.b16 %v2305, %v2300
    %v2506 = vpack.c.b16 %v2306, %v2301
    %v2507 = vpack.c.b16 %v2307, %v2302
    %v2508 = vpack.c.b16 %v2313, %v2308
    %v2509 = vpack.c.b16 %v2314, %v2309
    %v2510 = vpack.c.b16 %v2315, %v2310
    %v2511 = vpack.c.b16 %v2316, %v2311
    %v2512 = vpack.c.b16 %v2317, %v2312
    %v2513 = vpack.c.b16 %v2323, %v2318
    %v2514 = vpack.c.b16 %v2324, %v2319
    %v2515 = vpack.c.b16 %v2325, %v2320
    %v2516 = vpack.c.b16 %v2326, %v2321
    %v2517 = vpack.c.b16 %v2327, %v2322
    %v2518 = vpack.c.b16 %v2333, %v2328
    %v2519 = vpack.c.b16 %v2334, %v2329
    %v2520 = vpack.c.b16 %v2335, %v2330
    %v2521 = vpack.c.b16 %v2336, %v2331
    %v2522 = vpack.c.b16 %v2337, %v2332
    %v2523 = vpack.c.b16 %v2343, %v2338
    %v2524 = vpack.c.b16 %v2344, %v2339
    %v2525 = vpack.c.b16 %v2345, %v2340
    %v2526 = vpack.c.b16 %v2346, %v2341
    %v2527 = vpack.c.b16 %v2347, %v2342
    %v2528 = vpack.c.b16 %v2353, %v2348
    %v2529 = vpack.c.b16 %v2354, %v2349
    %v2530 = vpack.c.b16 %v2355, %v2350
    %v2531 = vpack.c.b16 %v2356, %v2351
    %v2532 = vpack.c.b16 %v2357, %v2352
    %v2533 = vpack.c.b16 %v2363, %v2358
    %v2534 = vpack.c.b16 %v2364, %v2359
    %v2535 = vpack.c.b16 %v2365, %v2360
    %v2536 = vpack.c.b16 %v2366, %v2361
    %v2537 = vpack.c.b16 %v2367, %v2362
    %v2538 = vpack.c.b16 %v2373, %v2368
    %v2539 = vpack.c.b16 %v2374, %v2369
    %v2540 = vpack.c.b16 %v2375, %v2370
    %v2541 = vpack.c.b16 %v2376, %v2371
    %v2542 = vpack.c.b16 %v2377, %v2372
    %v2543 = vpack.c.b16 %v2383, %v2378
    %v2544 = vpack.c.b16 %v2384, %v2379
    %v2545 = vpack.c.b16 %v2385, %v2380
    %v2546 = vpack.c.b16 %v2386, %v2381
    %v2547 = vpack.c.b16 %v2387, %v2382
    %v2548 = vpack.c.b16 %v2393, %v2388
    %v2549 = vpack.c.b16 %v2394, %v2389
    %v2550 = vpack.c.b16 %v2395, %v2390
    %v2551 = vpack.c.b16 %v2396, %v2391
    %v2552 = vpack.c.b16 %v2397, %v2392
    %v2553 = vpack.c.b16 %v2403, %v2398
    %v2554 = vpack.c.b16 %v2404, %v2399
    %v2555 = vpack.c.b16 %v2405, %v2400
    %v2556 = vpack.c.b16 %v2406, %v2401
    %v2557 = vpack.c.b16 %v2407, %v2402
    %v2558 = vpack.c.b16 %v2413, %v2408
    %v2559 = vpack.c.b16 %v2414, %v2409
    %v2560 = vpack.c.b16 %v2415, %v2410
    %v2561 = vpack.c.b16 %v2416, %v2411
    %v2562 = vpack.c.b16 %v2417, %v2412
    %v2563 = vpack.c.b16 %v2423, %v2418
    %v2564 = vpack.c.b16 %v2424, %v2419
    %v2565 = vpack.c.b16 %v2425, %v2420
    %v2566 = vpack.c.b16 %v2426, %v2421
    %v2567 = vpack.c.b16 %v2427, %v2422
    %v2568 = vpack.c.b16 %v2433, %v2428
    %v2569 = vpack.c.b16 %v2434, %v2429
    %v2570 = vpack.c.b16 %v2435, %v2430
    %v2571 = vpack.c.b16 %v2436, %v2431
    %v2572 = vpack.c.b16 %v2437, %v2432
    %v2573 = vpack.c.b16 %v2443, %v2438
    %v2574 = vpack.c.b16 %v2444, %v2439
    %v2575 = vpack.c.b16 %v2445, %v2440
    %v2576 = vpack.c.b16 %v2446, %v2441
    %v2577 = vpack.c.b16 %v2447, %v2442
    %v2578 = vpack.c.b16 %v2453, %v2448
    %v2579 = vpack.c.b16 %v2454, %v2449
    %v2580 = vpack.c.b16 %v2455, %v2450
    %v2581 = vpack.c.b16 %v2456, %v2451
    %v2582 = vpack.c.b16 %v2457, %v2452
    %v2583 = vpack.c.b16 %v2463, %v2458
    %v2584 = vpack.c.b16 %v2464, %v2459
    %v2585 = vpack.c.b16 %v2465, %v2460
    %v2586 = vpack.c.b16 %v2466, %v2461
    %v2587 = vpack.c.b16 %v2467, %v2462
    %2708 = vmatpush.bf16.msra.mxu0 %v2503
    %2709 = vmatpush.bf16.msra.mxu0 %v2498
    %2710 = vmatpush.bf16.msra.mxu0 %v2493
    %2711 = vmatpush.bf16.msra.mxu0 %v2488
    %2712 = vmatpush.bf16.msra.mxu0 %v2483
    %2713 = vmatpush.bf16.msra.mxu0 %v2478
    %2714 = vmatpush.bf16.msra.mxu0 %v2473
    %2715 = vmatpush.bf16.msra.mxu0 %v2468
    %2716 = vmatmul.bf16.gmra.mxu0 %v2041
    %v2717 = vpop.f32.mrf.mxu0
    %v2718 = vadd.f32 0.0, %v2717
    %v2719 = vpop.f32.mrf.mxu0
    %v2720 = vadd.f32 0.0, %v2719
    %2721 = vmatmul.bf16.gmra.mxu0 %v2069
    %v2722 = vpop.f32.mrf.mxu0
    %v2723 = vadd.f32 0.0, %v2722
    %v2724 = vpop.f32.mrf.mxu0
    %v2725 = vadd.f32 0.0, %v2724
    %2726 = vdwg.mxu0
    %2727 = vmatpush.bf16.msra.mxu0 %v2543
    %2728 = vmatpush.bf16.msra.mxu0 %v2538
    %2729 = vmatpush.bf16.msra.mxu0 %v2533
    %2730 = vmatpush.bf16.msra.mxu0 %v2528
    %2731 = vmatpush.bf16.msra.mxu0 %v2523
    %2732 = vmatpush.bf16.msra.mxu0 %v2518
    %2733 = vmatpush.bf16.msra.mxu0 %v2513
    %2734 = vmatpush.bf16.msra.mxu0 %v2508
    %2735 = vmatmul.bf16.gmra.mxu0 %v2053
    %v2736 = vpop.f32.mrf.mxu0
    %v2737 = vadd.f32 %v2718, %v2736
    %v2738 = vpop.f32.mrf.mxu0
    %v2739 = vadd.f32 %v2720, %v2738
    %2740 = vmatmul.bf16.gmra.mxu0 %v2073
    %v2741 = vpop.f32.mrf.mxu0
    %v2742 = vadd.f32 %v2723, %v2741
    %v2743 = vpop.f32.mrf.mxu0
    %v2744 = vadd.f32 %v2725, %v2743
    %2745 = vdwg.mxu0
    %2746 = vmatpush.bf16.msra.mxu0 %v2583
    %2747 = vmatpush.bf16.msra.mxu0 %v2578
    %2748 = vmatpush.bf16.msra.mxu0 %v2573
    %2749 = vmatpush.bf16.msra.mxu0 %v2568
    %2750 = vmatpush.bf16.msra.mxu0 %v2563
    %2751 = vmatpush.bf16.msra.mxu0 %v2558
    %2752 = vmatpush.bf16.msra.mxu0 %v2553
    %2753 = vmatpush.bf16.msra.mxu0 %v2548
    %2754 = vmatmul.bf16.gmra.mxu0 %v2065
    %v2755 = vpop.f32.mrf.mxu0
    %v2756 = vadd.f32 %v2737, %v2755
    %v2757 = vpop.f32.mrf.mxu0
    %v2758 = vadd.f32 %v2739, %v2757
    %2759 = vmatmul.bf16.gmra.mxu0 %v2077
    %v2760 = vpop.f32.mrf.mxu0
    %v2761 = vadd.f32 %v2742, %v2760
    %v2762 = vpop.f32.mrf.mxu0
    %v2763 = vadd.f32 %v2744, %v2762
    %2764 = vdwg.mxu0
    %2765 = vmatpush.bf16.msra.mxu0 %v2504
    %2766 = vmatpush.bf16.msra.mxu0 %v2499
    %2767 = vmatpush.bf16.msra.mxu0 %v2494
    %2768 = vmatpush.bf16.msra.mxu0 %v2489
    %2769 = vmatpush.bf16.msra.mxu0 %v2484
    %2770 = vmatpush.bf16.msra.mxu0 %v2479
    %2771 = vmatpush.bf16.msra.mxu0 %v2474
    %2772 = vmatpush.bf16.msra.mxu0 %v2469
    %2773 = vmatmul.bf16.gmra.mxu0 %v2041
    %v2774 = vpop.f32.mrf.mxu0
    %v2775 = vadd.f32 0.0, %v2774
    %v2776 = vpop.f32.mrf.mxu0
    %v2777 = vadd.f32 0.0, %v2776
    %2778 = vmatmul.bf16.gmra.mxu0 %v2069
    %v2779 = vpop.f32.mrf.mxu0
    %v2780 = vadd.f32 0.0, %v2779
    %v2781 = vpop.f32.mrf.mxu0
    %v2782 = vadd.f32 0.0, %v2781
    %2783 = vdwg.mxu0
    %2784 = vmatpush.bf16.msra.mxu0 %v2544
    %2785 = vmatpush.bf16.msra.mxu0 %v2539
    %2786 = vmatpush.bf16.msra.mxu0 %v2534
    %2787 = vmatpush.bf16.msra.mxu0 %v2529
    %2788 = vmatpush.bf16.msra.mxu0 %v2524
    %2789 = vmatpush.bf16.msra.mxu0 %v2519
    %2790 = vmatpush.bf16.msra.mxu0 %v2514
    %2791 = vmatpush.bf16.msra.mxu0 %v2509
    %2792 = vmatmul.bf16.gmra.mxu0 %v2053
    %v2793 = vpop.f32.mrf.mxu0
    %v2794 = vadd.f32 %v2775, %v2793
    %v2795 = vpop.f32.mrf.mxu0
    %v2796 = vadd.f32 %v2777, %v2795
    %2797 = vmatmul.bf16.gmra.mxu0 %v2073
    %v2798 = vpop.f32.mrf.mxu0
    %v2799 = vadd.f32 %v2780, %v2798
    %v2800 = vpop.f32.mrf.mxu0
    %v2801 = vadd.f32 %v2782, %v2800
    %2802 = vdwg.mxu0
    %2803 = vmatpush.bf16.msra.mxu0 %v2584
    %2804 = vmatpush.bf16.msra.mxu0 %v2579
    %2805 = vmatpush.bf16.msra.mxu0 %v2574
    %2806 = vmatpush.bf16.msra.mxu0 %v2569
    %2807 = vmatpush.bf16.msra.mxu0 %v2564
    %2808 = vmatpush.bf16.msra.mxu0 %v2559
    %2809 = vmatpush.bf16.msra.mxu0 %v2554
    %2810 = vmatpush.bf16.msra.mxu0 %v2549
    %2811 = vmatmul.bf16.gmra.mxu0 %v2065
    %v2812 = vpop.f32.mrf.mxu0
    %v2813 = vadd.f32 %v2794, %v2812
    %v2814 = vpop.f32.mrf.mxu0
    %v2815 = vadd.f32 %v2796, %v2814
    %2816 = vmatmul.bf16.gmra.mxu0 %v2077
    %v2817 = vpop.f32.mrf.mxu0
    %v2818 = vadd.f32 %v2799, %v2817
    %v2819 = vpop.f32.mrf.mxu0
    %v2820 = vadd.f32 %v2801, %v2819
    %2821 = vdwg.mxu0
    %2822 = vmatpush.bf16.msra.mxu0 %v2505
    %2823 = vmatpush.bf16.msra.mxu0 %v2500
    %2824 = vmatpush.bf16.msra.mxu0 %v2495
    %2825 = vmatpush.bf16.msra.mxu0 %v2490
    %2826 = vmatpush.bf16.msra.mxu0 %v2485
    %2827 = vmatpush.bf16.msra.mxu0 %v2480
    %2828 = vmatpush.bf16.msra.mxu0 %v2475
    %2829 = vmatpush.bf16.msra.mxu0 %v2470
    %2830 = vmatmul.bf16.gmra.mxu0 %v2041
    %v2831 = vpop.f32.mrf.mxu0
    %v2832 = vadd.f32 0.0, %v2831
    %v2833 = vpop.f32.mrf.mxu0
    %v2834 = vadd.f32 0.0, %v2833
    %2835 = vmatmul.bf16.gmra.mxu0 %v2069
    %v2836 = vpop.f32.mrf.mxu0
    %v2837 = vadd.f32 0.0, %v2836
    %v2838 = vpop.f32.mrf.mxu0
    %v2839 = vadd.f32 0.0, %v2838
    %2840 = vdwg.mxu0
    %2841 = vmatpush.bf16.msra.mxu0 %v2545
    %2842 = vmatpush.bf16.msra.mxu0 %v2540
    %2843 = vmatpush.bf16.msra.mxu0 %v2535
    %2844 = vmatpush.bf16.msra.mxu0 %v2530
    %2845 = vmatpush.bf16.msra.mxu0 %v2525
    %2846 = vmatpush.bf16.msra.mxu0 %v2520
    %2847 = vmatpush.bf16.msra.mxu0 %v2515
    %2848 = vmatpush.bf16.msra.mxu0 %v2510
    %2849 = vmatmul.bf16.gmra.mxu0 %v2053
    %v2850 = vpop.f32.mrf.mxu0
    %v2851 = vadd.f32 %v2832, %v2850
    %v2852 = vpop.f32.mrf.mxu0
    %v2853 = vadd.f32 %v2834, %v2852
    %2854 = vmatmul.bf16.gmra.mxu0 %v2073
    %v2855 = vpop.f32.mrf.mxu0
    %v2856 = vadd.f32 %v2837, %v2855
    %v2857 = vpop.f32.mrf.mxu0
    %v2858 = vadd.f32 %v2839, %v2857
    %2859 = vdwg.mxu0
    %2860 = vmatpush.bf16.msra.mxu0 %v2585
    %2861 = vmatpush.bf16.msra.mxu0 %v2580
    %2862 = vmatpush.bf16.msra.mxu0 %v2575
    %2863 = vmatpush.bf16.msra.mxu0 %v2570
    %2864 = vmatpush.bf16.msra.mxu0 %v2565
    %2865 = vmatpush.bf16.msra.mxu0 %v2560
    %2866 = vmatpush.bf16.msra.mxu0 %v2555
    %2867 = vmatpush.bf16.msra.mxu0 %v2550
    %2868 = vmatmul.bf16.gmra.mxu0 %v2065
    %v2869 = vpop.f32.mrf.mxu0
    %v2870 = vadd.f32 %v2851, %v2869
    %v2871 = vpop.f32.mrf.mxu0
    %v2872 = vadd.f32 %v2853, %v2871
    %2873 = vmatmul.bf16.gmra.mxu0 %v2077
    %v2874 = vpop.f32.mrf.mxu0
    %v2875 = vadd.f32 %v2856, %v2874
    %v2876 = vpop.f32.mrf.mxu0
    %v2877 = vadd.f32 %v2858, %v2876
    %2878 = vdwg.mxu0
    %2879 = vmatpush.bf16.msra.mxu0 %v2506
    %2880 = vmatpush.bf16.msra.mxu0 %v2501
    %2881 = vmatpush.bf16.msra.mxu0 %v2496
    %2882 = vmatpush.bf16.msra.mxu0 %v2491
    %2883 = vmatpush.bf16.msra.mxu0 %v2486
    %2884 = vmatpush.bf16.msra.mxu0 %v2481
    %2885 = vmatpush.bf16.msra.mxu0 %v2476
    %2886 = vmatpush.bf16.msra.mxu0 %v2471
    %2887 = vmatmul.bf16.gmra.mxu0 %v2041
    %v2888 = vpop.f32.mrf.mxu0
    %v2889 = vadd.f32 0.0, %v2888
    %v2890 = vpop.f32.mrf.mxu0
    %v2891 = vadd.f32 0.0, %v2890
    %2892 = vmatmul.bf16.gmra.mxu0 %v2069
    %v2893 = vpop.f32.mrf.mxu0
    %v2894 = vadd.f32 0.0, %v2893
    %v2895 = vpop.f32.mrf.mxu0
    %v2896 = vadd.f32 0.0, %v2895
    %2897 = vdwg.mxu0
    %2898 = vmatpush.bf16.msra.mxu0 %v2546
    %2899 = vmatpush.bf16.msra.mxu0 %v2541
    %2900 = vmatpush.bf16.msra.mxu0 %v2536
    %2901 = vmatpush.bf16.msra.mxu0 %v2531
    %2902 = vmatpush.bf16.msra.mxu0 %v2526
    %2903 = vmatpush.bf16.msra.mxu0 %v2521
    %2904 = vmatpush.bf16.msra.mxu0 %v2516
    %2905 = vmatpush.bf16.msra.mxu0 %v2511
    %2906 = vmatmul.bf16.gmra.mxu0 %v2053
    %v2907 = vpop.f32.mrf.mxu0
    %v2908 = vadd.f32 %v2889, %v2907
    %v2909 = vpop.f32.mrf.mxu0
    %v2910 = vadd.f32 %v2891, %v2909
    %2911 = vmatmul.bf16.gmra.mxu0 %v2073
    %v2912 = vpop.f32.mrf.mxu0
    %v2913 = vadd.f32 %v2894, %v2912
    %v2914 = vpop.f32.mrf.mxu0
    %v2915 = vadd.f32 %v2896, %v2914
    %2916 = vdwg.mxu0
    %2917 = vmatpush.bf16.msra.mxu0 %v2586
    %2918 = vmatpush.bf16.msra.mxu0 %v2581
    %2919 = vmatpush.bf16.msra.mxu0 %v2576
    %2920 = vmatpush.bf16.msra.mxu0 %v2571
    %2921 = vmatpush.bf16.msra.mxu0 %v2566
    %2922 = vmatpush.bf16.msra.mxu0 %v2561
    %2923 = vmatpush.bf16.msra.mxu0 %v2556
    %2924 = vmatpush.bf16.msra.mxu0 %v2551
    %2925 = vmatmul.bf16.gmra.mxu0 %v2065
    %v2926 = vpop.f32.mrf.mxu0
    %v2927 = vadd.f32 %v2908, %v2926
    %v2928 = vpop.f32.mrf.mxu0
    %v2929 = vadd.f32 %v2910, %v2928
    %2930 = vmatmul.bf16.gmra.mxu0 %v2077
    %v2931 = vpop.f32.mrf.mxu0
    %v2932 = vadd.f32 %v2913, %v2931
    %v2933 = vpop.f32.mrf.mxu0
    %v2934 = vadd.f32 %v2915, %v2933
    %2935 = vdwg.mxu0
    %2936 = vmatpush.bf16.msra.mxu0 %v2507
    %2937 = vmatpush.bf16.msra.mxu0 %v2502
    %2938 = vmatpush.bf16.msra.mxu0 %v2497
    %2939 = vmatpush.bf16.msra.mxu0 %v2492
    %2940 = vmatpush.bf16.msra.mxu0 %v2487
    %2941 = vmatpush.bf16.msra.mxu0 %v2482
    %2942 = vmatpush.bf16.msra.mxu0 %v2477
    %2943 = vmatpush.bf16.msra.mxu0 %v2472
    %2944 = vmatmul.bf16.gmra.mxu0 %v2041
    %v2945 = vpop.f32.mrf.mxu0
    %v2946 = vadd.f32 0.0, %v2945
    %v2947 = vpop.f32.mrf.mxu0
    %v2948 = vadd.f32 0.0, %v2947
    %2949 = vmatmul.bf16.gmra.mxu0 %v2069
    %v2950 = vpop.f32.mrf.mxu0
    %v2951 = vadd.f32 0.0, %v2950
    %v2952 = vpop.f32.mrf.mxu0
    %v2953 = vadd.f32 0.0, %v2952
    %2954 = vdwg.mxu0
    %2955 = vmatpush.bf16.msra.mxu0 %v2547
    %2956 = vmatpush.bf16.msra.mxu0 %v2542
    %2957 = vmatpush.bf16.msra.mxu0 %v2537
    %2958 = vmatpush.bf16.msra.mxu0 %v2532
    %2959 = vmatpush.bf16.msra.mxu0 %v2527
    %2960 = vmatpush.bf16.msra.mxu0 %v2522
    %2961 = vmatpush.bf16.msra.mxu0 %v2517
    %2962 = vmatpush.bf16.msra.mxu0 %v2512
    %2963 = vmatmul.bf16.gmra.mxu0 %v2053
    %v2964 = vpop.f32.mrf.mxu0
    %v2965 = vadd.f32 %v2946, %v2964
    %v2966 = vpop.f32.mrf.mxu0
    %v2967 = vadd.f32 %v2948, %v2966
    %2968 = vmatmul.bf16.gmra.mxu0 %v2073
    %v2969 = vpop.f32.mrf.mxu0
    %v2970 = vadd.f32 %v2951, %v2969
    %v2971 = vpop.f32.mrf.mxu0
    %v2972 = vadd.f32 %v2953, %v2971
    %2973 = vdwg.mxu0
    %2974 = vmatpush.bf16.msra.mxu0 %v2587
    %2975 = vmatpush.bf16.msra.mxu0 %v2582
    %2976 = vmatpush.bf16.msra.mxu0 %v2577
    %2977 = vmatpush.bf16.msra.mxu0 %v2572
    %2978 = vmatpush.bf16.msra.mxu0 %v2567
    %2979 = vmatpush.bf16.msra.mxu0 %v2562
    %2980 = vmatpush.bf16.msra.mxu0 %v2557
    %2981 = vmatpush.bf16.msra.mxu0 %v2552
    %2982 = vmatmul.bf16.gmra.mxu0 %v2065
    %v2983 = vpop.f32.mrf.mxu0
    %v2984 = vadd.f32 %v2965, %v2983
    %v2985 = vpop.f32.mrf.mxu0
    %v2986 = vadd.f32 %v2967, %v2985
    %2987 = vmatmul.bf16.gmra.mxu0 %v2077
    %v2988 = vpop.f32.mrf.mxu0
    %v2989 = vadd.f32 %v2970, %v2988
    %v2990 = vpop.f32.mrf.mxu0
    %v2991 = vadd.f32 %v2972, %v2990
    %2992 = vdwg.mxu0
    %v3143 = vunpack.c.l.b16 %v1741
    %v3144 = vunpack.c.h.b16 %v1741
    %v3145 = vunpack.c.l.b16 %v1742
    %v3146 = vunpack.c.h.b16 %v1742
    %v3147 = vunpack.c.l.b16 %v1743
    %v3148 = vunpack.c.l.b16 %v1744
    %v3149 = vunpack.c.h.b16 %v1744
    %v3150 = vunpack.c.l.b16 %v1745
    %v3151 = vunpack.c.h.b16 %v1745
    %v3152 = vunpack.c.l.b16 %v1746
    %v3153 = vunpack.c.l.b16 %v1747
    %v3154 = vunpack.c.h.b16 %v1747
    %v3155 = vunpack.c.l.b16 %v1748
    %v3156 = vunpack.c.h.b16 %v1748
    %v3157 = vunpack.c.l.b16 %v1749
    %v3158 = vunpack.c.l.b16 %v1750
    %v3159 = vunpack.c.h.b16 %v1750
    %v3160 = vunpack.c.l.b16 %v1751
    %v3161 = vunpack.c.h.b16 %v1751
    %v3162 = vunpack.c.l.b16 %v1752
    %v3163 = vunpack.c.l.b16 %v1753
    %v3164 = vunpack.c.h.b16 %v1753
    %v3165 = vunpack.c.l.b16 %v1754
    %v3166 = vunpack.c.h.b16 %v1754
    %v3167 = vunpack.c.l.b16 %v1755
    %v3168 = vunpack.c.l.b16 %v1756
    %v3169 = vunpack.c.h.b16 %v1756
    %v3170 = vunpack.c.l.b16 %v1757
    %v3171 = vunpack.c.h.b16 %v1757
    %v3172 = vunpack.c.l.b16 %v1758
    %v3173 = vunpack.c.l.b16 %v1759
    %v3174 = vunpack.c.h.b16 %v1759
    %v3175 = vunpack.c.l.b16 %v1760
    %v3176 = vunpack.c.h.b16 %v1760
    %v3177 = vunpack.c.l.b16 %v1761
    %v3178 = vunpack.c.l.b16 %v1762
    %v3179 = vunpack.c.h.b16 %v1762
    %v3180 = vunpack.c.l.b16 %v1763
    %v3181 = vunpack.c.h.b16 %v1763
    %v3182 = vunpack.c.l.b16 %v1764
    %v3183 = vunpack.c.l.b16 %v1765
    %v3184 = vunpack.c.h.b16 %v1765
    %v3185 = vunpack.c.l.b16 %v1766
    %v3186 = vunpack.c.h.b16 %v1766
    %v3187 = vunpack.c.l.b16 %v1767
    %v3188 = vunpack.c.l.b16 %v1768
    %v3189 = vunpack.c.h.b16 %v1768
    %v3190 = vunpack.c.l.b16 %v1769
    %v3191 = vunpack.c.h.b16 %v1769
    %v3192 = vunpack.c.l.b16 %v1770
    %v3193 = vunpack.c.l.b16 %v1771
    %v3194 = vunpack.c.h.b16 %v1771
    %v3195 = vunpack.c.l.b16 %v1772
    %v3196 = vunpack.c.h.b16 %v1772
    %v3197 = vunpack.c.l.b16 %v1773
    %v3198 = vunpack.c.l.b16 %v1774
    %v3199 = vunpack.c.h.b16 %v1774
    %v3200 = vunpack.c.l.b16 %v1775
    %v3201 = vunpack.c.h.b16 %v1775
    %v3202 = vunpack.c.l.b16 %v1776
    %v3203 = vunpack.c.l.b16 %v1777
    %v3204 = vunpack.c.h.b16 %v1777
    %v3205 = vunpack.c.l.b16 %v1778
    %v3206 = vunpack.c.h.b16 %v1778
    %v3207 = vunpack.c.l.b16 %v1779
    %v3208 = vunpack.c.l.b16 %v1780
    %v3209 = vunpack.c.h.b16 %v1780
    %v3210 = vunpack.c.l.b16 %v1781
    %v3211 = vunpack.c.h.b16 %v1781
    %v3212 = vunpack.c.l.b16 %v1782
    %v3213 = vunpack.c.l.b16 %v1783
    %v3214 = vunpack.c.h.b16 %v1783
    %v3215 = vunpack.c.l.b16 %v1784
    %v3216 = vunpack.c.h.b16 %v1784
    %v3217 = vunpack.c.l.b16 %v1785
    %v3218 = vunpack.c.l.b16 %v1786
    %v3219 = vunpack.c.h.b16 %v1786
    %v3220 = vunpack.c.l.b16 %v1787
    %v3221 = vunpack.c.h.b16 %v1787
    %v3222 = vunpack.c.l.b16 %v1788
    %v3223 = vunpack.c.l.b16 %v1789
    %v3224 = vunpack.c.h.b16 %v1789
    %v3225 = vunpack.c.l.b16 %v1790
    %v3226 = vunpack.c.h.b16 %v1790
    %v3227 = vunpack.c.l.b16 %v1791
    %v3228 = vunpack.c.l.b16 %v1792
    %v3229 = vunpack.c.h.b16 %v1792
    %v3230 = vunpack.c.l.b16 %v1793
    %v3231 = vunpack.c.h.b16 %v1793
    %v3232 = vunpack.c.l.b16 %v1794
    %v3233 = vunpack.c.l.b16 %v1795
    %v3234 = vunpack.c.h.b16 %v1795
    %v3235 = vunpack.c.l.b16 %v1796
    %v3236 = vunpack.c.h.b16 %v1796
    %v3237 = vunpack.c.l.b16 %v1797
    %v3238 = vunpack.c.l.b16 %v1798
    %v3239 = vunpack.c.h.b16 %v1798
    %v3240 = vunpack.c.l.b16 %v1799
    %v3241 = vunpack.c.h.b16 %v1799
    %v3242 = vunpack.c.l.b16 %v1800
    %v3243 = vunpack.c.l.b16 %v1801
    %v3244 = vunpack.c.h.b16 %v1801
    %v3245 = vunpack.c.l.b16 %v1802
    %v3246 = vunpack.c.h.b16 %v1802
    %v3247 = vunpack.c.l.b16 %v1803
    %v3248 = vunpack.c.l.b16 %v1804
    %v3249 = vunpack.c.h.b16 %v1804
    %v3250 = vunpack.c.l.b16 %v1805
    %v3251 = vunpack.c.h.b16 %v1805
    %v3252 = vunpack.c.l.b16 %v1806
    %v3253 = vunpack.c.l.b16 %v1807
    %v3254 = vunpack.c.h.b16 %v1807
    %v3255 = vunpack.c.l.b16 %v1808
    %v3256 = vunpack.c.h.b16 %v1808
    %v3257 = vunpack.c.l.b16 %v1809
    %v3258 = vunpack.c.l.b16 %v1810
    %v3259 = vunpack.c.h.b16 %v1810
    %v3260 = vunpack.c.l.b16 %v1811
    %v3261 = vunpack.c.h.b16 %v1811
    %v3262 = vunpack.c.l.b16 %v1812
    %v3263 = vunpack.c.l.b16 %v1813
    %v3264 = vunpack.c.h.b16 %v1813
    %v3265 = vunpack.c.l.b16 %v1814
    %v3266 = vunpack.c.h.b16 %v1814
    %v3267 = vunpack.c.l.b16 %v1815
    %v3268 = vunpack.c.l.b16 %v1816
    %v3269 = vunpack.c.h.b16 %v1816
    %v3270 = vunpack.c.l.b16 %v1817
    %v3271 = vunpack.c.h.b16 %v1817
    %v3272 = vunpack.c.l.b16 %v1818
    %v3273 = vunpack.c.l.b16 %v1819
    %v3274 = vunpack.c.h.b16 %v1819
    %v3275 = vunpack.c.l.b16 %v1820
    %v3276 = vunpack.c.h.b16 %v1820
    %v3277 = vunpack.c.l.b16 %v1821
    %v3278 = vunpack.c.l.b16 %v1822
    %v3279 = vunpack.c.h.b16 %v1822
    %v3280 = vunpack.c.l.b16 %v1823
    %v3281 = vunpack.c.h.b16 %v1823
    %v3282 = vunpack.c.l.b16 %v1824
    %v3283 = vunpack.c.l.b16 %v1825
    %v3284 = vunpack.c.h.b16 %v1825
    %v3285 = vunpack.c.l.b16 %v1826
    %v3286 = vunpack.c.h.b16 %v1826
    %v3287 = vunpack.c.l.b16 %v1827
    %v3288 = vunpack.c.l.b16 %v1828
    %v3289 = vunpack.c.h.b16 %v1828
    %v3290 = vunpack.c.l.b16 %v1829
    %v3291 = vunpack.c.h.b16 %v1829
    %v3292 = vunpack.c.l.b16 %v1830
    %v3293 = vunpack.c.l.b16 %v1831
    %v3294 = vunpack.c.h.b16 %v1831
    %v3295 = vunpack.c.l.b16 %v1832
    %v3296 = vunpack.c.h.b16 %v1832
    %v3297 = vunpack.c.l.b16 %v1833
    %v3298 = vunpack.c.l.b16 %v1834
    %v3299 = vunpack.c.h.b16 %v1834
    %v3300 = vunpack.c.l.b16 %v1835
    %v3301 = vunpack.c.h.b16 %v1835
    %v3302 = vunpack.c.l.b16 %v1836
    %v3303 = vunpack.c.l.b16 %v1837
    %v3304 = vunpack.c.h.b16 %v1837
    %v3305 = vunpack.c.l.b16 %v1838
    %v3306 = vunpack.c.h.b16 %v1838
    %v3307 = vunpack.c.l.b16 %v1839
    %v3308 = vunpack.c.l.b16 %v1840
    %v3309 = vunpack.c.h.b16 %v1840
    %v3310 = vunpack.c.l.b16 %v1841
    %v3311 = vunpack.c.h.b16 %v1841
    %v3312 = vunpack.c.l.b16 %v1842
    %v3313 = vunpack.c.l.b16 %v1843
    %v3314 = vunpack.c.h.b16 %v1843
    %v3315 = vunpack.c.l.b16 %v1844
    %v3316 = vunpack.c.h.b16 %v1844
    %v3317 = vunpack.c.l.b16 %v1845
    %v3318 = vunpack.c.l.b16 %v1846
    %v3319 = vunpack.c.h.b16 %v1846
    %v3320 = vunpack.c.l.b16 %v1847
    %v3321 = vunpack.c.h.b16 %v1847
    %v3322 = vunpack.c.l.b16 %v1848
    %v3323 = vunpack.c.l.b16 %v1849
    %v3324 = vunpack.c.h.b16 %v1849
    %v3325 = vunpack.c.l.b16 %v1850
    %v3326 = vunpack.c.h.b16 %v1850
    %v3327 = vunpack.c.l.b16 %v1851
    %v3328 = vunpack.c.l.b16 %v1852
    %v3329 = vunpack.c.h.b16 %v1852
    %v3330 = vunpack.c.l.b16 %v1853
    %v3331 = vunpack.c.h.b16 %v1853
    %v3332 = vunpack.c.l.b16 %v1854
    %v3333 = vunpack.c.l.b16 %v1855
    %v3334 = vunpack.c.h.b16 %v1855
    %v3335 = vunpack.c.l.b16 %v1856
    %v3336 = vunpack.c.h.b16 %v1856
    %v3337 = vunpack.c.l.b16 %v1857
    %v3338 = vunpack.c.l.b16 %v1858
    %v3339 = vunpack.c.h.b16 %v1858
    %v3340 = vunpack.c.l.b16 %v1859
    %v3341 = vunpack.c.h.b16 %v1859
    %v3342 = vunpack.c.l.b16 %v1860
    %v3343 = vunpack.c.l.b16 %v1861
    %v3344 = vunpack.c.h.b16 %v1861
    %v3345 = vunpack.c.l.b16 %v1862
    %v3346 = vunpack.c.h.b16 %v1862
    %v3347 = vunpack.c.l.b16 %v1863
    %v3348 = vunpack.c.l.b16 %v1864
    %v3349 = vunpack.c.h.b16 %v1864
    %v3350 = vunpack.c.l.b16 %v1865
    %v3351 = vunpack.c.h.b16 %v1865
    %v3352 = vunpack.c.l.b16 %v1866
    %v3353 = vunpack.c.l.b16 %v1867
    %v3354 = vunpack.c.h.b16 %v1867
    %v3355 = vunpack.c.l.b16 %v1868
    %v3356 = vunpack.c.h.b16 %v1868
    %v3357 = vunpack.c.l.b16 %v1869
    %v3358 = vunpack.c.l.b16 %v1870
    %v3359 = vunpack.c.h.b16 %v1870
    %v3360 = vunpack.c.l.b16 %v1871
    %v3361 = vunpack.c.h.b16 %v1871
    %v3362 = vunpack.c.l.b16 %v1872
    %v3363 = vunpack.c.l.b16 %v1873
    %v3364 = vunpack.c.h.b16 %v1873
    %v3365 = vunpack.c.l.b16 %v1874
    %v3366 = vunpack.c.h.b16 %v1874
    %v3367 = vunpack.c.l.b16 %v1875
    %v3368 = vunpack.c.l.b16 %v1876
    %v3369 = vunpack.c.h.b16 %v1876
    %v3370 = vunpack.c.l.b16 %v1877
    %v3371 = vunpack.c.h.b16 %v1877
    %v3372 = vunpack.c.l.b16 %v1878
    %v3373 = vunpack.c.l.b16 %v1879
    %v3374 = vunpack.c.h.b16 %v1879
    %v3375 = vunpack.c.l.b16 %v1880
    %v3376 = vunpack.c.h.b16 %v1880
    %v3377 = vunpack.c.l.b16 %v1881
    %v3378 = vunpack.c.l.b16 %v1882
    %v3379 = vunpack.c.h.b16 %v1882
    %v3380 = vunpack.c.l.b16 %v1883
    %v3381 = vunpack.c.h.b16 %v1883
    %v3382 = vunpack.c.l.b16 %v1884
    %v3383 = vpack.c.b16 %v3148, %v3143
    %v3384 = vpack.c.b16 %v3149, %v3144
    %v3385 = vpack.c.b16 %v3150, %v3145
    %v3386 = vpack.c.b16 %v3151, %v3146
    %v3387 = vpack.c.b16 %v3152, %v3147
    %v3388 = vpack.c.b16 %v3158, %v3153
    %v3389 = vpack.c.b16 %v3159, %v3154
    %v3390 = vpack.c.b16 %v3160, %v3155
    %v3391 = vpack.c.b16 %v3161, %v3156
    %v3392 = vpack.c.b16 %v3162, %v3157
    %v3393 = vpack.c.b16 %v3168, %v3163
    %v3394 = vpack.c.b16 %v3169, %v3164
    %v3395 = vpack.c.b16 %v3170, %v3165
    %v3396 = vpack.c.b16 %v3171, %v3166
    %v3397 = vpack.c.b16 %v3172, %v3167
    %v3398 = vpack.c.b16 %v3178, %v3173
    %v3399 = vpack.c.b16 %v3179, %v3174
    %v3400 = vpack.c.b16 %v3180, %v3175
    %v3401 = vpack.c.b16 %v3181, %v3176
    %v3402 = vpack.c.b16 %v3182, %v3177
    %v3403 = vpack.c.b16 %v3188, %v3183
    %v3404 = vpack.c.b16 %v3189, %v3184
    %v3405 = vpack.c.b16 %v3190, %v3185
    %v3406 = vpack.c.b16 %v3191, %v3186
    %v3407 = vpack.c.b16 %v3192, %v3187
    %v3408 = vpack.c.b16 %v3198, %v3193
    %v3409 = vpack.c.b16 %v3199, %v3194
    %v3410 = vpack.c.b16 %v3200, %v3195
    %v3411 = vpack.c.b16 %v3201, %v3196
    %v3412 = vpack.c.b16 %v3202, %v3197
    %v3413 = vpack.c.b16 %v3208, %v3203
    %v3414 = vpack.c.b16 %v3209, %v3204
    %v3415 = vpack.c.b16 %v3210, %v3205
    %v3416 = vpack.c.b16 %v3211, %v3206
    %v3417 = vpack.c.b16 %v3212, %v3207
    %v3418 = vpack.c.b16 %v3218, %v3213
    %v3419 = vpack.c.b16 %v3219, %v3214
    %v3420 = vpack.c.b16 %v3220, %v3215
    %v3421 = vpack.c.b16 %v3221, %v3216
    %v3422 = vpack.c.b16 %v3222, %v3217
    %v3423 = vpack.c.b16 %v3228, %v3223
    %v3424 = vpack.c.b16 %v3229, %v3224
    %v3425 = vpack.c.b16 %v3230, %v3225
    %v3426 = vpack.c.b16 %v3231, %v3226
    %v3427 = vpack.c.b16 %v3232, %v3227
    %v3428 = vpack.c.b16 %v3238, %v3233
    %v3429 = vpack.c.b16 %v3239, %v3234
    %v3430 = vpack.c.b16 %v3240, %v3235
    %v3431 = vpack.c.b16 %v3241, %v3236
    %v3432 = vpack.c.b16 %v3242, %v3237
    %v3433 = vpack.c.b16 %v3248, %v3243
    %v3434 = vpack.c.b16 %v3249, %v3244
    %v3435 = vpack.c.b16 %v3250, %v3245
    %v3436 = vpack.c.b16 %v3251, %v3246
    %v3437 = vpack.c.b16 %v3252, %v3247
    %v3438 = vpack.c.b16 %v3258, %v3253
    %v3439 = vpack.c.b16 %v3259, %v3254
    %v3440 = vpack.c.b16 %v3260, %v3255
    %v3441 = vpack.c.b16 %v3261, %v3256
    %v3442 = vpack.c.b16 %v3262, %v3257
    %v3443 = vpack.c.b16 %v3268, %v3263
    %v3444 = vpack.c.b16 %v3269, %v3264
    %v3445 = vpack.c.b16 %v3270, %v3265
    %v3446 = vpack.c.b16 %v3271, %v3266
    %v3447 = vpack.c.b16 %v3272, %v3267
    %v3448 = vpack.c.b16 %v3278, %v3273
    %v3449 = vpack.c.b16 %v3279, %v3274
    %v3450 = vpack.c.b16 %v3280, %v3275
    %v3451 = vpack.c.b16 %v3281, %v3276
    %v3452 = vpack.c.b16 %v3282, %v3277
    %v3453 = vpack.c.b16 %v3288, %v3283
    %v3454 = vpack.c.b16 %v3289, %v3284
    %v3455 = vpack.c.b16 %v3290, %v3285
    %v3456 = vpack.c.b16 %v3291, %v3286
    %v3457 = vpack.c.b16 %v3292, %v3287
    %v3458 = vpack.c.b16 %v3298, %v3293
    %v3459 = vpack.c.b16 %v3299, %v3294
    %v3460 = vpack.c.b16 %v3300, %v3295
    %v3461 = vpack.c.b16 %v3301, %v3296
    %v3462 = vpack.c.b16 %v3302, %v3297
    %v3463 = vpack.c.b16 %v3308, %v3303
    %v3464 = vpack.c.b16 %v3309, %v3304
    %v3465 = vpack.c.b16 %v3310, %v3305
    %v3466 = vpack.c.b16 %v3311, %v3306
    %v3467 = vpack.c.b16 %v3312, %v3307
    %v3468 = vpack.c.b16 %v3318, %v3313
    %v3469 = vpack.c.b16 %v3319, %v3314
    %v3470 = vpack.c.b16 %v3320, %v3315
    %v3471 = vpack.c.b16 %v3321, %v3316
    %v3472 = vpack.c.b16 %v3322, %v3317
    %v3473 = vpack.c.b16 %v3328, %v3323
    %v3474 = vpack.c.b16 %v3329, %v3324
    %v3475 = vpack.c.b16 %v3330, %v3325
    %v3476 = vpack.c.b16 %v3331, %v3326
    %v3477 = vpack.c.b16 %v3332, %v3327
    %v3478 = vpack.c.b16 %v3338, %v3333
    %v3479 = vpack.c.b16 %v3339, %v3334
    %v3480 = vpack.c.b16 %v3340, %v3335
    %v3481 = vpack.c.b16 %v3341, %v3336
    %v3482 = vpack.c.b16 %v3342, %v3337
    %v3483 = vpack.c.b16 %v3348, %v3343
    %v3484 = vpack.c.b16 %v3349, %v3344
    %v3485 = vpack.c.b16 %v3350, %v3345
    %v3486 = vpack.c.b16 %v3351, %v3346
    %v3487 = vpack.c.b16 %v3352, %v3347
    %v3488 = vpack.c.b16 %v3358, %v3353
    %v3489 = vpack.c.b16 %v3359, %v3354
    %v3490 = vpack.c.b16 %v3360, %v3355
    %v3491 = vpack.c.b16 %v3361, %v3356
    %v3492 = vpack.c.b16 %v3362, %v3357
    %v3493 = vpack.c.b16 %v3368, %v3363
    %v3494 = vpack.c.b16 %v3369, %v3364
    %v3495 = vpack.c.b16 %v3370, %v3365
    %v3496 = vpack.c.b16 %v3371, %v3366
    %v3497 = vpack.c.b16 %v3372, %v3367
    %v3498 = vpack.c.b16 %v3378, %v3373
    %v3499 = vpack.c.b16 %v3379, %v3374
    %v3500 = vpack.c.b16 %v3380, %v3375
    %v3501 = vpack.c.b16 %v3381, %v3376
    %v3502 = vpack.c.b16 %v3382, %v3377
    %3623 = vmatpush.bf16.msra.mxu0 %v3418
    %3624 = vmatpush.bf16.msra.mxu0 %v3413
    %3625 = vmatpush.bf16.msra.mxu0 %v3408
    %3626 = vmatpush.bf16.msra.mxu0 %v3403
    %3627 = vmatpush.bf16.msra.mxu0 %v3398
    %3628 = vmatpush.bf16.msra.mxu0 %v3393
    %3629 = vmatpush.bf16.msra.mxu0 %v3388
    %3630 = vmatpush.bf16.msra.mxu0 %v3383
    %3631 = vmatmul.bf16.gmra.mxu0 %v1735
    %v3632 = vpop.f32.mrf.mxu0
    %v3633 = vadd.f32 %v2756, %v3632
    %v3634 = vpop.f32.mrf.mxu0
    %v3635 = vadd.f32 %v2758, %v3634
    %3636 = vmatmul.bf16.gmra.mxu0 %v1738
    %v3637 = vpop.f32.mrf.mxu0
    %v3638 = vadd.f32 %v2761, %v3637
    %v3639 = vpop.f32.mrf.mxu0
    %v3640 = vadd.f32 %v2763, %v3639
    %3641 = vdwg.mxu0
    %3642 = vmatpush.bf16.msra.mxu0 %v3458
    %3643 = vmatpush.bf16.msra.mxu0 %v3453
    %3644 = vmatpush.bf16.msra.mxu0 %v3448
    %3645 = vmatpush.bf16.msra.mxu0 %v3443
    %3646 = vmatpush.bf16.msra.mxu0 %v3438
    %3647 = vmatpush.bf16.msra.mxu0 %v3433
    %3648 = vmatpush.bf16.msra.mxu0 %v3428
    %3649 = vmatpush.bf16.msra.mxu0 %v3423
    %3650 = vmatmul.bf16.gmra.mxu0 %v1736
    %v3651 = vpop.f32.mrf.mxu0
    %v3652 = vadd.f32 %v3633, %v3651
    %v3653 = vpop.f32.mrf.mxu0
    %v3654 = vadd.f32 %v3635, %v3653
    %3655 = vmatmul.bf16.gmra.mxu0 %v1739
    %v3656 = vpop.f32.mrf.mxu0
    %v3657 = vadd.f32 %v3638, %v3656
    %v3658 = vpop.f32.mrf.mxu0
    %v3659 = vadd.f32 %v3640, %v3658
    %3660 = vdwg.mxu0
    %3661 = vmatpush.bf16.msra.mxu0 %v3498
    %3662 = vmatpush.bf16.msra.mxu0 %v3493
    %3663 = vmatpush.bf16.msra.mxu0 %v3488
    %3664 = vmatpush.bf16.msra.mxu0 %v3483
    %3665 = vmatpush.bf16.msra.mxu0 %v3478
    %3666 = vmatpush.bf16.msra.mxu0 %v3473
    %3667 = vmatpush.bf16.msra.mxu0 %v3468
    %3668 = vmatpush.bf16.msra.mxu0 %v3463
    %3669 = vmatmul.bf16.gmra.mxu0 %v1737
    %v3670 = vpop.f32.mrf.mxu0
    %v3671 = vadd.f32 %v3652, %v3670
    %v3672 = vpop.f32.mrf.mxu0
    %v3673 = vadd.f32 %v3654, %v3672
    %3674 = vmatmul.bf16.gmra.mxu0 %v1740
    %v3675 = vpop.f32.mrf.mxu0
    %v3676 = vadd.f32 %v3657, %v3675
    %v3677 = vpop.f32.mrf.mxu0
    %v3678 = vadd.f32 %v3659, %v3677
    %3679 = vdwg.mxu0
    %3680 = vmatpush.bf16.msra.mxu0 %v3419
    %3681 = vmatpush.bf16.msra.mxu0 %v3414
    %3682 = vmatpush.bf16.msra.mxu0 %v3409
    %3683 = vmatpush.bf16.msra.mxu0 %v3404
    %3684 = vmatpush.bf16.msra.mxu0 %v3399
    %3685 = vmatpush.bf16.msra.mxu0 %v3394
    %3686 = vmatpush.bf16.msra.mxu0 %v3389
    %3687 = vmatpush.bf16.msra.mxu0 %v3384
    %3688 = vmatmul.bf16.gmra.mxu0 %v1735
    %v3689 = vpop.f32.mrf.mxu0
    %v3690 = vadd.f32 %v2813, %v3689
    %v3691 = vpop.f32.mrf.mxu0
    %v3692 = vadd.f32 %v2815, %v3691
    %3693 = vmatmul.bf16.gmra.mxu0 %v1738
    %v3694 = vpop.f32.mrf.mxu0
    %v3695 = vadd.f32 %v2818, %v3694
    %v3696 = vpop.f32.mrf.mxu0
    %v3697 = vadd.f32 %v2820, %v3696
    %3698 = vdwg.mxu0
    %3699 = vmatpush.bf16.msra.mxu0 %v3459
    %3700 = vmatpush.bf16.msra.mxu0 %v3454
    %3701 = vmatpush.bf16.msra.mxu0 %v3449
    %3702 = vmatpush.bf16.msra.mxu0 %v3444
    %3703 = vmatpush.bf16.msra.mxu0 %v3439
    %3704 = vmatpush.bf16.msra.mxu0 %v3434
    %3705 = vmatpush.bf16.msra.mxu0 %v3429
    %3706 = vmatpush.bf16.msra.mxu0 %v3424
    %3707 = vmatmul.bf16.gmra.mxu0 %v1736
    %v3708 = vpop.f32.mrf.mxu0
    %v3709 = vadd.f32 %v3690, %v3708
    %v3710 = vpop.f32.mrf.mxu0
    %v3711 = vadd.f32 %v3692, %v3710
    %3712 = vmatmul.bf16.gmra.mxu0 %v1739
    %v3713 = vpop.f32.mrf.mxu0
    %v3714 = vadd.f32 %v3695, %v3713
    %v3715 = vpop.f32.mrf.mxu0
    %v3716 = vadd.f32 %v3697, %v3715
    %3717 = vdwg.mxu0
    %3718 = vmatpush.bf16.msra.mxu0 %v3499
    %3719 = vmatpush.bf16.msra.mxu0 %v3494
    %3720 = vmatpush.bf16.msra.mxu0 %v3489
    %3721 = vmatpush.bf16.msra.mxu0 %v3484
    %3722 = vmatpush.bf16.msra.mxu0 %v3479
    %3723 = vmatpush.bf16.msra.mxu0 %v3474
    %3724 = vmatpush.bf16.msra.mxu0 %v3469
    %3725 = vmatpush.bf16.msra.mxu0 %v3464
    %3726 = vmatmul.bf16.gmra.mxu0 %v1737
    %v3727 = vpop.f32.mrf.mxu0
    %v3728 = vadd.f32 %v3709, %v3727
    %v3729 = vpop.f32.mrf.mxu0
    %v3730 = vadd.f32 %v3711, %v3729
    %3731 = vmatmul.bf16.gmra.mxu0 %v1740
    %v3732 = vpop.f32.mrf.mxu0
    %v3733 = vadd.f32 %v3714, %v3732
    %v3734 = vpop.f32.mrf.mxu0
    %v3735 = vadd.f32 %v3716, %v3734
    %3736 = vdwg.mxu0
    %3737 = vmatpush.bf16.msra.mxu0 %v3420
    %3738 = vmatpush.bf16.msra.mxu0 %v3415
    %3739 = vmatpush.bf16.msra.mxu0 %v3410
    %3740 = vmatpush.bf16.msra.mxu0 %v3405
    %3741 = vmatpush.bf16.msra.mxu0 %v3400
    %3742 = vmatpush.bf16.msra.mxu0 %v3395
    %3743 = vmatpush.bf16.msra.mxu0 %v3390
    %3744 = vmatpush.bf16.msra.mxu0 %v3385
    %3745 = vmatmul.bf16.gmra.mxu0 %v1735
    %v3746 = vpop.f32.mrf.mxu0
    %v3747 = vadd.f32 %v2870, %v3746
    %v3748 = vpop.f32.mrf.mxu0
    %v3749 = vadd.f32 %v2872, %v3748
    %3750 = vmatmul.bf16.gmra.mxu0 %v1738
    %v3751 = vpop.f32.mrf.mxu0
    %v3752 = vadd.f32 %v2875, %v3751
    %v3753 = vpop.f32.mrf.mxu0
    %v3754 = vadd.f32 %v2877, %v3753
    %3755 = vdwg.mxu0
    %3756 = vmatpush.bf16.msra.mxu0 %v3460
    %3757 = vmatpush.bf16.msra.mxu0 %v3455
    %3758 = vmatpush.bf16.msra.mxu0 %v3450
    %3759 = vmatpush.bf16.msra.mxu0 %v3445
    %3760 = vmatpush.bf16.msra.mxu0 %v3440
    %3761 = vmatpush.bf16.msra.mxu0 %v3435
    %3762 = vmatpush.bf16.msra.mxu0 %v3430
    %3763 = vmatpush.bf16.msra.mxu0 %v3425
    %3764 = vmatmul.bf16.gmra.mxu0 %v1736
    %v3765 = vpop.f32.mrf.mxu0
    %v3766 = vadd.f32 %v3747, %v3765
    %v3767 = vpop.f32.mrf.mxu0
    %v3768 = vadd.f32 %v3749, %v3767
    %3769 = vmatmul.bf16.gmra.mxu0 %v1739
    %v3770 = vpop.f32.mrf.mxu0
    %v3771 = vadd.f32 %v3752, %v3770
    %v3772 = vpop.f32.mrf.mxu0
    %v3773 = vadd.f32 %v3754, %v3772
    %3774 = vdwg.mxu0
    %3775 = vmatpush.bf16.msra.mxu0 %v3500
    %3776 = vmatpush.bf16.msra.mxu0 %v3495
    %3777 = vmatpush.bf16.msra.mxu0 %v3490
    %3778 = vmatpush.bf16.msra.mxu0 %v3485
    %3779 = vmatpush.bf16.msra.mxu0 %v3480
    %3780 = vmatpush.bf16.msra.mxu0 %v3475
    %3781 = vmatpush.bf16.msra.mxu0 %v3470
    %3782 = vmatpush.bf16.msra.mxu0 %v3465
    %3783 = vmatmul.bf16.gmra.mxu0 %v1737
    %v3784 = vpop.f32.mrf.mxu0
    %v3785 = vadd.f32 %v3766, %v3784
    %v3786 = vpop.f32.mrf.mxu0
    %v3787 = vadd.f32 %v3768, %v3786
    %3788 = vmatmul.bf16.gmra.mxu0 %v1740
    %v3789 = vpop.f32.mrf.mxu0
    %v3790 = vadd.f32 %v3771, %v3789
    %v3791 = vpop.f32.mrf.mxu0
    %v3792 = vadd.f32 %v3773, %v3791
    %3793 = vdwg.mxu0
    %3794 = vmatpush.bf16.msra.mxu0 %v3421
    %3795 = vmatpush.bf16.msra.mxu0 %v3416
    %3796 = vmatpush.bf16.msra.mxu0 %v3411
    %3797 = vmatpush.bf16.msra.mxu0 %v3406
    %3798 = vmatpush.bf16.msra.mxu0 %v3401
    %3799 = vmatpush.bf16.msra.mxu0 %v3396
    %3800 = vmatpush.bf16.msra.mxu0 %v3391
    %3801 = vmatpush.bf16.msra.mxu0 %v3386
    %3802 = vmatmul.bf16.gmra.mxu0 %v1735
    %v3803 = vpop.f32.mrf.mxu0
    %v3804 = vadd.f32 %v2927, %v3803
    %v3805 = vpop.f32.mrf.mxu0
    %v3806 = vadd.f32 %v2929, %v3805
    %3807 = vmatmul.bf16.gmra.mxu0 %v1738
    %v3808 = vpop.f32.mrf.mxu0
    %v3809 = vadd.f32 %v2932, %v3808
    %v3810 = vpop.f32.mrf.mxu0
    %v3811 = vadd.f32 %v2934, %v3810
    %3812 = vdwg.mxu0
    %3813 = vmatpush.bf16.msra.mxu0 %v3461
    %3814 = vmatpush.bf16.msra.mxu0 %v3456
    %3815 = vmatpush.bf16.msra.mxu0 %v3451
    %3816 = vmatpush.bf16.msra.mxu0 %v3446
    %3817 = vmatpush.bf16.msra.mxu0 %v3441
    %3818 = vmatpush.bf16.msra.mxu0 %v3436
    %3819 = vmatpush.bf16.msra.mxu0 %v3431
    %3820 = vmatpush.bf16.msra.mxu0 %v3426
    %3821 = vmatmul.bf16.gmra.mxu0 %v1736
    %v3822 = vpop.f32.mrf.mxu0
    %v3823 = vadd.f32 %v3804, %v3822
    %v3824 = vpop.f32.mrf.mxu0
    %v3825 = vadd.f32 %v3806, %v3824
    %3826 = vmatmul.bf16.gmra.mxu0 %v1739
    %v3827 = vpop.f32.mrf.mxu0
    %v3828 = vadd.f32 %v3809, %v3827
    %v3829 = vpop.f32.mrf.mxu0
    %v3830 = vadd.f32 %v3811, %v3829
    %3831 = vdwg.mxu0
    %3832 = vmatpush.bf16.msra.mxu0 %v3501
    %3833 = vmatpush.bf16.msra.mxu0 %v3496
    %3834 = vmatpush.bf16.msra.mxu0 %v3491
    %3835 = vmatpush.bf16.msra.mxu0 %v3486
    %3836 = vmatpush.bf16.msra.mxu0 %v3481
    %3837 = vmatpush.bf16.msra.mxu0 %v3476
    %3838 = vmatpush.bf16.msra.mxu0 %v3471
    %3839 = vmatpush.bf16.msra.mxu0 %v3466
    %3840 = vmatmul.bf16.gmra.mxu0 %v1737
    %v3841 = vpop.f32.mrf.mxu0
    %v3842 = vadd.f32 %v3823, %v3841
    %v3843 = vpop.f32.mrf.mxu0
    %v3844 = vadd.f32 %v3825, %v3843
    %3845 = vmatmul.bf16.gmra.mxu0 %v1740
    %v3846 = vpop.f32.mrf.mxu0
    %v3847 = vadd.f32 %v3828, %v3846
    %v3848 = vpop.f32.mrf.mxu0
    %v3849 = vadd.f32 %v3830, %v3848
    %3850 = vdwg.mxu0
    %3851 = vmatpush.bf16.msra.mxu0 %v3422
    %3852 = vmatpush.bf16.msra.mxu0 %v3417
    %3853 = vmatpush.bf16.msra.mxu0 %v3412
    %3854 = vmatpush.bf16.msra.mxu0 %v3407
    %3855 = vmatpush.bf16.msra.mxu0 %v3402
    %3856 = vmatpush.bf16.msra.mxu0 %v3397
    %3857 = vmatpush.bf16.msra.mxu0 %v3392
    %3858 = vmatpush.bf16.msra.mxu0 %v3387
    %3859 = vmatmul.bf16.gmra.mxu0 %v1735
    %v3860 = vpop.f32.mrf.mxu0
    %v3861 = vadd.f32 %v2984, %v3860
    %v3862 = vpop.f32.mrf.mxu0
    %v3863 = vadd.f32 %v2986, %v3862
    %3864 = vmatmul.bf16.gmra.mxu0 %v1738
    %v3865 = vpop.f32.mrf.mxu0
    %v3866 = vadd.f32 %v2989, %v3865
    %v3867 = vpop.f32.mrf.mxu0
    %v3868 = vadd.f32 %v2991, %v3867
    %3869 = vdwg.mxu0
    %3870 = vmatpush.bf16.msra.mxu0 %v3462
    %3871 = vmatpush.bf16.msra.mxu0 %v3457
    %3872 = vmatpush.bf16.msra.mxu0 %v3452
    %3873 = vmatpush.bf16.msra.mxu0 %v3447
    %3874 = vmatpush.bf16.msra.mxu0 %v3442
    %3875 = vmatpush.bf16.msra.mxu0 %v3437
    %3876 = vmatpush.bf16.msra.mxu0 %v3432
    %3877 = vmatpush.bf16.msra.mxu0 %v3427
    %3878 = vmatmul.bf16.gmra.mxu0 %v1736
    %v3879 = vpop.f32.mrf.mxu0
    %v3880 = vadd.f32 %v3861, %v3879
    %v3881 = vpop.f32.mrf.mxu0
    %v3882 = vadd.f32 %v3863, %v3881
    %3883 = vmatmul.bf16.gmra.mxu0 %v1739
    %v3884 = vpop.f32.mrf.mxu0
    %v3885 = vadd.f32 %v3866, %v3884
    %v3886 = vpop.f32.mrf.mxu0
    %v3887 = vadd.f32 %v3868, %v3886
    %3888 = vdwg.mxu0
    %3889 = vmatpush.bf16.msra.mxu0 %v3502
    %3890 = vmatpush.bf16.msra.mxu0 %v3497
    %3891 = vmatpush.bf16.msra.mxu0 %v3492
    %3892 = vmatpush.bf16.msra.mxu0 %v3487
    %3893 = vmatpush.bf16.msra.mxu0 %v3482
    %3894 = vmatpush.bf16.msra.mxu0 %v3477
    %3895 = vmatpush.bf16.msra.mxu0 %v3472
    %3896 = vmatpush.bf16.msra.mxu0 %v3467
    %3897 = vmatmul.bf16.gmra.mxu0 %v1737
    %v3898 = vpop.f32.mrf.mxu0
    %v3899 = vadd.f32 %v3880, %v3898
    %v3900 = vpop.f32.mrf.mxu0
    %v3901 = vadd.f32 %v3882, %v3900
    %3902 = vmatmul.bf16.gmra.mxu0 %v1740
    %v3903 = vpop.f32.mrf.mxu0
    %v3904 = vadd.f32 %v3885, %v3903
    %v3905 = vpop.f32.mrf.mxu0
    %v3906 = vadd.f32 %v3887, %v3905
    %3907 = vdwg.mxu0
    %s3908 = scalar_lea.vmem [#allocation10], 1920
    %v3909 = vld [vmem:[%s3908] sm:$0xff]
    %v3910 = vld [vmem:[%s3908 + $0x8] sm:$0xff]
    %v3911 = vld [vmem:[%s3908 + $0x10] sm:$0xf]
    %v3912 = vld [vmem:[%s3908 + $0x14] sm:$0xff]
    %v3913 = vld [vmem:[%s3908 + $0x1c] sm:$0xff]
    %v3914 = vld [vmem:[%s3908 + $0x24] sm:$0xf]
    %v3915 = vld [vmem:[%s3908 + $0x28] sm:$0xff]
    %v3916 = vld [vmem:[%s3908 + $0x30] sm:$0xff]
    %v3917 = vld [vmem:[%s3908 + $0x38] sm:$0xf]
    %v3918 = vld [vmem:[%s3908 + $0x3c] sm:$0xff]
    %v3919 = vld [vmem:[%s3908 + $0x44] sm:$0xff]
    %v3920 = vld [vmem:[%s3908 + $0x4c] sm:$0xf]
    %v3921 = vld [vmem:[%s3908 + $0x50] sm:$0xff]
    %v3922 = vld [vmem:[%s3908 + $0x58] sm:$0xff]
    %v3923 = vld [vmem:[%s3908 + $0x60] sm:$0xf]
    %v3924 = vld [vmem:[%s3908 + $0x64] sm:$0xff]
    %v3925 = vld [vmem:[%s3908 + $0x6c] sm:$0xff]
    %v3926 = vld [vmem:[%s3908 + $0x74] sm:$0xf]
    %v3927 = vld [vmem:[%s3908 + $0x78] sm:$0xff]
    %v3928 = vld [vmem:[%s3908 + $0x80] sm:$0xff]
    %v3929 = vld [vmem:[%s3908 + $0x88] sm:$0xf]
    %v3930 = vld [vmem:[%s3908 + $0x8c] sm:$0xff]
    %v3931 = vld [vmem:[%s3908 + $0x94] sm:$0xff]
    %v3932 = vld [vmem:[%s3908 + $0x9c] sm:$0xf]
    %v3933 = vld [vmem:[%s3908 + $0xa0] sm:$0xff]
    %v3934 = vld [vmem:[%s3908 + $0xa8] sm:$0xff]
    %v3935 = vld [vmem:[%s3908 + $0xb0] sm:$0xf]
    %v3936 = vld [vmem:[%s3908 + $0xb4] sm:$0xff]
    %v3937 = vld [vmem:[%s3908 + $0xbc] sm:$0xff]
    %v3938 = vld [vmem:[%s3908 + $0xc4] sm:$0xf]
    %v3939 = vld [vmem:[%s3908 + $0xc8] sm:$0xff]
    %v3940 = vld [vmem:[%s3908 + $0xd0] sm:$0xff]
    %v3941 = vld [vmem:[%s3908 + $0xd8] sm:$0xf]
    %v3942 = vld [vmem:[%s3908 + $0xdc] sm:$0xff]
    %v3943 = vld [vmem:[%s3908 + $0xe4] sm:$0xff]
    %v3944 = vld [vmem:[%s3908 + $0xec] sm:$0xf]
    %v3945 = vld [vmem:[%s3908 + $0xf0] sm:$0xff]
    %v3946 = vld [vmem:[%s3908 + $0xf8] sm:$0xff]
    %v3947 = vld [vmem:[%s3908 + $0x100] sm:$0xf]
    %v3948 = vld [vmem:[%s3908 + $0x104] sm:$0xff]
    %v3949 = vld [vmem:[%s3908 + $0x10c] sm:$0xff]
    %v3950 = vld [vmem:[%s3908 + $0x114] sm:$0xf]
    %v3951 = vld [vmem:[%s3908 + $0x118] sm:$0xff]
    %v3952 = vld [vmem:[%s3908 + $0x120] sm:$0xff]
    %v3953 = vld [vmem:[%s3908 + $0x128] sm:$0xf]
    %v3954 = vld [vmem:[%s3908 + $0x12c] sm:$0xff]
    %v3955 = vld [vmem:[%s3908 + $0x134] sm:$0xff]
    %v3956 = vld [vmem:[%s3908 + $0x13c] sm:$0xf]
    %v3957 = vld [vmem:[%s3908 + $0x140] sm:$0xff]
    %v3958 = vld [vmem:[%s3908 + $0x148] sm:$0xff]
    %v3959 = vld [vmem:[%s3908 + $0x150] sm:$0xf]
    %v3960 = vld [vmem:[%s3908 + $0x154] sm:$0xff]
    %v3961 = vld [vmem:[%s3908 + $0x15c] sm:$0xff]
    %v3962 = vld [vmem:[%s3908 + $0x164] sm:$0xf]
    %v3963 = vld [vmem:[%s3908 + $0x168] sm:$0xff]
    %v3964 = vld [vmem:[%s3908 + $0x170] sm:$0xff]
    %v3965 = vld [vmem:[%s3908 + $0x178] sm:$0xf]
    %v3966 = vld [vmem:[%s3908 + $0x17c] sm:$0xff]
    %v3967 = vld [vmem:[%s3908 + $0x184] sm:$0xff]
    %v3968 = vld [vmem:[%s3908 + $0x18c] sm:$0xf]
    %v3969 = vld [vmem:[%s3908 + $0x190] sm:$0xff]
    %v3970 = vld [vmem:[%s3908 + $0x198] sm:$0xff]
    %v3971 = vld [vmem:[%s3908 + $0x1a0] sm:$0xf]
    %v3972 = vld [vmem:[%s3908 + $0x1a4] sm:$0xff]
    %v3973 = vld [vmem:[%s3908 + $0x1ac] sm:$0xff]
    %v3974 = vld [vmem:[%s3908 + $0x1b4] sm:$0xf]
    %v3975 = vld [vmem:[%s3908 + $0x1b8] sm:$0xff]
    %v3976 = vld [vmem:[%s3908 + $0x1c0] sm:$0xff]
    %v3977 = vld [vmem:[%s3908 + $0x1c8] sm:$0xf]
    %v3978 = vld [vmem:[%s3908 + $0x1cc] sm:$0xff]
    %v3979 = vld [vmem:[%s3908 + $0x1d4] sm:$0xff]
    %v3980 = vld [vmem:[%s3908 + $0x1dc] sm:$0xf]
    %v3981 = vld [vmem:[%s3908 + $0x1e0] sm:$0xff]
    %v3982 = vld [vmem:[%s3908 + $0x1e8] sm:$0xff]
    %v3983 = vld [vmem:[%s3908 + $0x1f0] sm:$0xf]
    %v3984 = vld [vmem:[%s3908 + $0x1f4] sm:$0xff]
    %v3985 = vld [vmem:[%s3908 + $0x1fc] sm:$0xff]
    %v3986 = vld [vmem:[%s3908 + $0x204] sm:$0xf]
    %v3987 = vld [vmem:[%s3908 + $0x208] sm:$0xff]
    %v3988 = vld [vmem:[%s3908 + $0x210] sm:$0xff]
    %v3989 = vld [vmem:[%s3908 + $0x218] sm:$0xf]
    %v3990 = vld [vmem:[%s3908 + $0x21c] sm:$0xff]
    %v3991 = vld [vmem:[%s3908 + $0x224] sm:$0xff]
    %v3992 = vld [vmem:[%s3908 + $0x22c] sm:$0xf]
    %v3993 = vld [vmem:[%s3908 + $0x230] sm:$0xff]
    %v3994 = vld [vmem:[%s3908 + $0x238] sm:$0xff]
    %v3995 = vld [vmem:[%s3908 + $0x240] sm:$0xf]
    %v3996 = vld [vmem:[%s3908 + $0x244] sm:$0xff]
    %v3997 = vld [vmem:[%s3908 + $0x24c] sm:$0xff]
    %v3998 = vld [vmem:[%s3908 + $0x254] sm:$0xf]
    %v3999 = vld [vmem:[%s3908 + $0x258] sm:$0xff]
    %v4000 = vld [vmem:[%s3908 + $0x260] sm:$0xff]
    %v4001 = vld [vmem:[%s3908 + $0x268] sm:$0xf]
    %v4002 = vld [vmem:[%s3908 + $0x26c] sm:$0xff]
    %v4003 = vld [vmem:[%s3908 + $0x274] sm:$0xff]
    %v4004 = vld [vmem:[%s3908 + $0x27c] sm:$0xf]
    %v4005 = vld [vmem:[%s3908 + $0x280] sm:$0xff]
    %v4006 = vld [vmem:[%s3908 + $0x288] sm:$0xff]
    %v4007 = vld [vmem:[%s3908 + $0x290] sm:$0xf]
    %v4008 = vld [vmem:[%s3908 + $0x294] sm:$0xff]
    %v4009 = vld [vmem:[%s3908 + $0x29c] sm:$0xff]
    %v4010 = vld [vmem:[%s3908 + $0x2a4] sm:$0xf]
    %v4011 = vld [vmem:[%s3908 + $0x2a8] sm:$0xff]
    %v4012 = vld [vmem:[%s3908 + $0x2b0] sm:$0xff]
    %v4013 = vld [vmem:[%s3908 + $0x2b8] sm:$0xf]
    %v4014 = vld [vmem:[%s3908 + $0x2bc] sm:$0xff]
    %v4015 = vld [vmem:[%s3908 + $0x2c4] sm:$0xff]
    %v4016 = vld [vmem:[%s3908 + $0x2cc] sm:$0xf]
    %v4017 = vld [vmem:[%s3908 + $0x2d0] sm:$0xff]
    %v4018 = vld [vmem:[%s3908 + $0x2d8] sm:$0xff]
    %v4019 = vld [vmem:[%s3908 + $0x2e0] sm:$0xf]
    %v4020 = vld [vmem:[%s3908 + $0x2e4] sm:$0xff]
    %v4021 = vld [vmem:[%s3908 + $0x2ec] sm:$0xff]
    %v4022 = vld [vmem:[%s3908 + $0x2f4] sm:$0xf]
    %v4023 = vld [vmem:[%s3908 + $0x2f8] sm:$0xff]
    %v4024 = vld [vmem:[%s3908 + $0x300] sm:$0xff]
    %v4025 = vld [vmem:[%s3908 + $0x308] sm:$0xf]
    %v4026 = vld [vmem:[%s3908 + $0x30c] sm:$0xff]
    %v4027 = vld [vmem:[%s3908 + $0x314] sm:$0xff]
    %v4028 = vld [vmem:[%s3908 + $0x31c] sm:$0xf]
    %v4029 = vld [vmem:[%s3908 + $0x320] sm:$0xff]
    %v4030 = vld [vmem:[%s3908 + $0x328] sm:$0xff]
    %v4031 = vld [vmem:[%s3908 + $0x330] sm:$0xf]
    %v4032 = vld [vmem:[%s3908 + $0x334] sm:$0xff]
    %v4033 = vld [vmem:[%s3908 + $0x33c] sm:$0xff]
    %v4034 = vld [vmem:[%s3908 + $0x344] sm:$0xf]
    %v4035 = vld [vmem:[%s3908 + $0x348] sm:$0xff]
    %v4036 = vld [vmem:[%s3908 + $0x350] sm:$0xff]
    %v4037 = vld [vmem:[%s3908 + $0x358] sm:$0xf]
    %v4038 = vld [vmem:[%s3908 + $0x35c] sm:$0xff]
    %v4039 = vld [vmem:[%s3908 + $0x364] sm:$0xff]
    %v4040 = vld [vmem:[%s3908 + $0x36c] sm:$0xf]
    %v4041 = vld [vmem:[%s3908 + $0x370] sm:$0xff]
    %v4042 = vld [vmem:[%s3908 + $0x378] sm:$0xff]
    %v4043 = vld [vmem:[%s3908 + $0x380] sm:$0xf]
    %v4044 = vld [vmem:[%s3908 + $0x384] sm:$0xff]
    %v4045 = vld [vmem:[%s3908 + $0x38c] sm:$0xff]
    %v4046 = vld [vmem:[%s3908 + $0x394] sm:$0xf]
    %v4047 = vld [vmem:[%s3908 + $0x398] sm:$0xff]
    %v4048 = vld [vmem:[%s3908 + $0x3a0] sm:$0xff]
    %v4049 = vld [vmem:[%s3908 + $0x3a8] sm:$0xf]
    %v4050 = vld [vmem:[%s3908 + $0x3ac] sm:$0xff]
    %v4051 = vld [vmem:[%s3908 + $0x3b4] sm:$0xff]
    %v4052 = vld [vmem:[%s3908 + $0x3bc] sm:$0xf]
    %v4053 = vrot.slane %v1735, 1
    %v4054 = vrot.slane %v1738, 1
    %v4055 = vsel %vm306, %v4053, %v4054
    %v4056 = vrot.slane %v1736, 1
    %v4057 = vrot.slane %v1739, 1
    %v4058 = vsel %vm306, %v4056, %v4057
    %v4059 = vrot.slane %v1737, 1
    %v4060 = vrot.slane %v1740, 1
    %v4061 = vsel %vm306, %v4059, %v4060
    %v4062 = vsel %vm306, %v4054, %v310
    %v4063 = vsel %vm306, %v4057, %v310
    %v4064 = vsel %vm306, %v4060, %v310
    %v4215 = vunpack.c.l.b16 %v3909
    %v4216 = vunpack.c.h.b16 %v3909
    %v4217 = vunpack.c.l.b16 %v3910
    %v4218 = vunpack.c.h.b16 %v3910
    %v4219 = vunpack.c.l.b16 %v3911
    %v4220 = vunpack.c.l.b16 %v3912
    %v4221 = vunpack.c.h.b16 %v3912
    %v4222 = vunpack.c.l.b16 %v3913
    %v4223 = vunpack.c.h.b16 %v3913
    %v4224 = vunpack.c.l.b16 %v3914
    %v4225 = vunpack.c.l.b16 %v3915
    %v4226 = vunpack.c.h.b16 %v3915
    %v4227 = vunpack.c.l.b16 %v3916
    %v4228 = vunpack.c.h.b16 %v3916
    %v4229 = vunpack.c.l.b16 %v3917
    %v4230 = vunpack.c.l.b16 %v3918
    %v4231 = vunpack.c.h.b16 %v3918
    %v4232 = vunpack.c.l.b16 %v3919
    %v4233 = vunpack.c.h.b16 %v3919
    %v4234 = vunpack.c.l.b16 %v3920
    %v4235 = vunpack.c.l.b16 %v3921
    %v4236 = vunpack.c.h.b16 %v3921
    %v4237 = vunpack.c.l.b16 %v3922
    %v4238 = vunpack.c.h.b16 %v3922
    %v4239 = vunpack.c.l.b16 %v3923
    %v4240 = vunpack.c.l.b16 %v3924
    %v4241 = vunpack.c.h.b16 %v3924
    %v4242 = vunpack.c.l.b16 %v3925
    %v4243 = vunpack.c.h.b16 %v3925
    %v4244 = vunpack.c.l.b16 %v3926
    %v4245 = vunpack.c.l.b16 %v3927
    %v4246 = vunpack.c.h.b16 %v3927
    %v4247 = vunpack.c.l.b16 %v3928
    %v4248 = vunpack.c.h.b16 %v3928
    %v4249 = vunpack.c.l.b16 %v3929
    %v4250 = vunpack.c.l.b16 %v3930
    %v4251 = vunpack.c.h.b16 %v3930
    %v4252 = vunpack.c.l.b16 %v3931
    %v4253 = vunpack.c.h.b16 %v3931
    %v4254 = vunpack.c.l.b16 %v3932
    %v4255 = vunpack.c.l.b16 %v3933
    %v4256 = vunpack.c.h.b16 %v3933
    %v4257 = vunpack.c.l.b16 %v3934
    %v4258 = vunpack.c.h.b16 %v3934
    %v4259 = vunpack.c.l.b16 %v3935
    %v4260 = vunpack.c.l.b16 %v3936
    %v4261 = vunpack.c.h.b16 %v3936
    %v4262 = vunpack.c.l.b16 %v3937
    %v4263 = vunpack.c.h.b16 %v3937
    %v4264 = vunpack.c.l.b16 %v3938
    %v4265 = vunpack.c.l.b16 %v3939
    %v4266 = vunpack.c.h.b16 %v3939
    %v4267 = vunpack.c.l.b16 %v3940
    %v4268 = vunpack.c.h.b16 %v3940
    %v4269 = vunpack.c.l.b16 %v3941
    %v4270 = vunpack.c.l.b16 %v3942
    %v4271 = vunpack.c.h.b16 %v3942
    %v4272 = vunpack.c.l.b16 %v3943
    %v4273 = vunpack.c.h.b16 %v3943
    %v4274 = vunpack.c.l.b16 %v3944
    %v4275 = vunpack.c.l.b16 %v3945
    %v4276 = vunpack.c.h.b16 %v3945
    %v4277 = vunpack.c.l.b16 %v3946
    %v4278 = vunpack.c.h.b16 %v3946
    %v4279 = vunpack.c.l.b16 %v3947
    %v4280 = vunpack.c.l.b16 %v3948
    %v4281 = vunpack.c.h.b16 %v3948
    %v4282 = vunpack.c.l.b16 %v3949
    %v4283 = vunpack.c.h.b16 %v3949
    %v4284 = vunpack.c.l.b16 %v3950
    %v4285 = vunpack.c.l.b16 %v3951
    %v4286 = vunpack.c.h.b16 %v3951
    %v4287 = vunpack.c.l.b16 %v3952
    %v4288 = vunpack.c.h.b16 %v3952
    %v4289 = vunpack.c.l.b16 %v3953
    %v4290 = vunpack.c.l.b16 %v3954
    %v4291 = vunpack.c.h.b16 %v3954
    %v4292 = vunpack.c.l.b16 %v3955
    %v4293 = vunpack.c.h.b16 %v3955
    %v4294 = vunpack.c.l.b16 %v3956
    %v4295 = vunpack.c.l.b16 %v3957
    %v4296 = vunpack.c.h.b16 %v3957
    %v4297 = vunpack.c.l.b16 %v3958
    %v4298 = vunpack.c.h.b16 %v3958
    %v4299 = vunpack.c.l.b16 %v3959
    %v4300 = vunpack.c.l.b16 %v3960
    %v4301 = vunpack.c.h.b16 %v3960
    %v4302 = vunpack.c.l.b16 %v3961
    %v4303 = vunpack.c.h.b16 %v3961
    %v4304 = vunpack.c.l.b16 %v3962
    %v4305 = vunpack.c.l.b16 %v3963
    %v4306 = vunpack.c.h.b16 %v3963
    %v4307 = vunpack.c.l.b16 %v3964
    %v4308 = vunpack.c.h.b16 %v3964
    %v4309 = vunpack.c.l.b16 %v3965
    %v4310 = vunpack.c.l.b16 %v3966
    %v4311 = vunpack.c.h.b16 %v3966
    %v4312 = vunpack.c.l.b16 %v3967
    %v4313 = vunpack.c.h.b16 %v3967
    %v4314 = vunpack.c.l.b16 %v3968
    %v4315 = vunpack.c.l.b16 %v3969
    %v4316 = vunpack.c.h.b16 %v3969
    %v4317 = vunpack.c.l.b16 %v3970
    %v4318 = vunpack.c.h.b16 %v3970
    %v4319 = vunpack.c.l.b16 %v3971
    %v4320 = vunpack.c.l.b16 %v3972
    %v4321 = vunpack.c.h.b16 %v3972
    %v4322 = vunpack.c.l.b16 %v3973
    %v4323 = vunpack.c.h.b16 %v3973
    %v4324 = vunpack.c.l.b16 %v3974
    %v4325 = vunpack.c.l.b16 %v3975
    %v4326 = vunpack.c.h.b16 %v3975
    %v4327 = vunpack.c.l.b16 %v3976
    %v4328 = vunpack.c.h.b16 %v3976
    %v4329 = vunpack.c.l.b16 %v3977
    %v4330 = vunpack.c.l.b16 %v3978
    %v4331 = vunpack.c.h.b16 %v3978
    %v4332 = vunpack.c.l.b16 %v3979
    %v4333 = vunpack.c.h.b16 %v3979
    %v4334 = vunpack.c.l.b16 %v3980
    %v4335 = vunpack.c.l.b16 %v3981
    %v4336 = vunpack.c.h.b16 %v3981
    %v4337 = vunpack.c.l.b16 %v3982
    %v4338 = vunpack.c.h.b16 %v3982
    %v4339 = vunpack.c.l.b16 %v3983
    %v4340 = vunpack.c.l.b16 %v3984
    %v4341 = vunpack.c.h.b16 %v3984
    %v4342 = vunpack.c.l.b16 %v3985
    %v4343 = vunpack.c.h.b16 %v3985
    %v4344 = vunpack.c.l.b16 %v3986
    %v4345 = vunpack.c.l.b16 %v3987
    %v4346 = vunpack.c.h.b16 %v3987
    %v4347 = vunpack.c.l.b16 %v3988
    %v4348 = vunpack.c.h.b16 %v3988
    %v4349 = vunpack.c.l.b16 %v3989
    %v4350 = vunpack.c.l.b16 %v3990
    %v4351 = vunpack.c.h.b16 %v3990
    %v4352 = vunpack.c.l.b16 %v3991
    %v4353 = vunpack.c.h.b16 %v3991
    %v4354 = vunpack.c.l.b16 %v3992
    %v4355 = vunpack.c.l.b16 %v3993
    %v4356 = vunpack.c.h.b16 %v3993
    %v4357 = vunpack.c.l.b16 %v3994
    %v4358 = vunpack.c.h.b16 %v3994
    %v4359 = vunpack.c.l.b16 %v3995
    %v4360 = vunpack.c.l.b16 %v3996
    %v4361 = vunpack.c.h.b16 %v3996
    %v4362 = vunpack.c.l.b16 %v3997
    %v4363 = vunpack.c.h.b16 %v3997
    %v4364 = vunpack.c.l.b16 %v3998
    %v4365 = vunpack.c.l.b16 %v3999
    %v4366 = vunpack.c.h.b16 %v3999
    %v4367 = vunpack.c.l.b16 %v4000
    %v4368 = vunpack.c.h.b16 %v4000
    %v4369 = vunpack.c.l.b16 %v4001
    %v4370 = vunpack.c.l.b16 %v4002
    %v4371 = vunpack.c.h.b16 %v4002
    %v4372 = vunpack.c.l.b16 %v4003
    %v4373 = vunpack.c.h.b16 %v4003
    %v4374 = vunpack.c.l.b16 %v4004
    %v4375 = vunpack.c.l.b16 %v4005
    %v4376 = vunpack.c.h.b16 %v4005
    %v4377 = vunpack.c.l.b16 %v4006
    %v4378 = vunpack.c.h.b16 %v4006
    %v4379 = vunpack.c.l.b16 %v4007
    %v4380 = vunpack.c.l.b16 %v4008
    %v4381 = vunpack.c.h.b16 %v4008
    %v4382 = vunpack.c.l.b16 %v4009
    %v4383 = vunpack.c.h.b16 %v4009
    %v4384 = vunpack.c.l.b16 %v4010
    %v4385 = vunpack.c.l.b16 %v4011
    %v4386 = vunpack.c.h.b16 %v4011
    %v4387 = vunpack.c.l.b16 %v4012
    %v4388 = vunpack.c.h.b16 %v4012
    %v4389 = vunpack.c.l.b16 %v4013
    %v4390 = vunpack.c.l.b16 %v4014
    %v4391 = vunpack.c.h.b16 %v4014
    %v4392 = vunpack.c.l.b16 %v4015
    %v4393 = vunpack.c.h.b16 %v4015
    %v4394 = vunpack.c.l.b16 %v4016
    %v4395 = vunpack.c.l.b16 %v4017
    %v4396 = vunpack.c.h.b16 %v4017
    %v4397 = vunpack.c.l.b16 %v4018
    %v4398 = vunpack.c.h.b16 %v4018
    %v4399 = vunpack.c.l.b16 %v4019
    %v4400 = vunpack.c.l.b16 %v4020
    %v4401 = vunpack.c.h.b16 %v4020
    %v4402 = vunpack.c.l.b16 %v4021
    %v4403 = vunpack.c.h.b16 %v4021
    %v4404 = vunpack.c.l.b16 %v4022
    %v4405 = vunpack.c.l.b16 %v4023
    %v4406 = vunpack.c.h.b16 %v4023
    %v4407 = vunpack.c.l.b16 %v4024
    %v4408 = vunpack.c.h.b16 %v4024
    %v4409 = vunpack.c.l.b16 %v4025
    %v4410 = vunpack.c.l.b16 %v4026
    %v4411 = vunpack.c.h.b16 %v4026
    %v4412 = vunpack.c.l.b16 %v4027
    %v4413 = vunpack.c.h.b16 %v4027
    %v4414 = vunpack.c.l.b16 %v4028
    %v4415 = vunpack.c.l.b16 %v4029
    %v4416 = vunpack.c.h.b16 %v4029
    %v4417 = vunpack.c.l.b16 %v4030
    %v4418 = vunpack.c.h.b16 %v4030
    %v4419 = vunpack.c.l.b16 %v4031
    %v4420 = vunpack.c.l.b16 %v4032
    %v4421 = vunpack.c.h.b16 %v4032
    %v4422 = vunpack.c.l.b16 %v4033
    %v4423 = vunpack.c.h.b16 %v4033
    %v4424 = vunpack.c.l.b16 %v4034
    %v4425 = vunpack.c.l.b16 %v4035
    %v4426 = vunpack.c.h.b16 %v4035
    %v4427 = vunpack.c.l.b16 %v4036
    %v4428 = vunpack.c.h.b16 %v4036
    %v4429 = vunpack.c.l.b16 %v4037
    %v4430 = vunpack.c.l.b16 %v4038
    %v4431 = vunpack.c.h.b16 %v4038
    %v4432 = vunpack.c.l.b16 %v4039
    %v4433 = vunpack.c.h.b16 %v4039
    %v4434 = vunpack.c.l.b16 %v4040
    %v4435 = vunpack.c.l.b16 %v4041
    %v4436 = vunpack.c.h.b16 %v4041
    %v4437 = vunpack.c.l.b16 %v4042
    %v4438 = vunpack.c.h.b16 %v4042
    %v4439 = vunpack.c.l.b16 %v4043
    %v4440 = vunpack.c.l.b16 %v4044
    %v4441 = vunpack.c.h.b16 %v4044
    %v4442 = vunpack.c.l.b16 %v4045
    %v4443 = vunpack.c.h.b16 %v4045
    %v4444 = vunpack.c.l.b16 %v4046
    %v4445 = vunpack.c.l.b16 %v4047
    %v4446 = vunpack.c.h.b16 %v4047
    %v4447 = vunpack.c.l.b16 %v4048
    %v4448 = vunpack.c.h.b16 %v4048
    %v4449 = vunpack.c.l.b16 %v4049
    %v4450 = vunpack.c.l.b16 %v4050
    %v4451 = vunpack.c.h.b16 %v4050
    %v4452 = vunpack.c.l.b16 %v4051
    %v4453 = vunpack.c.h.b16 %v4051
    %v4454 = vunpack.c.l.b16 %v4052
    %v4455 = vpack.c.b16 %v4220, %v4215
    %v4456 = vpack.c.b16 %v4221, %v4216
    %v4457 = vpack.c.b16 %v4222, %v4217
    %v4458 = vpack.c.b16 %v4223, %v4218
    %v4459 = vpack.c.b16 %v4224, %v4219
    %v4460 = vpack.c.b16 %v4230, %v4225
    %v4461 = vpack.c.b16 %v4231, %v4226
    %v4462 = vpack.c.b16 %v4232, %v4227
    %v4463 = vpack.c.b16 %v4233, %v4228
    %v4464 = vpack.c.b16 %v4234, %v4229
    %v4465 = vpack.c.b16 %v4240, %v4235
    %v4466 = vpack.c.b16 %v4241, %v4236
    %v4467 = vpack.c.b16 %v4242, %v4237
    %v4468 = vpack.c.b16 %v4243, %v4238
    %v4469 = vpack.c.b16 %v4244, %v4239
    %v4470 = vpack.c.b16 %v4250, %v4245
    %v4471 = vpack.c.b16 %v4251, %v4246
    %v4472 = vpack.c.b16 %v4252, %v4247
    %v4473 = vpack.c.b16 %v4253, %v4248
    %v4474 = vpack.c.b16 %v4254, %v4249
    %v4475 = vpack.c.b16 %v4260, %v4255
    %v4476 = vpack.c.b16 %v4261, %v4256
    %v4477 = vpack.c.b16 %v4262, %v4257
    %v4478 = vpack.c.b16 %v4263, %v4258
    %v4479 = vpack.c.b16 %v4264, %v4259
    %v4480 = vpack.c.b16 %v4270, %v4265
    %v4481 = vpack.c.b16 %v4271, %v4266
    %v4482 = vpack.c.b16 %v4272, %v4267
    %v4483 = vpack.c.b16 %v4273, %v4268
    %v4484 = vpack.c.b16 %v4274, %v4269
    %v4485 = vpack.c.b16 %v4280, %v4275
    %v4486 = vpack.c.b16 %v4281, %v4276
    %v4487 = vpack.c.b16 %v4282, %v4277
    %v4488 = vpack.c.b16 %v4283, %v4278
    %v4489 = vpack.c.b16 %v4284, %v4279
    %v4490 = vpack.c.b16 %v4290, %v4285
    %v4491 = vpack.c.b16 %v4291, %v4286
    %v4492 = vpack.c.b16 %v4292, %v4287
    %v4493 = vpack.c.b16 %v4293, %v4288
    %v4494 = vpack.c.b16 %v4294, %v4289
    %v4495 = vpack.c.b16 %v4300, %v4295
    %v4496 = vpack.c.b16 %v4301, %v4296
    %v4497 = vpack.c.b16 %v4302, %v4297
    %v4498 = vpack.c.b16 %v4303, %v4298
    %v4499 = vpack.c.b16 %v4304, %v4299
    %v4500 = vpack.c.b16 %v4310, %v4305
    %v4501 = vpack.c.b16 %v4311, %v4306
    %v4502 = vpack.c.b16 %v4312, %v4307
    %v4503 = vpack.c.b16 %v4313, %v4308
    %v4504 = vpack.c.b16 %v4314, %v4309
    %v4505 = vpack.c.b16 %v4320, %v4315
    %v4506 = vpack.c.b16 %v4321, %v4316
    %v4507 = vpack.c.b16 %v4322, %v4317
    %v4508 = vpack.c.b16 %v4323, %v4318
    %v4509 = vpack.c.b16 %v4324, %v4319
    %v4510 = vpack.c.b16 %v4330, %v4325
    %v4511 = vpack.c.b16 %v4331, %v4326
    %v4512 = vpack.c.b16 %v4332, %v4327
    %v4513 = vpack.c.b16 %v4333, %v4328
    %v4514 = vpack.c.b16 %v4334, %v4329
    %v4515 = vpack.c.b16 %v4340, %v4335
    %v4516 = vpack.c.b16 %v4341, %v4336
    %v4517 = vpack.c.b16 %v4342, %v4337
    %v4518 = vpack.c.b16 %v4343, %v4338
    %v4519 = vpack.c.b16 %v4344, %v4339
    %v4520 = vpack.c.b16 %v4350, %v4345
    %v4521 = vpack.c.b16 %v4351, %v4346
    %v4522 = vpack.c.b16 %v4352, %v4347
    %v4523 = vpack.c.b16 %v4353, %v4348
    %v4524 = vpack.c.b16 %v4354, %v4349
    %v4525 = vpack.c.b16 %v4360, %v4355
    %v4526 = vpack.c.b16 %v4361, %v4356
    %v4527 = vpack.c.b16 %v4362, %v4357
    %v4528 = vpack.c.b16 %v4363, %v4358
    %v4529 = vpack.c.b16 %v4364, %v4359
    %v4530 = vpack.c.b16 %v4370, %v4365
    %v4531 = vpack.c.b16 %v4371, %v4366
    %v4532 = vpack.c.b16 %v4372, %v4367
    %v4533 = vpack.c.b16 %v4373, %v4368
    %v4534 = vpack.c.b16 %v4374, %v4369
    %v4535 = vpack.c.b16 %v4380, %v4375
    %v4536 = vpack.c.b16 %v4381, %v4376
    %v4537 = vpack.c.b16 %v4382, %v4377
    %v4538 = vpack.c.b16 %v4383, %v4378
    %v4539 = vpack.c.b16 %v4384, %v4379
    %v4540 = vpack.c.b16 %v4390, %v4385
    %v4541 = vpack.c.b16 %v4391, %v4386
    %v4542 = vpack.c.b16 %v4392, %v4387
    %v4543 = vpack.c.b16 %v4393, %v4388
    %v4544 = vpack.c.b16 %v4394, %v4389
    %v4545 = vpack.c.b16 %v4400, %v4395
    %v4546 = vpack.c.b16 %v4401, %v4396
    %v4547 = vpack.c.b16 %v4402, %v4397
    %v4548 = vpack.c.b16 %v4403, %v4398
    %v4549 = vpack.c.b16 %v4404, %v4399
    %v4550 = vpack.c.b16 %v4410, %v4405
    %v4551 = vpack.c.b16 %v4411, %v4406
    %v4552 = vpack.c.b16 %v4412, %v4407
    %v4553 = vpack.c.b16 %v4413, %v4408
    %v4554 = vpack.c.b16 %v4414, %v4409
    %v4555 = vpack.c.b16 %v4420, %v4415
    %v4556 = vpack.c.b16 %v4421, %v4416
    %v4557 = vpack.c.b16 %v4422, %v4417
    %v4558 = vpack.c.b16 %v4423, %v4418
    %v4559 = vpack.c.b16 %v4424, %v4419
    %v4560 = vpack.c.b16 %v4430, %v4425
    %v4561 = vpack.c.b16 %v4431, %v4426
    %v4562 = vpack.c.b16 %v4432, %v4427
    %v4563 = vpack.c.b16 %v4433, %v4428
    %v4564 = vpack.c.b16 %v4434, %v4429
    %v4565 = vpack.c.b16 %v4440, %v4435
    %v4566 = vpack.c.b16 %v4441, %v4436
    %v4567 = vpack.c.b16 %v4442, %v4437
    %v4568 = vpack.c.b16 %v4443, %v4438
    %v4569 = vpack.c.b16 %v4444, %v4439
    %v4570 = vpack.c.b16 %v4450, %v4445
    %v4571 = vpack.c.b16 %v4451, %v4446
    %v4572 = vpack.c.b16 %v4452, %v4447
    %v4573 = vpack.c.b16 %v4453, %v4448
    %v4574 = vpack.c.b16 %v4454, %v4449
    %4695 = vmatpush.bf16.msra.mxu0 %v4490
    %4696 = vmatpush.bf16.msra.mxu0 %v4485
    %4697 = vmatpush.bf16.msra.mxu0 %v4480
    %4698 = vmatpush.bf16.msra.mxu0 %v4475
    %4699 = vmatpush.bf16.msra.mxu0 %v4470
    %4700 = vmatpush.bf16.msra.mxu0 %v4465
    %4701 = vmatpush.bf16.msra.mxu0 %v4460
    %4702 = vmatpush.bf16.msra.mxu0 %v4455
    %4703 = vmatmul.bf16.gmra.mxu0 %v4055
    %v4704 = vpop.f32.mrf.mxu0
    %v4705 = vadd.f32 0.0, %v4704
    %v4706 = vpop.f32.mrf.mxu0
    %v4707 = vadd.f32 0.0, %v4706
    %4708 = vmatmul.bf16.gmra.mxu0 %v4062
    %v4709 = vpop.f32.mrf.mxu0
    %v4710 = vadd.f32 0.0, %v4709
    %v4711 = vpop.f32.mrf.mxu0
    %v4712 = vadd.f32 0.0, %v4711
    %4713 = vdwg.mxu0
    %4714 = vmatpush.bf16.msra.mxu0 %v4530
    %4715 = vmatpush.bf16.msra.mxu0 %v4525
    %4716 = vmatpush.bf16.msra.mxu0 %v4520
    %4717 = vmatpush.bf16.msra.mxu0 %v4515
    %4718 = vmatpush.bf16.msra.mxu0 %v4510
    %4719 = vmatpush.bf16.msra.mxu0 %v4505
    %4720 = vmatpush.bf16.msra.mxu0 %v4500
    %4721 = vmatpush.bf16.msra.mxu0 %v4495
    %4722 = vmatmul.bf16.gmra.mxu0 %v4058
    %v4723 = vpop.f32.mrf.mxu0
    %v4724 = vadd.f32 %v4705, %v4723
    %v4725 = vpop.f32.mrf.mxu0
    %v4726 = vadd.f32 %v4707, %v4725
    %4727 = vmatmul.bf16.gmra.mxu0 %v4063
    %v4728 = vpop.f32.mrf.mxu0
    %v4729 = vadd.f32 %v4710, %v4728
    %v4730 = vpop.f32.mrf.mxu0
    %v4731 = vadd.f32 %v4712, %v4730
    %4732 = vdwg.mxu0
    %4733 = vmatpush.bf16.msra.mxu0 %v4570
    %4734 = vmatpush.bf16.msra.mxu0 %v4565
    %4735 = vmatpush.bf16.msra.mxu0 %v4560
    %4736 = vmatpush.bf16.msra.mxu0 %v4555
    %4737 = vmatpush.bf16.msra.mxu0 %v4550
    %4738 = vmatpush.bf16.msra.mxu0 %v4545
    %4739 = vmatpush.bf16.msra.mxu0 %v4540
    %4740 = vmatpush.bf16.msra.mxu0 %v4535
    %4741 = vmatmul.bf16.gmra.mxu0 %v4061
    %v4742 = vpop.f32.mrf.mxu0
    %v4743 = vadd.f32 %v4724, %v4742
    %v4744 = vpop.f32.mrf.mxu0
    %v4745 = vadd.f32 %v4726, %v4744
    %4746 = vmatmul.bf16.gmra.mxu0 %v4064
    %v4747 = vpop.f32.mrf.mxu0
    %v4748 = vadd.f32 %v4729, %v4747
    %v4749 = vpop.f32.mrf.mxu0
    %v4750 = vadd.f32 %v4731, %v4749
    %4751 = vdwg.mxu0
    %4752 = vmatpush.bf16.msra.mxu0 %v4491
    %4753 = vmatpush.bf16.msra.mxu0 %v4486
    %4754 = vmatpush.bf16.msra.mxu0 %v4481
    %4755 = vmatpush.bf16.msra.mxu0 %v4476
    %4756 = vmatpush.bf16.msra.mxu0 %v4471
    %4757 = vmatpush.bf16.msra.mxu0 %v4466
    %4758 = vmatpush.bf16.msra.mxu0 %v4461
    %4759 = vmatpush.bf16.msra.mxu0 %v4456
    %4760 = vmatmul.bf16.gmra.mxu0 %v4055
    %v4761 = vpop.f32.mrf.mxu0
    %v4762 = vadd.f32 0.0, %v4761
    %v4763 = vpop.f32.mrf.mxu0
    %v4764 = vadd.f32 0.0, %v4763
    %4765 = vmatmul.bf16.gmra.mxu0 %v4062
    %v4766 = vpop.f32.mrf.mxu0
    %v4767 = vadd.f32 0.0, %v4766
    %v4768 = vpop.f32.mrf.mxu0
    %v4769 = vadd.f32 0.0, %v4768
    %4770 = vdwg.mxu0
    %4771 = vmatpush.bf16.msra.mxu0 %v4531
    %4772 = vmatpush.bf16.msra.mxu0 %v4526
    %4773 = vmatpush.bf16.msra.mxu0 %v4521
    %4774 = vmatpush.bf16.msra.mxu0 %v4516
    %4775 = vmatpush.bf16.msra.mxu0 %v4511
    %4776 = vmatpush.bf16.msra.mxu0 %v4506
    %4777 = vmatpush.bf16.msra.mxu0 %v4501
    %4778 = vmatpush.bf16.msra.mxu0 %v4496
    %4779 = vmatmul.bf16.gmra.mxu0 %v4058
    %v4780 = vpop.f32.mrf.mxu0
    %v4781 = vadd.f32 %v4762, %v4780
    %v4782 = vpop.f32.mrf.mxu0
    %v4783 = vadd.f32 %v4764, %v4782
    %4784 = vmatmul.bf16.gmra.mxu0 %v4063
    %v4785 = vpop.f32.mrf.mxu0
    %v4786 = vadd.f32 %v4767, %v4785
    %v4787 = vpop.f32.mrf.mxu0
    %v4788 = vadd.f32 %v4769, %v4787
    %4789 = vdwg.mxu0
    %4790 = vmatpush.bf16.msra.mxu0 %v4571
    %4791 = vmatpush.bf16.msra.mxu0 %v4566
    %4792 = vmatpush.bf16.msra.mxu0 %v4561
    %4793 = vmatpush.bf16.msra.mxu0 %v4556
    %4794 = vmatpush.bf16.msra.mxu0 %v4551
    %4795 = vmatpush.bf16.msra.mxu0 %v4546
    %4796 = vmatpush.bf16.msra.mxu0 %v4541
    %4797 = vmatpush.bf16.msra.mxu0 %v4536
    %4798 = vmatmul.bf16.gmra.mxu0 %v4061
    %v4799 = vpop.f32.mrf.mxu0
    %v4800 = vadd.f32 %v4781, %v4799
    %v4801 = vpop.f32.mrf.mxu0
    %v4802 = vadd.f32 %v4783, %v4801
    %4803 = vmatmul.bf16.gmra.mxu0 %v4064
    %v4804 = vpop.f32.mrf.mxu0
    %v4805 = vadd.f32 %v4786, %v4804
    %v4806 = vpop.f32.mrf.mxu0
    %v4807 = vadd.f32 %v4788, %v4806
    %4808 = vdwg.mxu0
    %4809 = vmatpush.bf16.msra.mxu0 %v4492
    %4810 = vmatpush.bf16.msra.mxu0 %v4487
    %4811 = vmatpush.bf16.msra.mxu0 %v4482
    %4812 = vmatpush.bf16.msra.mxu0 %v4477
    %4813 = vmatpush.bf16.msra.mxu0 %v4472
    %4814 = vmatpush.bf16.msra.mxu0 %v4467
    %4815 = vmatpush.bf16.msra.mxu0 %v4462
    %4816 = vmatpush.bf16.msra.mxu0 %v4457
    %4817 = vmatmul.bf16.gmra.mxu0 %v4055
    %v4818 = vpop.f32.mrf.mxu0
    %v4819 = vadd.f32 0.0, %v4818
    %v4820 = vpop.f32.mrf.mxu0
    %v4821 = vadd.f32 0.0, %v4820
    %4822 = vmatmul.bf16.gmra.mxu0 %v4062
    %v4823 = vpop.f32.mrf.mxu0
    %v4824 = vadd.f32 0.0, %v4823
    %v4825 = vpop.f32.mrf.mxu0
    %v4826 = vadd.f32 0.0, %v4825
    %4827 = vdwg.mxu0
    %4828 = vmatpush.bf16.msra.mxu0 %v4532
    %4829 = vmatpush.bf16.msra.mxu0 %v4527
    %4830 = vmatpush.bf16.msra.mxu0 %v4522
    %4831 = vmatpush.bf16.msra.mxu0 %v4517
    %4832 = vmatpush.bf16.msra.mxu0 %v4512
    %4833 = vmatpush.bf16.msra.mxu0 %v4507
    %4834 = vmatpush.bf16.msra.mxu0 %v4502
    %4835 = vmatpush.bf16.msra.mxu0 %v4497
    %4836 = vmatmul.bf16.gmra.mxu0 %v4058
    %v4837 = vpop.f32.mrf.mxu0
    %v4838 = vadd.f32 %v4819, %v4837
    %v4839 = vpop.f32.mrf.mxu0
    %v4840 = vadd.f32 %v4821, %v4839
    %4841 = vmatmul.bf16.gmra.mxu0 %v4063
    %v4842 = vpop.f32.mrf.mxu0
    %v4843 = vadd.f32 %v4824, %v4842
    %v4844 = vpop.f32.mrf.mxu0
    %v4845 = vadd.f32 %v4826, %v4844
    %4846 = vdwg.mxu0
    %4847 = vmatpush.bf16.msra.mxu0 %v4572
    %4848 = vmatpush.bf16.msra.mxu0 %v4567
    %4849 = vmatpush.bf16.msra.mxu0 %v4562
    %4850 = vmatpush.bf16.msra.mxu0 %v4557
    %4851 = vmatpush.bf16.msra.mxu0 %v4552
    %4852 = vmatpush.bf16.msra.mxu0 %v4547
    %4853 = vmatpush.bf16.msra.mxu0 %v4542
    %4854 = vmatpush.bf16.msra.mxu0 %v4537
    %4855 = vmatmul.bf16.gmra.mxu0 %v4061
    %v4856 = vpop.f32.mrf.mxu0
    %v4857 = vadd.f32 %v4838, %v4856
    %v4858 = vpop.f32.mrf.mxu0
    %v4859 = vadd.f32 %v4840, %v4858
    %4860 = vmatmul.bf16.gmra.mxu0 %v4064
    %v4861 = vpop.f32.mrf.mxu0
    %v4862 = vadd.f32 %v4843, %v4861
    %v4863 = vpop.f32.mrf.mxu0
    %v4864 = vadd.f32 %v4845, %v4863
    %4865 = vdwg.mxu0
    %4866 = vmatpush.bf16.msra.mxu0 %v4493
    %4867 = vmatpush.bf16.msra.mxu0 %v4488
    %4868 = vmatpush.bf16.msra.mxu0 %v4483
    %4869 = vmatpush.bf16.msra.mxu0 %v4478
    %4870 = vmatpush.bf16.msra.mxu0 %v4473
    %4871 = vmatpush.bf16.msra.mxu0 %v4468
    %4872 = vmatpush.bf16.msra.mxu0 %v4463
    %4873 = vmatpush.bf16.msra.mxu0 %v4458
    %4874 = vmatmul.bf16.gmra.mxu0 %v4055
    %v4875 = vpop.f32.mrf.mxu0
    %v4876 = vadd.f32 0.0, %v4875
    %v4877 = vpop.f32.mrf.mxu0
    %v4878 = vadd.f32 0.0, %v4877
    %4879 = vmatmul.bf16.gmra.mxu0 %v4062
    %v4880 = vpop.f32.mrf.mxu0
    %v4881 = vadd.f32 0.0, %v4880
    %v4882 = vpop.f32.mrf.mxu0
    %v4883 = vadd.f32 0.0, %v4882
    %4884 = vdwg.mxu0
    %4885 = vmatpush.bf16.msra.mxu0 %v4533
    %4886 = vmatpush.bf16.msra.mxu0 %v4528
    %4887 = vmatpush.bf16.msra.mxu0 %v4523
    %4888 = vmatpush.bf16.msra.mxu0 %v4518
    %4889 = vmatpush.bf16.msra.mxu0 %v4513
    %4890 = vmatpush.bf16.msra.mxu0 %v4508
    %4891 = vmatpush.bf16.msra.mxu0 %v4503
    %4892 = vmatpush.bf16.msra.mxu0 %v4498
    %4893 = vmatmul.bf16.gmra.mxu0 %v4058
    %v4894 = vpop.f32.mrf.mxu0
    %v4895 = vadd.f32 %v4876, %v4894
    %v4896 = vpop.f32.mrf.mxu0
    %v4897 = vadd.f32 %v4878, %v4896
    %4898 = vmatmul.bf16.gmra.mxu0 %v4063
    %v4899 = vpop.f32.mrf.mxu0
    %v4900 = vadd.f32 %v4881, %v4899
    %v4901 = vpop.f32.mrf.mxu0
    %v4902 = vadd.f32 %v4883, %v4901
    %4903 = vdwg.mxu0
    %4904 = vmatpush.bf16.msra.mxu0 %v4573
    %4905 = vmatpush.bf16.msra.mxu0 %v4568
    %4906 = vmatpush.bf16.msra.mxu0 %v4563
    %4907 = vmatpush.bf16.msra.mxu0 %v4558
    %4908 = vmatpush.bf16.msra.mxu0 %v4553
    %4909 = vmatpush.bf16.msra.mxu0 %v4548
    %4910 = vmatpush.bf16.msra.mxu0 %v4543
    %4911 = vmatpush.bf16.msra.mxu0 %v4538
    %4912 = vmatmul.bf16.gmra.mxu0 %v4061
    %v4913 = vpop.f32.mrf.mxu0
    %v4914 = vadd.f32 %v4895, %v4913
    %v4915 = vpop.f32.mrf.mxu0
    %v4916 = vadd.f32 %v4897, %v4915
    %4917 = vmatmul.bf16.gmra.mxu0 %v4064
    %v4918 = vpop.f32.mrf.mxu0
    %v4919 = vadd.f32 %v4900, %v4918
    %v4920 = vpop.f32.mrf.mxu0
    %v4921 = vadd.f32 %v4902, %v4920
    %4922 = vdwg.mxu0
    %4923 = vmatpush.bf16.msra.mxu0 %v4494
    %4924 = vmatpush.bf16.msra.mxu0 %v4489
    %4925 = vmatpush.bf16.msra.mxu0 %v4484
    %4926 = vmatpush.bf16.msra.mxu0 %v4479
    %4927 = vmatpush.bf16.msra.mxu0 %v4474
    %4928 = vmatpush.bf16.msra.mxu0 %v4469
    %4929 = vmatpush.bf16.msra.mxu0 %v4464
    %4930 = vmatpush.bf16.msra.mxu0 %v4459
    %4931 = vmatmul.bf16.gmra.mxu0 %v4055
    %v4932 = vpop.f32.mrf.mxu0
    %v4933 = vadd.f32 0.0, %v4932
    %v4934 = vpop.f32.mrf.mxu0
    %v4935 = vadd.f32 0.0, %v4934
    %4936 = vmatmul.bf16.gmra.mxu0 %v4062
    %v4937 = vpop.f32.mrf.mxu0
    %v4938 = vadd.f32 0.0, %v4937
    %v4939 = vpop.f32.mrf.mxu0
    %v4940 = vadd.f32 0.0, %v4939
    %4941 = vdwg.mxu0
    %4942 = vmatpush.bf16.msra.mxu0 %v4534
    %4943 = vmatpush.bf16.msra.mxu0 %v4529
    %4944 = vmatpush.bf16.msra.mxu0 %v4524
    %4945 = vmatpush.bf16.msra.mxu0 %v4519
    %4946 = vmatpush.bf16.msra.mxu0 %v4514
    %4947 = vmatpush.bf16.msra.mxu0 %v4509
    %4948 = vmatpush.bf16.msra.mxu0 %v4504
    %4949 = vmatpush.bf16.msra.mxu0 %v4499
    %4950 = vmatmul.bf16.gmra.mxu0 %v4058
    %v4951 = vpop.f32.mrf.mxu0
    %v4952 = vadd.f32 %v4933, %v4951
    %v4953 = vpop.f32.mrf.mxu0
    %v4954 = vadd.f32 %v4935, %v4953
    %4955 = vmatmul.bf16.gmra.mxu0 %v4063
    %v4956 = vpop.f32.mrf.mxu0
    %v4957 = vadd.f32 %v4938, %v4956
    %v4958 = vpop.f32.mrf.mxu0
    %v4959 = vadd.f32 %v4940, %v4958
    %4960 = vdwg.mxu0
    %4961 = vmatpush.bf16.msra.mxu0 %v4574
    %4962 = vmatpush.bf16.msra.mxu0 %v4569
    %4963 = vmatpush.bf16.msra.mxu0 %v4564
    %4964 = vmatpush.bf16.msra.mxu0 %v4559
    %4965 = vmatpush.bf16.msra.mxu0 %v4554
    %4966 = vmatpush.bf16.msra.mxu0 %v4549
    %4967 = vmatpush.bf16.msra.mxu0 %v4544
    %4968 = vmatpush.bf16.msra.mxu0 %v4539
    %4969 = vmatmul.bf16.gmra.mxu0 %v4061
    %v4970 = vpop.f32.mrf.mxu0
    %v4971 = vadd.f32 %v4952, %v4970
    %v4972 = vpop.f32.mrf.mxu0
    %v4973 = vadd.f32 %v4954, %v4972
    %4974 = vmatmul.bf16.gmra.mxu0 %v4064
    %v4975 = vpop.f32.mrf.mxu0
    %v4976 = vadd.f32 %v4957, %v4975
    %v4977 = vpop.f32.mrf.mxu0
    %v4978 = vadd.f32 %v4959, %v4977
    %4979 = vdwg.mxu0
    %v4980 = vadd.f32 %v3671, %v4743
    %v4981 = vadd.f32 %v3728, %v4800
    %v4982 = vadd.f32 %v3785, %v4857
    %v4983 = vadd.f32 %v3842, %v4914
    %v4984 = vadd.f32 %v3899, %v4971
    %v4985 = vadd.f32 %v3673, %v4745
    %v4986 = vadd.f32 %v3730, %v4802
    %v4987 = vadd.f32 %v3787, %v4859
    %v4988 = vadd.f32 %v3844, %v4916
    %v4989 = vadd.f32 %v3901, %v4973
    %v4990 = vadd.f32 %v3676, %v4748
    %v4991 = vadd.f32 %v3733, %v4805
    %v4992 = vadd.f32 %v3790, %v4862
    %v4993 = vadd.f32 %v3847, %v4919
    %v4994 = vadd.f32 %v3904, %v4976
    %v4995 = vadd.f32 %v3678, %v4750
    %v4996 = vadd.f32 %v3735, %v4807
    %v4997 = vadd.f32 %v3792, %v4864
    %v4998 = vadd.f32 %v3849, %v4921
    %v4999 = vadd.f32 %v3906, %v4978
    %v5000 = vld [vmem:[#allocation11] sm:$0x1f]
    %v5002 = vperm.slane %v5000, 0
    %v5003 = vperm.slane %v5000, 1
    %v5004 = vperm.slane %v5000, 2
    %v5005 = vperm.slane %v5000, 3
    %v5006 = vperm.slane %v5000, 4
    %v5012 = vadd.f32 %v4980, %v5002
    %v5013 = vadd.f32 %v4981, %v5003
    %v5014 = vadd.f32 %v4982, %v5004
    %v5015 = vadd.f32 %v4983, %v5005
    %v5016 = vadd.f32 %v4984, %v5006
    %v5017 = vadd.f32 %v4985, %v5002
    %v5018 = vadd.f32 %v4986, %v5003
    %v5019 = vadd.f32 %v4987, %v5004
    %v5020 = vadd.f32 %v4988, %v5005
    %v5021 = vadd.f32 %v4989, %v5006
    %v5022 = vadd.f32 %v4990, %v5002
    %v5023 = vadd.f32 %v4991, %v5003
    %v5024 = vadd.f32 %v4992, %v5004
    %v5025 = vadd.f32 %v4993, %v5005
    %v5026 = vadd.f32 %v4994, %v5006
    %v5027 = vadd.f32 %v4995, %v5002
    %v5028 = vadd.f32 %v4996, %v5003
    %v5029 = vadd.f32 %v4997, %v5004
    %v5030 = vadd.f32 %v4998, %v5005
    %v5031 = vadd.f32 %v4999, %v5006
    %v5032 = vmax.f32 %v5012, 0.0
    %v5033 = vmax.f32 %v5013, 0.0
    %v5034 = vmax.f32 %v5014, 0.0
    %v5035 = vmax.f32 %v5015, 0.0
    %v5036 = vmax.f32 %v5016, 0.0
    %v5037 = vmax.f32 %v5017, 0.0
    %v5038 = vmax.f32 %v5018, 0.0
    %v5039 = vmax.f32 %v5019, 0.0
    %v5040 = vmax.f32 %v5020, 0.0
    %v5041 = vmax.f32 %v5021, 0.0
    %v5042 = vmax.f32 %v5022, 0.0
    %v5043 = vmax.f32 %v5023, 0.0
    %v5044 = vmax.f32 %v5024, 0.0
    %v5045 = vmax.f32 %v5025, 0.0
    %v5046 = vmax.f32 %v5026, 0.0
    %v5047 = vmax.f32 %v5027, 0.0
    %v5048 = vmax.f32 %v5028, 0.0
    %v5049 = vmax.f32 %v5029, 0.0
    %v5050 = vmax.f32 %v5030, 0.0
    %v5051 = vmax.f32 %v5031, 0.0
    %vm5052 = vcmask 1041408
    %v5053 = vsel %vm5052, %v5037, 0.0
    %v5054 = vadd.f32 %v5032, %v5053
    %v5055 = vrot.slane %v5054, 4
    %v5056 = vadd.f32 %v5054, %v5055
    %v5057 = vrot.slane %v5056, 2
    %v5058 = vadd.f32 %v5056, %v5057
    %v5059 = vrot.slane %v5058, 1
    %v5060 = vadd.f32 %v5058, %v5059
    %v5061 = vsel %vm5052, %v5038, 0.0
    %v5062 = vadd.f32 %v5033, %v5061
    %v5063 = vrot.slane %v5062, 4
    %v5064 = vadd.f32 %v5062, %v5063
    %v5065 = vrot.slane %v5064, 2
    %v5066 = vadd.f32 %v5064, %v5065
    %v5067 = vrot.slane %v5066, 1
    %v5068 = vadd.f32 %v5066, %v5067
    %v5069 = vsel %vm5052, %v5039, 0.0
    %v5070 = vadd.f32 %v5034, %v5069
    %v5071 = vrot.slane %v5070, 4
    %v5072 = vadd.f32 %v5070, %v5071
    %v5073 = vrot.slane %v5072, 2
    %v5074 = vadd.f32 %v5072, %v5073
    %v5075 = vrot.slane %v5074, 1
    %v5076 = vadd.f32 %v5074, %v5075
    %v5077 = vsel %vm5052, %v5040, 0.0
    %v5078 = vadd.f32 %v5035, %v5077
    %v5079 = vrot.slane %v5078, 4
    %v5080 = vadd.f32 %v5078, %v5079
    %v5081 = vrot.slane %v5080, 2
    %v5082 = vadd.f32 %v5080, %v5081
    %v5083 = vrot.slane %v5082, 1
    %v5084 = vadd.f32 %v5082, %v5083
    %v5085 = vsel %vm5052, %v5041, 0.0
    %v5086 = vadd.f32 %v5036, %v5085
    %v5087 = vrot.slane %v5086, 4
    %v5088 = vadd.f32 %v5086, %v5087
    %v5089 = vrot.slane %v5088, 2
    %v5090 = vadd.f32 %v5088, %v5089
    %v5091 = vrot.slane %v5090, 1
    %v5092 = vadd.f32 %v5090, %v5091
    %v5093 = vsel %vm5052, %v5047, 0.0
    %v5094 = vadd.f32 %v5042, %v5093
    %v5095 = vrot.slane %v5094, 4
    %v5096 = vadd.f32 %v5094, %v5095
    %v5097 = vrot.slane %v5096, 2
    %v5098 = vadd.f32 %v5096, %v5097
    %v5099 = vrot.slane %v5098, 1
    %v5100 = vadd.f32 %v5098, %v5099
    %v5101 = vsel %vm5052, %v5048, 0.0
    %v5102 = vadd.f32 %v5043, %v5101
    %v5103 = vrot.slane %v5102, 4
    %v5104 = vadd.f32 %v5102, %v5103
    %v5105 = vrot.slane %v5104, 2
    %v5106 = vadd.f32 %v5104, %v5105
    %v5107 = vrot.slane %v5106, 1
    %v5108 = vadd.f32 %v5106, %v5107
    %v5109 = vsel %vm5052, %v5049, 0.0
    %v5110 = vadd.f32 %v5044, %v5109
    %v5111 = vrot.slane %v5110, 4
    %v5112 = vadd.f32 %v5110, %v5111
    %v5113 = vrot.slane %v5112, 2
    %v5114 = vadd.f32 %v5112, %v5113
    %v5115 = vrot.slane %v5114, 1
    %v5116 = vadd.f32 %v5114, %v5115
    %v5117 = vsel %vm5052, %v5050, 0.0
    %v5118 = vadd.f32 %v5045, %v5117
    %v5119 = vrot.slane %v5118, 4
    %v5120 = vadd.f32 %v5118, %v5119
    %v5121 = vrot.slane %v5120, 2
    %v5122 = vadd.f32 %v5120, %v5121
    %v5123 = vrot.slane %v5122, 1
    %v5124 = vadd.f32 %v5122, %v5123
    %v5125 = vsel %vm5052, %v5051, 0.0
    %v5126 = vadd.f32 %v5046, %v5125
    %v5127 = vrot.slane %v5126, 4
    %v5128 = vadd.f32 %v5126, %v5127
    %v5129 = vrot.slane %v5128, 2
    %v5130 = vadd.f32 %v5128, %v5129
    %v5131 = vrot.slane %v5130, 1
    %v5132 = vadd.f32 %v5130, %v5131
    %v5133 = vsub.f32 %v5060, %v5037
    %v5134 = vsub.f32 %v5068, %v5038
    %v5135 = vsub.f32 %v5076, %v5039
    %v5136 = vsub.f32 %v5084, %v5040
    %v5137 = vsub.f32 %v5092, %v5041
    %v5138 = vsub.f32 %v5100, %v5047
    %v5139 = vsub.f32 %v5108, %v5048
    %v5140 = vsub.f32 %v5116, %v5049
    %v5141 = vsub.f32 %v5124, %v5050
    %v5142 = vsub.f32 %v5132, %v5051
    %v5153 = vrot.slane %v5037, 1
    %v5154 = vrot.slane %v5038, 1
    %v5155 = vrot.slane %v5039, 1
    %v5156 = vrot.slane %v5040, 1
    %v5157 = vrot.slane %v5041, 1
    %v5158 = vrot.slane %v5047, 1
    %v5159 = vrot.slane %v5048, 1
    %v5160 = vrot.slane %v5049, 1
    %v5161 = vrot.slane %v5050, 1
    %v5162 = vrot.slane %v5051, 1
    %v5173 = vsub.f32 %v5133, %v5153
    %v5174 = vsub.f32 %v5134, %v5154
    %v5175 = vsub.f32 %v5135, %v5155
    %v5176 = vsub.f32 %v5136, %v5156
    %v5177 = vsub.f32 %v5137, %v5157
    %v5178 = vsub.f32 %v5138, %v5158
    %v5179 = vsub.f32 %v5139, %v5159
    %v5180 = vsub.f32 %v5140, %v5160
    %v5181 = vsub.f32 %v5141, %v5161
    %v5182 = vsub.f32 %v5142, %v5162
    %v5183 = vsub.f32 %v5060, %v5032
    %v5184 = vsub.f32 %v5068, %v5033
    %v5185 = vsub.f32 %v5076, %v5034
    %v5186 = vsub.f32 %v5084, %v5035
    %v5187 = vsub.f32 %v5092, %v5036
    %v5188 = vsub.f32 %v5100, %v5042
    %v5189 = vsub.f32 %v5108, %v5043
    %v5190 = vsub.f32 %v5116, %v5044
    %v5191 = vsub.f32 %v5124, %v5045
    %v5192 = vsub.f32 %v5132, %v5046
    %v5193 = vsub.f32 %v5183, %v5153
    %v5194 = vsub.f32 %v5184, %v5154
    %v5195 = vsub.f32 %v5185, %v5155
    %v5196 = vsub.f32 %v5186, %v5156
    %v5197 = vsub.f32 %v5187, %v5157
    %v5198 = vsub.f32 %v5188, %v5158
    %v5199 = vsub.f32 %v5189, %v5159
    %v5200 = vsub.f32 %v5190, %v5160
    %v5201 = vsub.f32 %v5191, %v5161
    %v5202 = vsub.f32 %v5192, %v5162
    %v5213 = vrot.slane %v5032, 1
    %v5214 = vrot.slane %v5033, 1
    %v5215 = vrot.slane %v5034, 1
    %v5216 = vrot.slane %v5035, 1
    %v5217 = vrot.slane %v5036, 1
    %v5218 = vrot.slane %v5042, 1
    %v5219 = vrot.slane %v5043, 1
    %v5220 = vrot.slane %v5044, 1
    %v5221 = vrot.slane %v5045, 1
    %v5222 = vrot.slane %v5046, 1
    %v5233 = vsub.f32 %v5183, %v5213
    %v5234 = vsub.f32 %v5184, %v5214
    %v5235 = vsub.f32 %v5185, %v5215
    %v5236 = vsub.f32 %v5186, %v5216
    %v5237 = vsub.f32 %v5187, %v5217
    %v5238 = vsub.f32 %v5188, %v5218
    %v5239 = vsub.f32 %v5189, %v5219
    %v5240 = vsub.f32 %v5190, %v5220
    %v5241 = vsub.f32 %v5191, %v5221
    %v5242 = vsub.f32 %v5192, %v5222
    %v5253 = vrot.slane %v5178, 7
    %vm5254 = vcmask 1041409
    %v5255 = vsel %vm5254, %v5253, %v5173
    %v5256 = vrot.slane %v5179, 7
    %v5257 = vsel %vm5254, %v5256, %v5174
    %v5258 = vrot.slane %v5180, 7
    %v5259 = vsel %vm5254, %v5258, %v5175
    %v5260 = vrot.slane %v5181, 7
    %v5261 = vsel %vm5254, %v5260, %v5176
    %v5262 = vrot.slane %v5182, 7
    %v5263 = vsel %vm5254, %v5262, %v5177
    %v5279 = vrot.slane %v5198, 7
    %v5280 = vsel %vm5254, %v5279, %v5193
    %v5281 = vrot.slane %v5199, 7
    %v5282 = vsel %vm5254, %v5281, %v5194
    %v5283 = vrot.slane %v5200, 7
    %v5284 = vsel %vm5254, %v5283, %v5195
    %v5285 = vrot.slane %v5201, 7
    %v5286 = vsel %vm5254, %v5285, %v5196
    %v5287 = vrot.slane %v5202, 7
    %v5288 = vsel %vm5254, %v5287, %v5197
    %v5304 = vrot.slane %v5238, 7
    %v5305 = vsel %vm5254, %v5304, %v5233
    %v5306 = vrot.slane %v5239, 7
    %v5307 = vsel %vm5254, %v5306, %v5234
    %v5308 = vrot.slane %v5240, 7
    %v5309 = vsel %vm5254, %v5308, %v5235
    %v5310 = vrot.slane %v5241, 7
    %v5311 = vsel %vm5254, %v5310, %v5236
    %v5312 = vrot.slane %v5242, 7
    %v5313 = vsel %vm5254, %v5312, %v5237
    %v5319 = vpack.c.bf16 %v5255, %v5255
    %v5320 = vpack.c.bf16 %v5257, %v5257
    %v5321 = vpack.c.bf16 %v5259, %v5259
    %v5322 = vpack.c.bf16 %v5261, %v5261
    %v5323 = vpack.c.bf16 %v5263, %v5263
    %v5324 = vpack.c.bf16 %v5280, %v5280
    %v5325 = vpack.c.bf16 %v5282, %v5282
    %v5326 = vpack.c.bf16 %v5284, %v5284
    %v5327 = vpack.c.bf16 %v5286, %v5286
    %v5328 = vpack.c.bf16 %v5288, %v5288
    %v5329 = vpack.c.bf16 %v5305, %v5305
    %v5330 = vpack.c.bf16 %v5307, %v5307
    %v5331 = vpack.c.bf16 %v5309, %v5309
    %v5332 = vpack.c.bf16 %v5311, %v5311
    %v5333 = vpack.c.bf16 %v5313, %v5313
    %v5334 = vld [vmem:[#allocation13] sm:$0xf]
    %v5335 = vld [vmem:[#allocation13 + $0x4] sm:$0xf]
    %v5336 = vld [vmem:[#allocation13 + $0x8] sm:$0xf]
    %v5337 = vld [vmem:[#allocation13 + $0xc] sm:$0xf]
    %v5338 = vld [vmem:[#allocation13 + $0x10] sm:$0xf]
    %v5339 = vld [vmem:[#allocation13 + $0x14] sm:$0xf]
    %v5340 = vld [vmem:[#allocation13 + $0x18] sm:$0xf]
    %v5341 = vld [vmem:[#allocation13 + $0x1c] sm:$0xf]
    %v5342 = vld [vmem:[#allocation13 + $0x20] sm:$0xf]
    %v5343 = vld [vmem:[#allocation13 + $0x24] sm:$0xf]
    %v5344 = vld [vmem:[#allocation13 + $0x28] sm:$0xf]
    %v5345 = vld [vmem:[#allocation13 + $0x2c] sm:$0xf]
    %v5346 = vld [vmem:[#allocation13 + $0x30] sm:$0xf]
    %v5347 = vld [vmem:[#allocation13 + $0x34] sm:$0xf]
    %v5348 = vld [vmem:[#allocation13 + $0x38] sm:$0xf]
    %v5349 = vld [vmem:[#allocation13 + $0x3c] sm:$0xf]
    %v5350 = vld [vmem:[#allocation13 + $0x40] sm:$0xf]
    %v5351 = vld [vmem:[#allocation13 + $0x44] sm:$0xf]
    %v5352 = vld [vmem:[#allocation13 + $0x48] sm:$0xf]
    %v5353 = vld [vmem:[#allocation13 + $0x4c] sm:$0xf]
    %v5354 = vld [vmem:[#allocation13 + $0x50] sm:$0xf]
    %v5355 = vld [vmem:[#allocation13 + $0x54] sm:$0xf]
    %v5356 = vld [vmem:[#allocation13 + $0x58] sm:$0xf]
    %v5357 = vld [vmem:[#allocation13 + $0x5c] sm:$0xf]
    %v5358 = vld [vmem:[#allocation13 + $0x60] sm:$0xf]
    %v5359 = vld [vmem:[#allocation13 + $0x64] sm:$0xf]
    %v5360 = vld [vmem:[#allocation13 + $0x68] sm:$0xf]
    %v5361 = vld [vmem:[#allocation13 + $0x6c] sm:$0xf]
    %v5362 = vld [vmem:[#allocation13 + $0x70] sm:$0xf]
    %v5363 = vld [vmem:[#allocation13 + $0x74] sm:$0xf]
    %v5364 = vld [vmem:[#allocation13 + $0x78] sm:$0xf]
    %v5365 = vld [vmem:[#allocation13 + $0x7c] sm:$0xf]
    %v5366 = vld [vmem:[#allocation13 + $0x80] sm:$0xf]
    %v5367 = vld [vmem:[#allocation13 + $0x84] sm:$0xf]
    %v5368 = vld [vmem:[#allocation13 + $0x88] sm:$0xf]
    %v5369 = vld [vmem:[#allocation13 + $0x8c] sm:$0xf]
    %v5370 = vld [vmem:[#allocation13 + $0x90] sm:$0xf]
    %v5371 = vld [vmem:[#allocation13 + $0x94] sm:$0xf]
    %v5372 = vld [vmem:[#allocation13 + $0x98] sm:$0xf]
    %v5373 = vld [vmem:[#allocation13 + $0x9c] sm:$0xf]
    %v5374 = vld [vmem:[#allocation13 + $0xa0] sm:$0xf]
    %v5375 = vld [vmem:[#allocation13 + $0xa4] sm:$0xf]
    %v5376 = vld [vmem:[#allocation13 + $0xa8] sm:$0xf]
    %v5377 = vld [vmem:[#allocation13 + $0xac] sm:$0xf]
    %v5378 = vld [vmem:[#allocation13 + $0xb0] sm:$0xf]
    %v5379 = vld [vmem:[#allocation13 + $0xb4] sm:$0xf]
    %v5380 = vld [vmem:[#allocation13 + $0xb8] sm:$0xf]
    %v5381 = vld [vmem:[#allocation13 + $0xbc] sm:$0xf]
    %v5382 = vld [vmem:[#allocation13 + $0xc0] sm:$0xf]
    %v5383 = vld [vmem:[#allocation13 + $0xc4] sm:$0xf]
    %v5384 = vld [vmem:[#allocation13 + $0xc8] sm:$0xf]
    %v5385 = vld [vmem:[#allocation13 + $0xcc] sm:$0xf]
    %v5386 = vld [vmem:[#allocation13 + $0xd0] sm:$0xf]
    %v5387 = vld [vmem:[#allocation13 + $0xd4] sm:$0xf]
    %v5388 = vld [vmem:[#allocation13 + $0xd8] sm:$0xf]
    %v5389 = vld [vmem:[#allocation13 + $0xdc] sm:$0xf]
    %v5390 = vld [vmem:[#allocation13 + $0xe0] sm:$0xf]
    %v5391 = vld [vmem:[#allocation13 + $0xe4] sm:$0xf]
    %v5392 = vld [vmem:[#allocation13 + $0xe8] sm:$0xf]
    %v5393 = vld [vmem:[#allocation13 + $0xec] sm:$0xf]
    %v5394 = vld [vmem:[#allocation13 + $0xf0] sm:$0xf]
    %v5395 = vld [vmem:[#allocation13 + $0xf4] sm:$0xf]
    %v5396 = vld [vmem:[#allocation13 + $0xf8] sm:$0xf]
    %v5397 = vld [vmem:[#allocation13 + $0xfc] sm:$0xf]
    %v5398 = vld [vmem:[#allocation13 + $0x100] sm:$0xf]
    %v5399 = vld [vmem:[#allocation13 + $0x104] sm:$0xf]
    %v5400 = vld [vmem:[#allocation13 + $0x108] sm:$0xf]
    %v5401 = vld [vmem:[#allocation13 + $0x10c] sm:$0xf]
    %v5402 = vld [vmem:[#allocation13 + $0x110] sm:$0xf]
    %v5403 = vld [vmem:[#allocation13 + $0x114] sm:$0xf]
    %v5404 = vld [vmem:[#allocation13 + $0x118] sm:$0xf]
    %v5405 = vld [vmem:[#allocation13 + $0x11c] sm:$0xf]
    %v5406 = vld [vmem:[#allocation13 + $0x120] sm:$0xf]
    %v5407 = vld [vmem:[#allocation13 + $0x124] sm:$0xf]
    %v5408 = vld [vmem:[#allocation13 + $0x128] sm:$0xf]
    %v5409 = vld [vmem:[#allocation13 + $0x12c] sm:$0xf]
    %v5410 = vld [vmem:[#allocation13 + $0x130] sm:$0xf]
    %v5411 = vld [vmem:[#allocation13 + $0x134] sm:$0xf]
    %v5412 = vld [vmem:[#allocation13 + $0x138] sm:$0xf]
    %v5413 = vld [vmem:[#allocation13 + $0x13c] sm:$0xf]
    %v5414 = vld [vmem:[#allocation13 + $0x140] sm:$0xf]
    %v5415 = vld [vmem:[#allocation13 + $0x144] sm:$0xf]
    %v5416 = vld [vmem:[#allocation13 + $0x148] sm:$0xf]
    %v5417 = vld [vmem:[#allocation13 + $0x14c] sm:$0xf]
    %v5418 = vld [vmem:[#allocation13 + $0x150] sm:$0xf]
    %v5419 = vld [vmem:[#allocation13 + $0x154] sm:$0xf]
    %v5420 = vld [vmem:[#allocation13 + $0x158] sm:$0xf]
    %v5421 = vld [vmem:[#allocation13 + $0x15c] sm:$0xf]
    %v5422 = vld [vmem:[#allocation13 + $0x160] sm:$0xf]
    %v5423 = vld [vmem:[#allocation13 + $0x164] sm:$0xf]
    %v5424 = vld [vmem:[#allocation13 + $0x168] sm:$0xf]
    %v5425 = vld [vmem:[#allocation13 + $0x16c] sm:$0xf]
    %v5426 = vld [vmem:[#allocation13 + $0x170] sm:$0xf]
    %v5427 = vld [vmem:[#allocation13 + $0x174] sm:$0xf]
    %v5428 = vld [vmem:[#allocation13 + $0x178] sm:$0xf]
    %v5429 = vld [vmem:[#allocation13 + $0x17c] sm:$0xf]
    %v5430 = vld [vmem:[#allocation13 + $0x180] sm:$0xf]
    %v5431 = vld [vmem:[#allocation13 + $0x184] sm:$0xf]
    %v5432 = vld [vmem:[#allocation13 + $0x188] sm:$0xf]
    %v5433 = vld [vmem:[#allocation13 + $0x18c] sm:$0xf]
    %v5434 = vld [vmem:[#allocation13 + $0x190] sm:$0xf]
    %v5435 = vld [vmem:[#allocation13 + $0x194] sm:$0xf]
    %v5436 = vld [vmem:[#allocation13 + $0x198] sm:$0xf]
    %v5437 = vld [vmem:[#allocation13 + $0x19c] sm:$0xf]
    %v5438 = vld [vmem:[#allocation13 + $0x1a0] sm:$0xf]
    %v5439 = vld [vmem:[#allocation13 + $0x1a4] sm:$0xf]
    %v5440 = vld [vmem:[#allocation13 + $0x1a8] sm:$0xf]
    %v5441 = vld [vmem:[#allocation13 + $0x1ac] sm:$0xf]
    %v5442 = vld [vmem:[#allocation13 + $0x1b0] sm:$0xf]
    %v5443 = vld [vmem:[#allocation13 + $0x1b4] sm:$0xf]
    %v5444 = vld [vmem:[#allocation13 + $0x1b8] sm:$0xf]
    %v5445 = vld [vmem:[#allocation13 + $0x1bc] sm:$0xf]
    %v5446 = vld [vmem:[#allocation13 + $0x1c0] sm:$0xf]
    %v5447 = vld [vmem:[#allocation13 + $0x1c4] sm:$0xf]
    %v5448 = vld [vmem:[#allocation13 + $0x1c8] sm:$0xf]
    %v5449 = vld [vmem:[#allocation13 + $0x1cc] sm:$0xf]
    %v5450 = vld [vmem:[#allocation13 + $0x1d0] sm:$0xf]
    %v5451 = vld [vmem:[#allocation13 + $0x1d4] sm:$0xf]
    %v5452 = vld [vmem:[#allocation13 + $0x1d8] sm:$0xf]
    %v5453 = vld [vmem:[#allocation13 + $0x1dc] sm:$0xf]
    %v5454 = vld [vmem:[#allocation13 + $0x1e0] sm:$0xf]
    %v5455 = vld [vmem:[#allocation13 + $0x1e4] sm:$0xf]
    %v5456 = vld [vmem:[#allocation13 + $0x1e8] sm:$0xf]
    %v5457 = vld [vmem:[#allocation13 + $0x1ec] sm:$0xf]
    %v5458 = vld [vmem:[#allocation13 + $0x1f0] sm:$0xf]
    %v5459 = vld [vmem:[#allocation13 + $0x1f4] sm:$0xf]
    %v5460 = vld [vmem:[#allocation13 + $0x1f8] sm:$0xf]
    %v5461 = vld [vmem:[#allocation13 + $0x1fc] sm:$0xf]
    %v5462 = vld [vmem:[#allocation13 + $0x200] sm:$0xf]
    %v5463 = vld [vmem:[#allocation13 + $0x204] sm:$0xf]
    %v5464 = vld [vmem:[#allocation13 + $0x208] sm:$0xf]
    %v5465 = vld [vmem:[#allocation13 + $0x20c] sm:$0xf]
    %v5466 = vld [vmem:[#allocation13 + $0x210] sm:$0xf]
    %v5467 = vld [vmem:[#allocation13 + $0x214] sm:$0xf]
    %v5468 = vld [vmem:[#allocation13 + $0x218] sm:$0xf]
    %v5469 = vld [vmem:[#allocation13 + $0x21c] sm:$0xf]
    %v5470 = vld [vmem:[#allocation13 + $0x220] sm:$0xf]
    %v5471 = vld [vmem:[#allocation13 + $0x224] sm:$0xf]
    %v5472 = vld [vmem:[#allocation13 + $0x228] sm:$0xf]
    %v5473 = vld [vmem:[#allocation13 + $0x22c] sm:$0xf]
    %v5474 = vld [vmem:[#allocation13 + $0x230] sm:$0xf]
    %v5475 = vld [vmem:[#allocation13 + $0x234] sm:$0xf]
    %v5476 = vld [vmem:[#allocation13 + $0x238] sm:$0xf]
    %v5477 = vld [vmem:[#allocation13 + $0x23c] sm:$0xf]
    %v5478 = vld [vmem:[#allocation13 + $0x240] sm:$0xf]
    %v5479 = vld [vmem:[#allocation13 + $0x244] sm:$0xf]
    %v5480 = vld [vmem:[#allocation13 + $0x248] sm:$0xf]
    %v5481 = vld [vmem:[#allocation13 + $0x24c] sm:$0xf]
    %v5482 = vld [vmem:[#allocation13 + $0x250] sm:$0xf]
    %v5483 = vld [vmem:[#allocation13 + $0x254] sm:$0xf]
    %v5484 = vld [vmem:[#allocation13 + $0x258] sm:$0xf]
    %v5485 = vld [vmem:[#allocation13 + $0x25c] sm:$0xf]
    %v5486 = vld [vmem:[#allocation13 + $0x260] sm:$0xf]
    %v5487 = vld [vmem:[#allocation13 + $0x264] sm:$0xf]
    %v5488 = vld [vmem:[#allocation13 + $0x268] sm:$0xf]
    %v5489 = vld [vmem:[#allocation13 + $0x26c] sm:$0xf]
    %v5490 = vld [vmem:[#allocation13 + $0x270] sm:$0xf]
    %v5491 = vld [vmem:[#allocation13 + $0x274] sm:$0xf]
    %v5492 = vld [vmem:[#allocation13 + $0x278] sm:$0xf]
    %v5493 = vld [vmem:[#allocation13 + $0x27c] sm:$0xf]
    %v5494 = vld [vmem:[#allocation13 + $0x280] sm:$0xf]
    %v5495 = vld [vmem:[#allocation13 + $0x284] sm:$0xf]
    %v5496 = vld [vmem:[#allocation13 + $0x288] sm:$0xf]
    %v5497 = vld [vmem:[#allocation13 + $0x28c] sm:$0xf]
    %v5498 = vld [vmem:[#allocation13 + $0x290] sm:$0xf]
    %v5499 = vld [vmem:[#allocation13 + $0x294] sm:$0xf]
    %v5500 = vld [vmem:[#allocation13 + $0x298] sm:$0xf]
    %v5501 = vld [vmem:[#allocation13 + $0x29c] sm:$0xf]
    %v5502 = vld [vmem:[#allocation13 + $0x2a0] sm:$0xf]
    %v5503 = vld [vmem:[#allocation13 + $0x2a4] sm:$0xf]
    %v5504 = vld [vmem:[#allocation13 + $0x2a8] sm:$0xf]
    %v5505 = vld [vmem:[#allocation13 + $0x2ac] sm:$0xf]
    %v5506 = vld [vmem:[#allocation13 + $0x2b0] sm:$0xf]
    %v5507 = vld [vmem:[#allocation13 + $0x2b4] sm:$0xf]
    %v5508 = vld [vmem:[#allocation13 + $0x2b8] sm:$0xf]
    %v5509 = vld [vmem:[#allocation13 + $0x2bc] sm:$0xf]
    %v5510 = vld [vmem:[#allocation13 + $0x2c0] sm:$0xf]
    %v5511 = vld [vmem:[#allocation13 + $0x2c4] sm:$0xf]
    %v5512 = vld [vmem:[#allocation13 + $0x2c8] sm:$0xf]
    %v5513 = vld [vmem:[#allocation13 + $0x2cc] sm:$0xf]
    %v5514 = vld [vmem:[#allocation13 + $0x2d0] sm:$0xf]
    %v5515 = vld [vmem:[#allocation13 + $0x2d4] sm:$0xf]
    %v5516 = vld [vmem:[#allocation13 + $0x2d8] sm:$0xf]
    %v5517 = vld [vmem:[#allocation13 + $0x2dc] sm:$0xf]
    %v5518 = vld [vmem:[#allocation13 + $0x2e0] sm:$0xf]
    %v5519 = vld [vmem:[#allocation13 + $0x2e4] sm:$0xf]
    %v5520 = vld [vmem:[#allocation13 + $0x2e8] sm:$0xf]
    %v5521 = vld [vmem:[#allocation13 + $0x2ec] sm:$0xf]
    %v5522 = vld [vmem:[#allocation13 + $0x2f0] sm:$0xf]
    %v5523 = vld [vmem:[#allocation13 + $0x2f4] sm:$0xf]
    %v5524 = vld [vmem:[#allocation13 + $0x2f8] sm:$0xf]
    %v5525 = vld [vmem:[#allocation13 + $0x2fc] sm:$0xf]
    %v5526 = vld [vmem:[#allocation13 + $0x300] sm:$0xf]
    %v5527 = vld [vmem:[#allocation13 + $0x304] sm:$0xf]
    %v5528 = vld [vmem:[#allocation13 + $0x308] sm:$0xf]
    %v5529 = vld [vmem:[#allocation13 + $0x30c] sm:$0xf]
    %v5530 = vld [vmem:[#allocation13 + $0x310] sm:$0xf]
    %v5531 = vld [vmem:[#allocation13 + $0x314] sm:$0xf]
    %v5532 = vld [vmem:[#allocation13 + $0x318] sm:$0xf]
    %v5533 = vld [vmem:[#allocation13 + $0x31c] sm:$0xf]
    %v5534 = vld [vmem:[#allocation13 + $0x320] sm:$0xf]
    %v5535 = vld [vmem:[#allocation13 + $0x324] sm:$0xf]
    %v5536 = vld [vmem:[#allocation13 + $0x328] sm:$0xf]
    %v5537 = vld [vmem:[#allocation13 + $0x32c] sm:$0xf]
    %v5538 = vld [vmem:[#allocation13 + $0x330] sm:$0xf]
    %v5539 = vld [vmem:[#allocation13 + $0x334] sm:$0xf]
    %v5540 = vld [vmem:[#allocation13 + $0x338] sm:$0xf]
    %v5541 = vld [vmem:[#allocation13 + $0x33c] sm:$0xf]
    %v5542 = vld [vmem:[#allocation13 + $0x340] sm:$0xf]
    %v5543 = vld [vmem:[#allocation13 + $0x344] sm:$0xf]
    %v5544 = vld [vmem:[#allocation13 + $0x348] sm:$0xf]
    %v5545 = vld [vmem:[#allocation13 + $0x34c] sm:$0xf]
    %v5546 = vld [vmem:[#allocation13 + $0x350] sm:$0xf]
    %v5547 = vld [vmem:[#allocation13 + $0x354] sm:$0xf]
    %v5548 = vld [vmem:[#allocation13 + $0x358] sm:$0xf]
    %v5549 = vld [vmem:[#allocation13 + $0x35c] sm:$0xf]
    %v5550 = vld [vmem:[#allocation13 + $0x360] sm:$0xf]
    %v5551 = vld [vmem:[#allocation13 + $0x364] sm:$0xf]
    %v5552 = vld [vmem:[#allocation13 + $0x368] sm:$0xf]
    %v5553 = vld [vmem:[#allocation13 + $0x36c] sm:$0xf]
    %v5554 = vld [vmem:[#allocation13 + $0x370] sm:$0xf]
    %v5555 = vld [vmem:[#allocation13 + $0x374] sm:$0xf]
    %v5556 = vld [vmem:[#allocation13 + $0x378] sm:$0xf]
    %v5557 = vld [vmem:[#allocation13 + $0x37c] sm:$0xf]
    %v5558 = vld [vmem:[#allocation13 + $0x380] sm:$0xf]
    %v5559 = vld [vmem:[#allocation13 + $0x384] sm:$0xf]
    %v5560 = vld [vmem:[#allocation13 + $0x388] sm:$0xf]
    %v5561 = vld [vmem:[#allocation13 + $0x38c] sm:$0xf]
    %v5562 = vld [vmem:[#allocation13 + $0x390] sm:$0xf]
    %v5563 = vld [vmem:[#allocation13 + $0x394] sm:$0xf]
    %v5564 = vld [vmem:[#allocation13 + $0x398] sm:$0xf]
    %v5565 = vld [vmem:[#allocation13 + $0x39c] sm:$0xf]
    %v5566 = vld [vmem:[#allocation13 + $0x3a0] sm:$0xf]
    %v5567 = vld [vmem:[#allocation13 + $0x3a4] sm:$0xf]
    %v5568 = vld [vmem:[#allocation13 + $0x3a8] sm:$0xf]
    %v5569 = vld [vmem:[#allocation13 + $0x3ac] sm:$0xf]
    %v5570 = vld [vmem:[#allocation13 + $0x3b0] sm:$0xf]
    %v5571 = vld [vmem:[#allocation13 + $0x3b4] sm:$0xf]
    %v5572 = vld [vmem:[#allocation13 + $0x3b8] sm:$0xf]
    %v5573 = vld [vmem:[#allocation13 + $0x3bc] sm:$0xf]
    %v5574 = vld [vmem:[#allocation14] sm:$0x1]
    %v5576 = vperm.slane %v5574, 0
    %v5818 = vunpack.c.l.b16 %v5334
    %v5819 = vunpack.c.l.b16 %v5335
    %v5820 = vunpack.c.l.b16 %v5336
    %v5821 = vunpack.c.l.b16 %v5337
    %v5822 = vunpack.c.l.b16 %v5338
    %v5823 = vunpack.c.l.b16 %v5339
    %v5824 = vunpack.c.l.b16 %v5340
    %v5825 = vunpack.c.l.b16 %v5341
    %v5826 = vunpack.c.l.b16 %v5342
    %v5827 = vunpack.c.l.b16 %v5343
    %v5828 = vunpack.c.l.b16 %v5344
    %v5829 = vunpack.c.l.b16 %v5345
    %v5830 = vunpack.c.l.b16 %v5346
    %v5831 = vunpack.c.l.b16 %v5347
    %v5832 = vunpack.c.l.b16 %v5348
    %v5833 = vunpack.c.l.b16 %v5349
    %v5834 = vunpack.c.l.b16 %v5350
    %v5835 = vunpack.c.l.b16 %v5351
    %v5836 = vunpack.c.l.b16 %v5352
    %v5837 = vunpack.c.l.b16 %v5353
    %v5838 = vunpack.c.l.b16 %v5354
    %v5839 = vunpack.c.l.b16 %v5355
    %v5840 = vunpack.c.l.b16 %v5356
    %v5841 = vunpack.c.l.b16 %v5357
    %v5842 = vunpack.c.l.b16 %v5358
    %v5843 = vunpack.c.l.b16 %v5359
    %v5844 = vunpack.c.l.b16 %v5360
    %v5845 = vunpack.c.l.b16 %v5361
    %v5846 = vunpack.c.l.b16 %v5362
    %v5847 = vunpack.c.l.b16 %v5363
    %v5848 = vunpack.c.l.b16 %v5364
    %v5849 = vunpack.c.l.b16 %v5365
    %v5850 = vunpack.c.l.b16 %v5366
    %v5851 = vunpack.c.l.b16 %v5367
    %v5852 = vunpack.c.l.b16 %v5368
    %v5853 = vunpack.c.l.b16 %v5369
    %v5854 = vunpack.c.l.b16 %v5370
    %v5855 = vunpack.c.l.b16 %v5371
    %v5856 = vunpack.c.l.b16 %v5372
    %v5857 = vunpack.c.l.b16 %v5373
    %v5858 = vunpack.c.l.b16 %v5374
    %v5859 = vunpack.c.l.b16 %v5375
    %v5860 = vunpack.c.l.b16 %v5376
    %v5861 = vunpack.c.l.b16 %v5377
    %v5862 = vunpack.c.l.b16 %v5378
    %v5863 = vunpack.c.l.b16 %v5379
    %v5864 = vunpack.c.l.b16 %v5380
    %v5865 = vunpack.c.l.b16 %v5381
    %v5866 = vunpack.c.l.b16 %v5382
    %v5867 = vunpack.c.l.b16 %v5383
    %v5868 = vunpack.c.l.b16 %v5384
    %v5869 = vunpack.c.l.b16 %v5385
    %v5870 = vunpack.c.l.b16 %v5386
    %v5871 = vunpack.c.l.b16 %v5387
    %v5872 = vunpack.c.l.b16 %v5388
    %v5873 = vunpack.c.l.b16 %v5389
    %v5874 = vunpack.c.l.b16 %v5390
    %v5875 = vunpack.c.l.b16 %v5391
    %v5876 = vunpack.c.l.b16 %v5392
    %v5877 = vunpack.c.l.b16 %v5393
    %v5878 = vunpack.c.l.b16 %v5394
    %v5879 = vunpack.c.l.b16 %v5395
    %v5880 = vunpack.c.l.b16 %v5396
    %v5881 = vunpack.c.l.b16 %v5397
    %v5882 = vunpack.c.l.b16 %v5398
    %v5883 = vunpack.c.l.b16 %v5399
    %v5884 = vunpack.c.l.b16 %v5400
    %v5885 = vunpack.c.l.b16 %v5401
    %v5886 = vunpack.c.l.b16 %v5402
    %v5887 = vunpack.c.l.b16 %v5403
    %v5888 = vunpack.c.l.b16 %v5404
    %v5889 = vunpack.c.l.b16 %v5405
    %v5890 = vunpack.c.l.b16 %v5406
    %v5891 = vunpack.c.l.b16 %v5407
    %v5892 = vunpack.c.l.b16 %v5408
    %v5893 = vunpack.c.l.b16 %v5409
    %v5894 = vunpack.c.l.b16 %v5410
    %v5895 = vunpack.c.l.b16 %v5411
    %v5896 = vunpack.c.l.b16 %v5412
    %v5897 = vunpack.c.l.b16 %v5413
    %v5898 = vunpack.c.l.b16 %v5414
    %v5899 = vunpack.c.l.b16 %v5415
    %v5900 = vunpack.c.l.b16 %v5416
    %v5901 = vunpack.c.l.b16 %v5417
    %v5902 = vunpack.c.l.b16 %v5418
    %v5903 = vunpack.c.l.b16 %v5419
    %v5904 = vunpack.c.l.b16 %v5420
    %v5905 = vunpack.c.l.b16 %v5421
    %v5906 = vunpack.c.l.b16 %v5422
    %v5907 = vunpack.c.l.b16 %v5423
    %v5908 = vunpack.c.l.b16 %v5424
    %v5909 = vunpack.c.l.b16 %v5425
    %v5910 = vunpack.c.l.b16 %v5426
    %v5911 = vunpack.c.l.b16 %v5427
    %v5912 = vunpack.c.l.b16 %v5428
    %v5913 = vunpack.c.l.b16 %v5429
    %v5914 = vunpack.c.l.b16 %v5430
    %v5915 = vunpack.c.l.b16 %v5431
    %v5916 = vunpack.c.l.b16 %v5432
    %v5917 = vunpack.c.l.b16 %v5433
    %v5918 = vunpack.c.l.b16 %v5434
    %v5919 = vunpack.c.l.b16 %v5435
    %v5920 = vunpack.c.l.b16 %v5436
    %v5921 = vunpack.c.l.b16 %v5437
    %v5922 = vunpack.c.l.b16 %v5438
    %v5923 = vunpack.c.l.b16 %v5439
    %v5924 = vunpack.c.l.b16 %v5440
    %v5925 = vunpack.c.l.b16 %v5441
    %v5926 = vunpack.c.l.b16 %v5442
    %v5927 = vunpack.c.l.b16 %v5443
    %v5928 = vunpack.c.l.b16 %v5444
    %v5929 = vunpack.c.l.b16 %v5445
    %v5930 = vunpack.c.l.b16 %v5446
    %v5931 = vunpack.c.l.b16 %v5447
    %v5932 = vunpack.c.l.b16 %v5448
    %v5933 = vunpack.c.l.b16 %v5449
    %v5934 = vunpack.c.l.b16 %v5450
    %v5935 = vunpack.c.l.b16 %v5451
    %v5936 = vunpack.c.l.b16 %v5452
    %v5937 = vunpack.c.l.b16 %v5453
    %v5938 = vunpack.c.l.b16 %v5454
    %v5939 = vunpack.c.l.b16 %v5455
    %v5940 = vunpack.c.l.b16 %v5456
    %v5941 = vunpack.c.l.b16 %v5457
    %v5942 = vunpack.c.l.b16 %v5458
    %v5943 = vunpack.c.l.b16 %v5459
    %v5944 = vunpack.c.l.b16 %v5460
    %v5945 = vunpack.c.l.b16 %v5461
    %v5946 = vunpack.c.l.b16 %v5462
    %v5947 = vunpack.c.l.b16 %v5463
    %v5948 = vunpack.c.l.b16 %v5464
    %v5949 = vunpack.c.l.b16 %v5465
    %v5950 = vunpack.c.l.b16 %v5466
    %v5951 = vunpack.c.l.b16 %v5467
    %v5952 = vunpack.c.l.b16 %v5468
    %v5953 = vunpack.c.l.b16 %v5469
    %v5954 = vunpack.c.l.b16 %v5470
    %v5955 = vunpack.c.l.b16 %v5471
    %v5956 = vunpack.c.l.b16 %v5472
    %v5957 = vunpack.c.l.b16 %v5473
    %v5958 = vunpack.c.l.b16 %v5474
    %v5959 = vunpack.c.l.b16 %v5475
    %v5960 = vunpack.c.l.b16 %v5476
    %v5961 = vunpack.c.l.b16 %v5477
    %v5962 = vunpack.c.l.b16 %v5478
    %v5963 = vunpack.c.l.b16 %v5479
    %v5964 = vunpack.c.l.b16 %v5480
    %v5965 = vunpack.c.l.b16 %v5481
    %v5966 = vunpack.c.l.b16 %v5482
    %v5967 = vunpack.c.l.b16 %v5483
    %v5968 = vunpack.c.l.b16 %v5484
    %v5969 = vunpack.c.l.b16 %v5485
    %v5970 = vunpack.c.l.b16 %v5486
    %v5971 = vunpack.c.l.b16 %v5487
    %v5972 = vunpack.c.l.b16 %v5488
    %v5973 = vunpack.c.l.b16 %v5489
    %v5974 = vunpack.c.l.b16 %v5490
    %v5975 = vunpack.c.l.b16 %v5491
    %v5976 = vunpack.c.l.b16 %v5492
    %v5977 = vunpack.c.l.b16 %v5493
    %v5978 = vunpack.c.l.b16 %v5494
    %v5979 = vunpack.c.l.b16 %v5495
    %v5980 = vunpack.c.l.b16 %v5496
    %v5981 = vunpack.c.l.b16 %v5497
    %v5982 = vunpack.c.l.b16 %v5498
    %v5983 = vunpack.c.l.b16 %v5499
    %v5984 = vunpack.c.l.b16 %v5500
    %v5985 = vunpack.c.l.b16 %v5501
    %v5986 = vunpack.c.l.b16 %v5502
    %v5987 = vunpack.c.l.b16 %v5503
    %v5988 = vunpack.c.l.b16 %v5504
    %v5989 = vunpack.c.l.b16 %v5505
    %v5990 = vunpack.c.l.b16 %v5506
    %v5991 = vunpack.c.l.b16 %v5507
    %v5992 = vunpack.c.l.b16 %v5508
    %v5993 = vunpack.c.l.b16 %v5509
    %v5994 = vunpack.c.l.b16 %v5510
    %v5995 = vunpack.c.l.b16 %v5511
    %v5996 = vunpack.c.l.b16 %v5512
    %v5997 = vunpack.c.l.b16 %v5513
    %v5998 = vunpack.c.l.b16 %v5514
    %v5999 = vunpack.c.l.b16 %v5515
    %v6000 = vunpack.c.l.b16 %v5516
    %v6001 = vunpack.c.l.b16 %v5517
    %v6002 = vunpack.c.l.b16 %v5518
    %v6003 = vunpack.c.l.b16 %v5519
    %v6004 = vunpack.c.l.b16 %v5520
    %v6005 = vunpack.c.l.b16 %v5521
    %v6006 = vunpack.c.l.b16 %v5522
    %v6007 = vunpack.c.l.b16 %v5523
    %v6008 = vunpack.c.l.b16 %v5524
    %v6009 = vunpack.c.l.b16 %v5525
    %v6010 = vunpack.c.l.b16 %v5526
    %v6011 = vunpack.c.l.b16 %v5527
    %v6012 = vunpack.c.l.b16 %v5528
    %v6013 = vunpack.c.l.b16 %v5529
    %v6014 = vunpack.c.l.b16 %v5530
    %v6015 = vunpack.c.l.b16 %v5531
    %v6016 = vunpack.c.l.b16 %v5532
    %v6017 = vunpack.c.l.b16 %v5533
    %v6018 = vunpack.c.l.b16 %v5534
    %v6019 = vunpack.c.l.b16 %v5535
    %v6020 = vunpack.c.l.b16 %v5536
    %v6021 = vunpack.c.l.b16 %v5537
    %v6022 = vunpack.c.l.b16 %v5538
    %v6023 = vunpack.c.l.b16 %v5539
    %v6024 = vunpack.c.l.b16 %v5540
    %v6025 = vunpack.c.l.b16 %v5541
    %v6026 = vunpack.c.l.b16 %v5542
    %v6027 = vunpack.c.l.b16 %v5543
    %v6028 = vunpack.c.l.b16 %v5544
    %v6029 = vunpack.c.l.b16 %v5545
    %v6030 = vunpack.c.l.b16 %v5546
    %v6031 = vunpack.c.l.b16 %v5547
    %v6032 = vunpack.c.l.b16 %v5548
    %v6033 = vunpack.c.l.b16 %v5549
    %v6034 = vunpack.c.l.b16 %v5550
    %v6035 = vunpack.c.l.b16 %v5551
    %v6036 = vunpack.c.l.b16 %v5552
    %v6037 = vunpack.c.l.b16 %v5553
    %v6038 = vunpack.c.l.b16 %v5554
    %v6039 = vunpack.c.l.b16 %v5555
    %v6040 = vunpack.c.l.b16 %v5556
    %v6041 = vunpack.c.l.b16 %v5557
    %v6042 = vunpack.c.l.b16 %v5558
    %v6043 = vunpack.c.l.b16 %v5559
    %v6044 = vunpack.c.l.b16 %v5560
    %v6045 = vunpack.c.l.b16 %v5561
    %v6046 = vunpack.c.l.b16 %v5562
    %v6047 = vunpack.c.l.b16 %v5563
    %v6048 = vunpack.c.l.b16 %v5564
    %v6049 = vunpack.c.l.b16 %v5565
    %v6050 = vunpack.c.l.b16 %v5566
    %v6051 = vunpack.c.l.b16 %v5567
    %v6052 = vunpack.c.l.b16 %v5568
    %v6053 = vunpack.c.l.b16 %v5569
    %v6054 = vunpack.c.l.b16 %v5570
    %v6055 = vunpack.c.l.b16 %v5571
    %v6056 = vunpack.c.l.b16 %v5572
    %v6057 = vunpack.c.l.b16 %v5573
    %v6058 = vpack.c.b16 %v5819, %v5818
    %v6059 = vpack.c.b16 %v5821, %v5820
    %v6060 = vpack.c.b16 %v5823, %v5822
    %v6061 = vpack.c.b16 %v5825, %v5824
    %v6062 = vpack.c.b16 %v5827, %v5826
    %v6063 = vpack.c.b16 %v5829, %v5828
    %v6064 = vpack.c.b16 %v5831, %v5830
    %v6065 = vpack.c.b16 %v5833, %v5832
    %v6066 = vpack.c.b16 %v5835, %v5834
    %v6067 = vpack.c.b16 %v5837, %v5836
    %v6068 = vpack.c.b16 %v5839, %v5838
    %v6069 = vpack.c.b16 %v5841, %v5840
    %v6070 = vpack.c.b16 %v5843, %v5842
    %v6071 = vpack.c.b16 %v5845, %v5844
    %v6072 = vpack.c.b16 %v5847, %v5846
    %v6073 = vpack.c.b16 %v5849, %v5848
    %v6074 = vpack.c.b16 %v5851, %v5850
    %v6075 = vpack.c.b16 %v5853, %v5852
    %v6076 = vpack.c.b16 %v5855, %v5854
    %v6077 = vpack.c.b16 %v5857, %v5856
    %v6078 = vpack.c.b16 %v5859, %v5858
    %v6079 = vpack.c.b16 %v5861, %v5860
    %v6080 = vpack.c.b16 %v5863, %v5862
    %v6081 = vpack.c.b16 %v5865, %v5864
    %v6082 = vpack.c.b16 %v5867, %v5866
    %v6083 = vpack.c.b16 %v5869, %v5868
    %v6084 = vpack.c.b16 %v5871, %v5870
    %v6085 = vpack.c.b16 %v5873, %v5872
    %v6086 = vpack.c.b16 %v5875, %v5874
    %v6087 = vpack.c.b16 %v5877, %v5876
    %v6088 = vpack.c.b16 %v5879, %v5878
    %v6089 = vpack.c.b16 %v5881, %v5880
    %v6090 = vpack.c.b16 %v5883, %v5882
    %v6091 = vpack.c.b16 %v5885, %v5884
    %v6092 = vpack.c.b16 %v5887, %v5886
    %v6093 = vpack.c.b16 %v5889, %v5888
    %v6094 = vpack.c.b16 %v5891, %v5890
    %v6095 = vpack.c.b16 %v5893, %v5892
    %v6096 = vpack.c.b16 %v5895, %v5894
    %v6097 = vpack.c.b16 %v5897, %v5896
    %v6098 = vpack.c.b16 %v5899, %v5898
    %v6099 = vpack.c.b16 %v5901, %v5900
    %v6100 = vpack.c.b16 %v5903, %v5902
    %v6101 = vpack.c.b16 %v5905, %v5904
    %v6102 = vpack.c.b16 %v5907, %v5906
    %v6103 = vpack.c.b16 %v5909, %v5908
    %v6104 = vpack.c.b16 %v5911, %v5910
    %v6105 = vpack.c.b16 %v5913, %v5912
    %v6106 = vpack.c.b16 %v5915, %v5914
    %v6107 = vpack.c.b16 %v5917, %v5916
    %v6108 = vpack.c.b16 %v5919, %v5918
    %v6109 = vpack.c.b16 %v5921, %v5920
    %v6110 = vpack.c.b16 %v5923, %v5922
    %v6111 = vpack.c.b16 %v5925, %v5924
    %v6112 = vpack.c.b16 %v5927, %v5926
    %v6113 = vpack.c.b16 %v5929, %v5928
    %v6114 = vpack.c.b16 %v5931, %v5930
    %v6115 = vpack.c.b16 %v5933, %v5932
    %v6116 = vpack.c.b16 %v5935, %v5934
    %v6117 = vpack.c.b16 %v5937, %v5936
    %v6118 = vpack.c.b16 %v5939, %v5938
    %v6119 = vpack.c.b16 %v5941, %v5940
    %v6120 = vpack.c.b16 %v5943, %v5942
    %v6121 = vpack.c.b16 %v5945, %v5944
    %v6122 = vpack.c.b16 %v5947, %v5946
    %v6123 = vpack.c.b16 %v5949, %v5948
    %v6124 = vpack.c.b16 %v5951, %v5950
    %v6125 = vpack.c.b16 %v5953, %v5952
    %v6126 = vpack.c.b16 %v5955, %v5954
    %v6127 = vpack.c.b16 %v5957, %v5956
    %v6128 = vpack.c.b16 %v5959, %v5958
    %v6129 = vpack.c.b16 %v5961, %v5960
    %v6130 = vpack.c.b16 %v5963, %v5962
    %v6131 = vpack.c.b16 %v5965, %v5964
    %v6132 = vpack.c.b16 %v5967, %v5966
    %v6133 = vpack.c.b16 %v5969, %v5968
    %v6134 = vpack.c.b16 %v5971, %v5970
    %v6135 = vpack.c.b16 %v5973, %v5972
    %v6136 = vpack.c.b16 %v5975, %v5974
    %v6137 = vpack.c.b16 %v5977, %v5976
    %v6138 = vpack.c.b16 %v5979, %v5978
    %v6139 = vpack.c.b16 %v5981, %v5980
    %v6140 = vpack.c.b16 %v5983, %v5982
    %v6141 = vpack.c.b16 %v5985, %v5984
    %v6142 = vpack.c.b16 %v5987, %v5986
    %v6143 = vpack.c.b16 %v5989, %v5988
    %v6144 = vpack.c.b16 %v5991, %v5990
    %v6145 = vpack.c.b16 %v5993, %v5992
    %v6146 = vpack.c.b16 %v5995, %v5994
    %v6147 = vpack.c.b16 %v5997, %v5996
    %v6148 = vpack.c.b16 %v5999, %v5998
    %v6149 = vpack.c.b16 %v6001, %v6000
    %v6150 = vpack.c.b16 %v6003, %v6002
    %v6151 = vpack.c.b16 %v6005, %v6004
    %v6152 = vpack.c.b16 %v6007, %v6006
    %v6153 = vpack.c.b16 %v6009, %v6008
    %v6154 = vpack.c.b16 %v6011, %v6010
    %v6155 = vpack.c.b16 %v6013, %v6012
    %v6156 = vpack.c.b16 %v6015, %v6014
    %v6157 = vpack.c.b16 %v6017, %v6016
    %v6158 = vpack.c.b16 %v6019, %v6018
    %v6159 = vpack.c.b16 %v6021, %v6020
    %v6160 = vpack.c.b16 %v6023, %v6022
    %v6161 = vpack.c.b16 %v6025, %v6024
    %v6162 = vpack.c.b16 %v6027, %v6026
    %v6163 = vpack.c.b16 %v6029, %v6028
    %v6164 = vpack.c.b16 %v6031, %v6030
    %v6165 = vpack.c.b16 %v6033, %v6032
    %v6166 = vpack.c.b16 %v6035, %v6034
    %v6167 = vpack.c.b16 %v6037, %v6036
    %v6168 = vpack.c.b16 %v6039, %v6038
    %v6169 = vpack.c.b16 %v6041, %v6040
    %v6170 = vpack.c.b16 %v6043, %v6042
    %v6171 = vpack.c.b16 %v6045, %v6044
    %v6172 = vpack.c.b16 %v6047, %v6046
    %v6173 = vpack.c.b16 %v6049, %v6048
    %v6174 = vpack.c.b16 %v6051, %v6050
    %v6175 = vpack.c.b16 %v6053, %v6052
    %v6176 = vpack.c.b16 %v6055, %v6054
    %v6177 = vpack.c.b16 %v6057, %v6056
    %6298 = vmatpush.bf16.msra.mxu0 %v6065
    %6299 = vmatpush.bf16.msra.mxu0 %v6064
    %6300 = vmatpush.bf16.msra.mxu0 %v6063
    %6301 = vmatpush.bf16.msra.mxu0 %v6062
    %6302 = vmatpush.bf16.msra.mxu0 %v6061
    %6303 = vmatpush.bf16.msra.mxu0 %v6060
    %6304 = vmatpush.bf16.msra.mxu0 %v6059
    %6305 = vmatpush.bf16.msra.mxu0 %v6058
    %6306 = vmatmul.bf16.gmra.mxu0 %v5319
    %v6307 = vpop.f32.mrf.mxu0
    %v6308 = vadd.f32 %v5576, %v6307
    %v6309 = vpop.f32.mrf.mxu0
    %6310 = vdwg.mxu0
    %6311 = vmatpush.bf16.msra.mxu0 %v6073
    %6312 = vmatpush.bf16.msra.mxu0 %v6072
    %6313 = vmatpush.bf16.msra.mxu0 %v6071
    %6314 = vmatpush.bf16.msra.mxu0 %v6070
    %6315 = vmatpush.bf16.msra.mxu0 %v6069
    %6316 = vmatpush.bf16.msra.mxu0 %v6068
    %6317 = vmatpush.bf16.msra.mxu0 %v6067
    %6318 = vmatpush.bf16.msra.mxu0 %v6066
    %6319 = vmatmul.bf16.gmra.mxu0 %v5320
    %v6320 = vpop.f32.mrf.mxu0
    %v6321 = vadd.f32 %v6308, %v6320
    %v6322 = vpop.f32.mrf.mxu0
    %6323 = vdwg.mxu0
    %6324 = vmatpush.bf16.msra.mxu0 %v6081
    %6325 = vmatpush.bf16.msra.mxu0 %v6080
    %6326 = vmatpush.bf16.msra.mxu0 %v6079
    %6327 = vmatpush.bf16.msra.mxu0 %v6078
    %6328 = vmatpush.bf16.msra.mxu0 %v6077
    %6329 = vmatpush.bf16.msra.mxu0 %v6076
    %6330 = vmatpush.bf16.msra.mxu0 %v6075
    %6331 = vmatpush.bf16.msra.mxu0 %v6074
    %6332 = vmatmul.bf16.gmra.mxu0 %v5321
    %v6333 = vpop.f32.mrf.mxu0
    %v6334 = vadd.f32 %v6321, %v6333
    %v6335 = vpop.f32.mrf.mxu0
    %6336 = vdwg.mxu0
    %6337 = vmatpush.bf16.msra.mxu0 %v6089
    %6338 = vmatpush.bf16.msra.mxu0 %v6088
    %6339 = vmatpush.bf16.msra.mxu0 %v6087
    %6340 = vmatpush.bf16.msra.mxu0 %v6086
    %6341 = vmatpush.bf16.msra.mxu0 %v6085
    %6342 = vmatpush.bf16.msra.mxu0 %v6084
    %6343 = vmatpush.bf16.msra.mxu0 %v6083
    %6344 = vmatpush.bf16.msra.mxu0 %v6082
    %6345 = vmatmul.bf16.gmra.mxu0 %v5322
    %v6346 = vpop.f32.mrf.mxu0
    %v6347 = vadd.f32 %v6334, %v6346
    %v6348 = vpop.f32.mrf.mxu0
    %6349 = vdwg.mxu0
    %6350 = vmatpush.bf16.msra.mxu0 %v6097
    %6351 = vmatpush.bf16.msra.mxu0 %v6096
    %6352 = vmatpush.bf16.msra.mxu0 %v6095
    %6353 = vmatpush.bf16.msra.mxu0 %v6094
    %6354 = vmatpush.bf16.msra.mxu0 %v6093
    %6355 = vmatpush.bf16.msra.mxu0 %v6092
    %6356 = vmatpush.bf16.msra.mxu0 %v6091
    %6357 = vmatpush.bf16.msra.mxu0 %v6090
    %6358 = vmatmul.bf16.gmra.mxu0 %v5323
    %v6359 = vpop.f32.mrf.mxu0
    %v6360 = vadd.f32 %v6347, %v6359
    %v6361 = vpop.f32.mrf.mxu0
    %6362 = vdwg.mxu0
    %6363 = vmatpush.bf16.msra.mxu0 %v6105
    %6364 = vmatpush.bf16.msra.mxu0 %v6104
    %6365 = vmatpush.bf16.msra.mxu0 %v6103
    %6366 = vmatpush.bf16.msra.mxu0 %v6102
    %6367 = vmatpush.bf16.msra.mxu0 %v6101
    %6368 = vmatpush.bf16.msra.mxu0 %v6100
    %6369 = vmatpush.bf16.msra.mxu0 %v6099
    %6370 = vmatpush.bf16.msra.mxu0 %v6098
    %6371 = vmatmul.bf16.gmra.mxu0 %v5324
    %v6372 = vpop.f32.mrf.mxu0
    %v6373 = vadd.f32 %v6360, %v6372
    %v6374 = vpop.f32.mrf.mxu0
    %6375 = vdwg.mxu0
    %6376 = vmatpush.bf16.msra.mxu0 %v6113
    %6377 = vmatpush.bf16.msra.mxu0 %v6112
    %6378 = vmatpush.bf16.msra.mxu0 %v6111
    %6379 = vmatpush.bf16.msra.mxu0 %v6110
    %6380 = vmatpush.bf16.msra.mxu0 %v6109
    %6381 = vmatpush.bf16.msra.mxu0 %v6108
    %6382 = vmatpush.bf16.msra.mxu0 %v6107
    %6383 = vmatpush.bf16.msra.mxu0 %v6106
    %6384 = vmatmul.bf16.gmra.mxu0 %v5325
    %v6385 = vpop.f32.mrf.mxu0
    %v6386 = vadd.f32 %v6373, %v6385
    %v6387 = vpop.f32.mrf.mxu0
    %6388 = vdwg.mxu0
    %6389 = vmatpush.bf16.msra.mxu0 %v6121
    %6390 = vmatpush.bf16.msra.mxu0 %v6120
    %6391 = vmatpush.bf16.msra.mxu0 %v6119
    %6392 = vmatpush.bf16.msra.mxu0 %v6118
    %6393 = vmatpush.bf16.msra.mxu0 %v6117
    %6394 = vmatpush.bf16.msra.mxu0 %v6116
    %6395 = vmatpush.bf16.msra.mxu0 %v6115
    %6396 = vmatpush.bf16.msra.mxu0 %v6114
    %6397 = vmatmul.bf16.gmra.mxu0 %v5326
    %v6398 = vpop.f32.mrf.mxu0
    %v6399 = vadd.f32 %v6386, %v6398
    %v6400 = vpop.f32.mrf.mxu0
    %6401 = vdwg.mxu0
    %6402 = vmatpush.bf16.msra.mxu0 %v6129
    %6403 = vmatpush.bf16.msra.mxu0 %v6128
    %6404 = vmatpush.bf16.msra.mxu0 %v6127
    %6405 = vmatpush.bf16.msra.mxu0 %v6126
    %6406 = vmatpush.bf16.msra.mxu0 %v6125
    %6407 = vmatpush.bf16.msra.mxu0 %v6124
    %6408 = vmatpush.bf16.msra.mxu0 %v6123
    %6409 = vmatpush.bf16.msra.mxu0 %v6122
    %6410 = vmatmul.bf16.gmra.mxu0 %v5327
    %v6411 = vpop.f32.mrf.mxu0
    %v6412 = vadd.f32 %v6399, %v6411
    %v6413 = vpop.f32.mrf.mxu0
    %6414 = vdwg.mxu0
    %6415 = vmatpush.bf16.msra.mxu0 %v6137
    %6416 = vmatpush.bf16.msra.mxu0 %v6136
    %6417 = vmatpush.bf16.msra.mxu0 %v6135
    %6418 = vmatpush.bf16.msra.mxu0 %v6134
    %6419 = vmatpush.bf16.msra.mxu0 %v6133
    %6420 = vmatpush.bf16.msra.mxu0 %v6132
    %6421 = vmatpush.bf16.msra.mxu0 %v6131
    %6422 = vmatpush.bf16.msra.mxu0 %v6130
    %6423 = vmatmul.bf16.gmra.mxu0 %v5328
    %v6424 = vpop.f32.mrf.mxu0
    %v6425 = vadd.f32 %v6412, %v6424
    %v6426 = vpop.f32.mrf.mxu0
    %6427 = vdwg.mxu0
    %6428 = vmatpush.bf16.msra.mxu0 %v6145
    %6429 = vmatpush.bf16.msra.mxu0 %v6144
    %6430 = vmatpush.bf16.msra.mxu0 %v6143
    %6431 = vmatpush.bf16.msra.mxu0 %v6142
    %6432 = vmatpush.bf16.msra.mxu0 %v6141
    %6433 = vmatpush.bf16.msra.mxu0 %v6140
    %6434 = vmatpush.bf16.msra.mxu0 %v6139
    %6435 = vmatpush.bf16.msra.mxu0 %v6138
    %6436 = vmatmul.bf16.gmra.mxu0 %v5329
    %v6437 = vpop.f32.mrf.mxu0
    %v6438 = vadd.f32 %v6425, %v6437
    %v6439 = vpop.f32.mrf.mxu0
    %6440 = vdwg.mxu0
    %6441 = vmatpush.bf16.msra.mxu0 %v6153
    %6442 = vmatpush.bf16.msra.mxu0 %v6152
    %6443 = vmatpush.bf16.msra.mxu0 %v6151
    %6444 = vmatpush.bf16.msra.mxu0 %v6150
    %6445 = vmatpush.bf16.msra.mxu0 %v6149
    %6446 = vmatpush.bf16.msra.mxu0 %v6148
    %6447 = vmatpush.bf16.msra.mxu0 %v6147
    %6448 = vmatpush.bf16.msra.mxu0 %v6146
    %6449 = vmatmul.bf16.gmra.mxu0 %v5330
    %v6450 = vpop.f32.mrf.mxu0
    %v6451 = vadd.f32 %v6438, %v6450
    %v6452 = vpop.f32.mrf.mxu0
    %6453 = vdwg.mxu0
    %6454 = vmatpush.bf16.msra.mxu0 %v6161
    %6455 = vmatpush.bf16.msra.mxu0 %v6160
    %6456 = vmatpush.bf16.msra.mxu0 %v6159
    %6457 = vmatpush.bf16.msra.mxu0 %v6158
    %6458 = vmatpush.bf16.msra.mxu0 %v6157
    %6459 = vmatpush.bf16.msra.mxu0 %v6156
    %6460 = vmatpush.bf16.msra.mxu0 %v6155
    %6461 = vmatpush.bf16.msra.mxu0 %v6154
    %6462 = vmatmul.bf16.gmra.mxu0 %v5331
    %v6463 = vpop.f32.mrf.mxu0
    %v6464 = vadd.f32 %v6451, %v6463
    %v6465 = vpop.f32.mrf.mxu0
    %6466 = vdwg.mxu0
    %6467 = vmatpush.bf16.msra.mxu0 %v6169
    %6468 = vmatpush.bf16.msra.mxu0 %v6168
    %6469 = vmatpush.bf16.msra.mxu0 %v6167
    %6470 = vmatpush.bf16.msra.mxu0 %v6166
    %6471 = vmatpush.bf16.msra.mxu0 %v6165
    %6472 = vmatpush.bf16.msra.mxu0 %v6164
    %6473 = vmatpush.bf16.msra.mxu0 %v6163
    %6474 = vmatpush.bf16.msra.mxu0 %v6162
    %6475 = vmatmul.bf16.gmra.mxu0 %v5332
    %v6476 = vpop.f32.mrf.mxu0
    %v6477 = vadd.f32 %v6464, %v6476
    %v6478 = vpop.f32.mrf.mxu0
    %6479 = vdwg.mxu0
    %6480 = vmatpush.bf16.msra.mxu0 %v6177
    %6481 = vmatpush.bf16.msra.mxu0 %v6176
    %6482 = vmatpush.bf16.msra.mxu0 %v6175
    %6483 = vmatpush.bf16.msra.mxu0 %v6174
    %6484 = vmatpush.bf16.msra.mxu0 %v6173
    %6485 = vmatpush.bf16.msra.mxu0 %v6172
    %6486 = vmatpush.bf16.msra.mxu0 %v6171
    %6487 = vmatpush.bf16.msra.mxu0 %v6170
    %6488 = vmatmul.bf16.gmra.mxu0 %v5333
    %v6489 = vpop.f32.mrf.mxu0
    %v6490 = vadd.f32 %v6477, %v6489
    %v6491 = vpop.f32.mrf.mxu0
    %6492 = vdwg.mxu0
    %6493 = vst [vmem:[#allocation16] sm:$0x3] %v6490
    // Predicated region
    $region70: #{tpu_custom_call.1} parent=1 // pred_check
      _
    $region71: #{tpu_custom_call.1} parent=1 // pred_check_branch
      %6495 = sbr.rel (0) target = $region73
    $region72: #{tpu_custom_call.1} parent=1 // pred_region
      %6497 = vsyncadd [#allocation4], 0
      %s6499 = sshll.u32 [#allocation16], 4
      %s6500 = int_to_ptr.vmem [resolvable:$true] %s6499
      %s6501 = sshll.u32 %s9, 4
      %s6502 = int_to_ptr.hbm [resolvable:$true] %s6501
      %6504 = dma.vmem_to_hbm [thread:$0]  %s6500, 32, %s6502, [#allocation4]
    $region73: #{tpu_custom_call.1} parent=1 // pred_fallthru
      _
    // Predicated region
    $region74: #{tpu_custom_call.1} parent=1 // pred_check
      _
    $region75: #{tpu_custom_call.1} parent=1 // pred_check_branch
      %6506 = sbr.rel (0) target = $region77
    $region76: #{tpu_custom_call.1} parent=1 // pred_region
      %6508 = dma.done [#allocation4], 32
    $region77: #{tpu_custom_call.1} parent=1 // pred_fallthru
      _
    %6509 = vsyncpa [#allocation3], 1
    %6510 = vsyncpa [#allocation6], 1
    %6511 = vsyncpa [#allocation9], 1
    %6512 = vsyncpa [#allocation12], 1
    %6513 = vsyncpa [#allocation15], 1
    %6514 = vsyncpa [#allocation4], 1

</llo_original>
